<compile_context>
chip_gen: v7x
topology: tpu7x:2x2x1
jax: 0.10.0
libtpu: 0.0.40
codegen_flags: <defaults>
</compile_context>

<pallas_src>
import functools
import math

import jax
import jax.numpy as jnp
from jax.experimental import pallas as pl
from jax.experimental.pallas import tpu as pltpu


def _gelu(x):
    # TODO(synk): PyTorch nn.GELU defaults to the exact erf form; tanh approximation used here
    # (maps onto the EUP; ~1e-3 deviation).
    return 0.5 * x * (1.0 + jnp.tanh(0.7978845608028654 * (x + 0.044715 * x * x * x)))


# ---------------------------------------------------------------------------
# Fused layer kernel.  Activations are (c, L) with L = nb * h * w tokens on the lane axis
# (nb = 1 for per-batch grid steps, nb = batch when the batch is folded into lanes).
# ---------------------------------------------------------------------------
def _fused_layer_kernel(
    x_ref,          # (1, c, L)   f32   tgt (channels on sublanes, tokens on lanes)
    wqkv_ref,       # (2c, c)     bf16  rows [q cc-major | k cc-major | v cc'-major], LN gamma folded
    qkvb_ref,       # (2c, 1)     f32   W_qkv @ LN beta (folded norm3 bias)
    qe_ref,         # (h*cq, L)   bf16  q relative embeddings per offset d (row d*cq + cc)
    ke_ref,         # (h*cq, L)   bf16  k relative embeddings per offset d
    ve_ref,         # (h*gp, L)   bf16  v relative embeddings per offset d (row d*gp + cc')
    perm_ref,       # (c, c)      bf16  row reorder cc'*G+g -> natural channel g*gp+cc'
    w1_ref,         # (dffn, c)   bf16  conv1 1x1, bn1 scale folded into rows
    bias12_ref,     # (dffn, 2)   f32   [:,0]=conv1+bn1 bias, [:,1]=dwconv+bn2 bias (folded)
    dw_ref,         # (dffn, 9)   f32   3x3 depthwise taps, bn2 scale folded
    dwm_ref,        # (9, L)      f32   precomputed zero-pad validity masks for the 9 taps
    w2_ref,         # (c, dffn)   bf16  conv2 1x1, bn3 scale folded into rows
    b3_ref,         # (c, 1)      f32   folded conv2+bn3 bias
    o_ref,          # (1, c, L)   f32
    *, groups, gp, h, w, nb,
):
    G = groups
    cq = gp // 2
    c = G * gp
    n = h * w
    L = nb * n
    nq = G * cq

    x = x_ref[0]                                               # (c, L)

    # ---------------- norm3: LayerNorm over channels (gamma/beta folded into wqkv/qkvb) ------
    mu = jnp.mean(x, axis=0, keepdims=True)
    xc = x - mu
    var = jnp.mean(xc * xc, axis=0, keepdims=True)
    xhat = (xc * jax.lax.rsqrt(var + 1e-5)).astype(jnp.bfloat16)

    # ---------------- dec_axial_attn: PolarAttention along the polar (h) axis ----------------
    qkv = jnp.dot(wqkv_ref[...], xhat,
                  preferred_element_type=jnp.float32) + qkvb_ref[...]   # (2c, L)
    q_all = qkv[0:nq]                    # (G*cq, L)  row = cc*G + g
    k_all = qkv[nq:2 * nq]               # (G*cq, L)  row = cc*G + g
    v_all = qkv[2 * nq:]                 # (c, L)     row = cc'*G + g

    # per-column polar index (only needed for the cross-slab roll fix-up when nb > 1)
    if nb > 1:
        i_pos = (jax.lax.broadcasted_iota(jnp.int32, (1, L), 1) % n) // w
    else:
        i_pos = None

    def window(val, d):
        # Gather, for every query column (i, wi), the key/value column at polar position
        # j = (i - d) mod h of the SAME batch slab.  One lane roll (two + select when the
        # batch is folded into lanes, to undo the cross-slab wrap).
        if d == 0:
            return val
        a = pltpu.roll(val, shift=d * w, axis=1)
        if nb == 1:
            return a
        b2 = pltpu.roll(val, shift=((d - h) * w) % L, axis=1)
        return jnp.where(i_pos >= d, a, b2)

    qe_tab = qe_ref[...]                 # (h*cq, L) bf16
    ke_tab = ke_ref[...]
    ve_tab = ve_ref[...]                 # (h*gp, L) bf16

    # logits over relative offset d (== key position j = (i - d) mod h per column)
    logits = []
    for d in range(h):
        kb = window(k_all, d)
        lg = None
        for cc in range(cq):
            qc = q_all[cc * G:(cc + 1) * G]                    # (G, L)
            kc = kb[cc * G:(cc + 1) * G]
            term = qc * (kc + qe_tab[d * cq + cc]) + kc * ke_tab[d * cq + cc]
            lg = term if lg is None else lg + term
        logits.append(lg)                                      # (G, L)
    lg3 = jnp.stack(logits, axis=0)                            # (h, G, L)

    # softmax over d (no 1/sqrt(dk) scale -- matches PolarAttention); approx recip ~1e-3 rel err
    m = jnp.max(lg3, axis=0)                                   # (G, L)
    p3 = jnp.exp(lg3 - m[None])                                # (h, G, L)
    inv = pl.reciprocal(jnp.sum(p3, axis=0), approx=True)      # (G, L)
    sim3 = p3 * inv[None]                                      # (h, G, L)

    # weighted value sum (sv), accumulated per cc' block; value windows recomputed via roll
    att_cc = [jnp.zeros((G, L), jnp.float32) for _ in range(gp)]
    for d in range(h):
        vb = window(v_all, d)                                  # (c, L)
        s = sim3[d]                                            # (G, L)
        for cc in range(gp):
            att_cc[cc] = att_cc[cc] + s * vb[cc * G:(cc + 1) * G]

    # value relative-embedding term (sve)
    for cc in range(gp):
        acc = att_cc[cc]
        for d in range(h):
            acc = acc + sim3[d] * ve_tab[d * gp + cc]
        att_cc[cc] = acc

    att_p = jnp.concatenate(att_cc, axis=0)                    # (c, L), rows cc'*G + g
    # reorder rows to the natural channel order g*gp + cc' (one tiny MXU permutation)
    att = jnp.dot(perm_ref[...], att_p.astype(jnp.bfloat16),
                  preferred_element_type=jnp.float32)          # (c, L)

    t = x + att                                                # residual (dropout3 = identity)

    # ---------------- DWFFN (all norm affines / biases pre-folded) ----------------
    y1 = jnp.dot(w1_ref[...], t.astype(jnp.bfloat16),
                 preferred_element_type=jnp.float32) + bias12_ref[:, 0:1]
    y1 = _gelu(y1)                                             # (dffn, L)

    # 3x3 depthwise conv (padding=1): lane rolls + precomputed boundary masks.
    acc = y1 * dw_ref[:, 4:5]                                  # center tap: no shift, always valid
    for t_idx in range(9):
        if t_idx == 4:
            continue
        oh = t_idx // 3 - 1
        ow = t_idx % 3 - 1
        delta = oh * w + ow
        rolled = pltpu.roll(y1, shift=(-delta) % L, axis=1)    # rolled[col] = y1[col + delta]
        acc = acc + (rolled * dwm_ref[t_idx:t_idx + 1, :]) * dw_ref[:, t_idx:t_idx + 1]
    y2 = _gelu(acc + bias12_ref[:, 1:2])

    y3 = jnp.dot(w2_ref[...], y2.astype(jnp.bfloat16),
                 preferred_element_type=jnp.float32) + b3_ref[...]     # (c, L)

    o_ref[0] = t + y3                                          # residual, lane-dense store


def fused_backtracing_layer(x_blocks, prep, groups, gp, h, w, nb):
    """x_blocks: (num_blocks, c, L) with L = nb*h*w; one grid step per block."""
    num_blocks, c, L = x_blocks.shape
    cq = gp // 2
    dffn = prep['w1'].shape[0]
    kern = functools.partial(_fused_layer_kernel, groups=groups, gp=gp, h=h, w=w, nb=nb)
    full2 = lambda i: (0, 0)
    return pl.pallas_call(
        kern,
        out_shape=jax.ShapeDtypeStruct((num_blocks, c, L), jnp.float32),
        grid=(num_blocks,),
        in_specs=[
            pl.BlockSpec((1, c, L), lambda i: (i, 0, 0)),
            pl.BlockSpec((2 * c, c), full2),
            pl.BlockSpec((2 * c, 1), full2),
            pl.BlockSpec((h * cq, L), full2),
            pl.BlockSpec((h * cq, L), full2),
            pl.BlockSpec((h * gp, L), full2),
            pl.BlockSpec((c, c), full2),
            pl.BlockSpec((dffn, c), full2),
            pl.BlockSpec((dffn, 2), full2),
            pl.BlockSpec((dffn, 9), full2),
            pl.BlockSpec((9, L), full2),
            pl.BlockSpec((c, dffn), full2),
            pl.BlockSpec((c, 1), full2),
        ],
        out_specs=pl.BlockSpec((1, c, L), lambda i: (i, 0, 0)),
        compiler_params=pltpu.CompilerParams(dimension_semantics=("parallel",)),
    )(x_blocks, prep['w_qkv'], prep['qkv_b'], prep['qe'], prep['ke'], prep['ve'],
      prep['out_perm'], prep['w1'], prep['bias12'], prep['dw'], prep['dw_mask'],
      prep['w2'], prep['b3'])


# ---------------------------------------------------------------------------
# Full BackTracingDecoderLayer forward (eval mode).
# NOTE: in a multi-layer stack keep activations channel-major ((b, c, n) / (c, b*n)) between
# layers to avoid the two XLA transposes below.
# ---------------------------------------------------------------------------
def backtracing_decoder_layer_forward(tgt, prep, polar_bev_shape, n_heads, lane_batch):
    """Other PyTorch forward() args (query_pos, focus_points, src, ...) only feed the two
    deformable-attention branches whose definitions were not provided; they are omitted."""
    b, n_tok, c = tgt.shape
    h, w = polar_bev_shape
    gp = c // n_heads
    # TODO(synk): MSDeformAttn (dec_self_attn) branch omitted (definition not provided upstream).
    # TODO(synk): MVMSAdaptiveAttn (cross_attn) branch omitted (definition not provided upstream).
    if lane_batch:
        # single-TC chips: fold the batch into the lane axis -> one grid step, wider slabs
        x_blocks = jnp.transpose(tgt, (2, 0, 1)).reshape(1, c, b * n_tok)
        out = fused_backtracing_layer(x_blocks, prep, n_heads, gp, h, w, nb=b)
        return jnp.transpose(out.reshape(c, b, n_tok), (1, 2, 0))
    else:
        # multi-core chips: one batch element per grid step ("parallel" -> one per TensorCore)
        x_blocks = jnp.transpose(tgt, (0, 2, 1))
        out = fused_backtracing_layer(x_blocks, prep, n_heads, gp, h, w, nb=1)
        return jnp.transpose(out, (0, 2, 1))


def _prefer_lane_batching():
    """Fold the batch into lanes on single-TensorCore chips (v5e / v6e); keep per-batch grid
    parallelism on multi-core chips (v7x, v5p/v4 megacore)."""
    try:
        kind = jax.devices()[0].device_kind.lower()
    except Exception:
        return False
    return any(s in kind for s in ('v5e', 'v5 lite', 'v5lite', 'v6e', 'v6 lite', 'v6lite'))


# ---------------------------------------------------------------------------
# Parameters: raw (PyTorch-like) init + one-time static preprocessing / folding.
# ---------------------------------------------------------------------------
def init_raw_params(key, d_model, d_ffn, n_heads, ks_h):
    gp = d_model // n_heads
    ks = jax.random.split(key, 11)
    p = {}
    p['ln3_g'] = jnp.ones((d_model,), jnp.float32)
    p['ln3_b'] = jnp.zeros((d_model,), jnp.float32)
    p['w_qkv'] = jax.random.normal(ks[0], (2 * d_model, d_model), jnp.float32) * math.sqrt(1.0 / d_model)
    p['relative'] = jax.random.normal(ks[1], (2 * gp, 2 * ks_h - 1), jnp.float32) * math.sqrt(1.0 / gp)
    p['w1'] = jax.random.normal(ks[2], (d_ffn, d_model), jnp.float32) * math.sqrt(1.0 / d_model)
    p['b1'] = jnp.zeros((d_ffn,), jnp.float32)
    p['bn1_s'] = 1.0 + 0.05 * jax.random.normal(ks[3], (d_ffn,), jnp.float32)
    p['bn1_t'] = 0.05 * jax.random.normal(ks[4], (d_ffn,), jnp.float32)
    p['dw'] = jax.random.normal(ks[5], (3, 3, d_ffn), jnp.float32) * (1.0 / 3.0)
    p['dw_b'] = jnp.zeros((d_ffn,), jnp.float32)
    p['bn2_s'] = 1.0 + 0.05 * jax.random.normal(ks[6], (d_ffn,), jnp.float32)
    p['bn2_t'] = 0.05 * jax.random.normal(ks[7], (d_ffn,), jnp.float32)
    p['w2'] = jax.random.normal(ks[8], (d_model, d_ffn), jnp.float32) * math.sqrt(1.0 / d_ffn)
    p['b2'] = jnp.zeros((d_model,), jnp.float32)
    p['bn3_s'] = 1.0 + 0.05 * jax.random.normal(ks[9], (d_model,), jnp.float32)
    p['bn3_t'] = 0.05 * jax.random.normal(ks[10], (d_model,), jnp.float32)
    return p


def prepare_params(raw, d_model, n_heads, h, w, lane_cols):
    """Static one-time preprocessing / weight folding (hoisted out of the forward pass).
    lane_cols = nb * h * w is the lane width the kernel sees per grid step."""
    G = n_heads
    gp = d_model // G
    cq = gp // 2
    c = d_model
    n = h * w
    L = lane_cols
    assert L % n == 0
    dffn = raw['w1'].shape[0]

    prep = {}

    # --- qkv weights: rows permuted [q cc-major | k cc-major | v cc'-major],
    #     LayerNorm(norm3) gamma folded into columns, beta folded into a constant bias. ---
    q_rows = [g * 2 * gp + cc for cc in range(cq) for g in range(G)]
    k_rows = [g * 2 * gp + cq + cc for cc in range(cq) for g in range(G)]
    v_rows = [g * 2 * gp + 2 * cq + cc for cc in range(gp) for g in range(G)]
    perm = jnp.array(q_rows + k_rows + v_rows, jnp.int32)
    wq = raw['w_qkv'][perm, :]
    prep['w_qkv'] = (wq * raw['ln3_g'][None, :]).astype(jnp.bfloat16)            # (2c, c)
    prep['qkv_b'] = (wq @ raw['ln3_b']).reshape(-1, 1).astype(jnp.float32)       # (2c, 1)

    # --- per-offset-d relative embedding tables (deduped over groups, bf16) ---
    # offset d means key position j = (i - d) mod h; signed offset delta = d (i>=d) or d-h (i<d).
    i_of_col = (jnp.arange(L) % n) // w
    wi_of_col = jnp.arange(L) % w
    rel = raw['relative']                                                        # (2*gp, 2h-1)
    qe, ke, ve = [], [], []
    for d in range(h):
        ge = i_of_col >= d
        idx_qv = jnp.where(ge, d + h - 1, max(d - 1, 0))                         # delta + h - 1
        idx_k = jnp.where(ge, h - 1 - d, min(2 * h - 1 - d, 2 * h - 2))          # -delta + h - 1
        qe.append(rel[:cq, :][:, idx_qv])                                        # (cq, L)
        ke.append(rel[cq:2 * cq, :][:, idx_k])                                   # (cq, L)
        ve.append(rel[2 * cq:, :][:, idx_qv])                                    # (gp, L)
    prep['qe'] = jnp.concatenate(qe, axis=0).astype(jnp.bfloat16)                # (h*cq, L)
    prep['ke'] = jnp.concatenate(ke, axis=0).astype(jnp.bfloat16)                # (h*cq, L)
    prep['ve'] = jnp.concatenate(ve, axis=0).astype(jnp.bfloat16)                # (h*gp, L)

    # --- output row reorder: natural channel g*gp+cc' <- attention row cc'*G + g ---
    dst = jnp.arange(c)
    src = (dst % gp) * G + (dst // gp)
    prep['out_perm'] = jax.nn.one_hot(src, c, dtype=jnp.bfloat16)                # (c, c)

    # --- DWFFN with eval-mode norm affines folded into weights / biases ---
    s1, t1 = raw['bn1_s'], raw['bn1_t']
    prep['w1'] = (raw['w1'] * s1[:, None]).astype(jnp.bfloat16)                  # (dffn, c)
    b1f = raw['b1'] * s1 + t1
    s2, t2 = raw['bn2_s'], raw['bn2_t']
    prep['dw'] = (raw['dw'].reshape(9, dffn).T * s2[:, None]).astype(jnp.float32)  # (dffn, 9)
    b2f = raw['dw_b'] * s2 + t2
    prep['bias12'] = jnp.stack([b1f, b2f], axis=1).astype(jnp.float32)           # (dffn, 2)
    s3, t3 = raw['bn3_s'], raw['bn3_t']
    prep['w2'] = (raw['w2'] * s3[:, None]).astype(jnp.bfloat16)                  # (c, dffn)
    prep['b3'] = (raw['b2'] * s3 + t3).reshape(-1, 1).astype(jnp.float32)        # (c, 1)

    # --- 3x3 depthwise zero-pad validity masks (9, L) ---
    masks = []
    for t_idx in range(9):
        oh, ow = t_idx // 3 - 1, t_idx % 3 - 1
        valid = ((i_of_col + oh >= 0) & (i_of_col + oh < h) &
                 (wi_of_col + ow >= 0) & (wi_of_col + ow < w))
        masks.append(valid)
    prep['dw_mask'] = jnp.stack(masks, axis=0).astype(jnp.float32)               # (9, L)
    return prep


if __name__ == "__main__":
    B, D_MODEL, D_FFN, HEADS = 2, 32, 64, 8
    H, W = 8, 16                      # polar_bev_shape; PolarAttention kernel_size == H
    N = H * W

    key = jax.random.PRNGKey(0)
    k_inp, k_par = jax.random.split(key)
    tgt = jax.random.normal(k_inp, (B, N, D_MODEL), jnp.float32)
    raw = init_raw_params(k_par, D_MODEL, D_FFN, HEADS, H)

    lane_batch = _prefer_lane_batching()
    lane_cols = (B if lane_batch else 1) * N
    prep = prepare_params(raw, D_MODEL, HEADS, H, W, lane_cols)

    fwd = jax.jit(functools.partial(backtracing_decoder_layer_forward,
                                    polar_bev_shape=(H, W), n_heads=HEADS,
                                    lane_batch=lane_batch))
    out = fwd(tgt, prep)
    out = jax.block_until_ready(out)

    assert out.shape == (B, N, D_MODEL)
    assert bool(jnp.all(jnp.isfinite(out)))
    print("KERNEL_OK")
</pallas_src>

<mosaic_0001>
module attributes {stable_mosaic.version = 11 : i64} {
  func.func @_fused_layer_kernel(%arg0: i32, %arg1: memref<1x32x128xf32, #tpu.memory_space<vmem>>, %arg2: memref<64x32xbf16, #tpu.memory_space<vmem>>, %arg3: memref<64x1xf32, #tpu.memory_space<vmem>>, %arg4: memref<16x128xbf16, #tpu.memory_space<vmem>>, %arg5: memref<16x128xbf16, #tpu.memory_space<vmem>>, %arg6: memref<32x128xbf16, #tpu.memory_space<vmem>>, %arg7: memref<32x32xbf16, #tpu.memory_space<vmem>>, %arg8: memref<64x32xbf16, #tpu.memory_space<vmem>>, %arg9: memref<64x2xf32, #tpu.memory_space<vmem>>, %arg10: memref<64x9xf32, #tpu.memory_space<vmem>>, %arg11: memref<9x128xf32, #tpu.memory_space<vmem>>, %arg12: memref<32x64xbf16, #tpu.memory_space<vmem>>, %arg13: memref<32x1xf32, #tpu.memory_space<vmem>>, %arg14: memref<1x32x128xf32, #tpu.memory_space<vmem>>) attributes {dimension_semantics = [#tpu.dimension_semantics<parallel>], iteration_bounds = array<i64: 2>, scalar_prefetch = 0 : i64, scratch_operands = 0 : i64, tpu.core_type = #tpu.core_type<tc>, window_params = [{transform_indices = @transform_0, window_bounds = array<i64: 1, 32, 128>}, {pipeline_mode = #tpu.pipeline_mode<synchronous>, transform_indices = @transform_1, window_bounds = array<i64: 64, 32>}, {pipeline_mode = #tpu.pipeline_mode<synchronous>, transform_indices = @transform_2, window_bounds = array<i64: 64, 1>}, {pipeline_mode = #tpu.pipeline_mode<synchronous>, transform_indices = @transform_3, window_bounds = array<i64: 16, 128>}, {pipeline_mode = #tpu.pipeline_mode<synchronous>, transform_indices = @transform_4, window_bounds = array<i64: 16, 128>}, {pipeline_mode = #tpu.pipeline_mode<synchronous>, transform_indices = @transform_5, window_bounds = array<i64: 32, 128>}, {pipeline_mode = #tpu.pipeline_mode<synchronous>, transform_indices = @transform_6, window_bounds = array<i64: 32, 32>}, {pipeline_mode = #tpu.pipeline_mode<synchronous>, transform_indices = @transform_7, window_bounds = array<i64: 64, 32>}, {pipeline_mode = #tpu.pipeline_mode<synchronous>, transform_indices = @transform_8, window_bounds = array<i64: 64, 2>}, {pipeline_mode = #tpu.pipeline_mode<synchronous>, transform_indices = @transform_9, window_bounds = array<i64: 64, 9>}, {pipeline_mode = #tpu.pipeline_mode<synchronous>, transform_indices = @transform_10, window_bounds = array<i64: 9, 128>}, {pipeline_mode = #tpu.pipeline_mode<synchronous>, transform_indices = @transform_11, window_bounds = array<i64: 32, 64>}, {pipeline_mode = #tpu.pipeline_mode<synchronous>, transform_indices = @transform_12, window_bounds = array<i64: 32, 1>}, {transform_indices = @transform_13, window_bounds = array<i64: 1, 32, 128>}]} {
    %c0 = arith.constant 0 : index
    %c0_0 = arith.constant 0 : index
    %c0_1 = arith.constant 0 : index
    %0 = vector.load %arg1[%c0, %c0_0, %c0_1] : memref<1x32x128xf32, #tpu.memory_space<vmem>>, vector<1x32x128xf32>
    %1 = vector.shape_cast %0 : vector<1x32x128xf32> to vector<32x128xf32>
    %cst = arith.constant dense<0.000000e+00> : vector<128xf32>
    %2 = vector.multi_reduction <add>, %1, %cst [0] : vector<32x128xf32> to vector<128xf32>
    %3 = vector.shape_cast %2 : vector<128xf32> to vector<1x128xf32>
    %cst_2 = arith.constant 3.200000e+01 : f32
    %4 = vector.broadcast %cst_2 : f32 to vector<1x128xf32>
    %5 = arith.divf %3, %4 : vector<1x128xf32>
    %6 = vector.broadcast %5 : vector<1x128xf32> to vector<32x128xf32>
    %7 = arith.subf %1, %6 : vector<32x128xf32>
    %8 = arith.mulf %7, %7 : vector<32x128xf32>
    %cst_3 = arith.constant dense<0.000000e+00> : vector<128xf32>
    %9 = vector.multi_reduction <add>, %8, %cst_3 [0] : vector<32x128xf32> to vector<128xf32>
    %10 = vector.shape_cast %9 : vector<128xf32> to vector<1x128xf32>
    %cst_4 = arith.constant 3.200000e+01 : f32
    %11 = vector.broadcast %cst_4 : f32 to vector<1x128xf32>
    %12 = arith.divf %10, %11 : vector<1x128xf32>
    %cst_5 = arith.constant 9.99999974E-6 : f32
    %13 = vector.broadcast %cst_5 : f32 to vector<1x128xf32>
    %14 = arith.addf %12, %13 : vector<1x128xf32>
    %15 = math.rsqrt %14 : vector<1x128xf32>
    %16 = vector.broadcast %15 : vector<1x128xf32> to vector<32x128xf32>
    %17 = arith.mulf %7, %16 : vector<32x128xf32>
    %18 = arith.truncf %17 : vector<32x128xf32> to vector<32x128xbf16>
    %c0_6 = arith.constant 0 : index
    %c0_7 = arith.constant 0 : index
    %19 = vector.load %arg2[%c0_6, %c0_7] : memref<64x32xbf16, #tpu.memory_space<vmem>>, vector<64x32xbf16>
    %cst_8 = arith.constant dense<0.000000e+00> : vector<64x128xf32>
    %20 = tpu.matmul %19, %18, %cst_8 {dimension_numbers = #tpu.dot_dimension_numbers<[1], [0], [0], [1], [0, 0, 1, 1], [], []>} : vector<64x32xbf16>, vector<32x128xbf16>, vector<64x128xf32> -> vector<64x128xf32>
    %c0_9 = arith.constant 0 : index
    %c0_10 = arith.constant 0 : index
    %21 = vector.load %arg3[%c0_9, %c0_10] : memref<64x1xf32, #tpu.memory_space<vmem>>, vector<64x1xf32>
    %22 = vector.broadcast %21 : vector<64x1xf32> to vector<64x128xf32>
    %23 = arith.addf %20, %22 : vector<64x128xf32>
    %24 = vector.extract_strided_slice %23 {offsets = [0, 0], sizes = [16, 128], strides = [1, 1]} : vector<64x128xf32> to vector<16x128xf32>
    %25 = vector.extract_strided_slice %23 {offsets = [16, 0], sizes = [16, 128], strides = [1, 1]} : vector<64x128xf32> to vector<16x128xf32>
    %26 = vector.extract_strided_slice %23 {offsets = [32, 0], sizes = [32, 128], strides = [1, 1]} : vector<64x128xf32> to vector<32x128xf32>
    %c0_11 = arith.constant 0 : index
    %c0_12 = arith.constant 0 : index
    %27 = vector.load %arg4[%c0_11, %c0_12] : memref<16x128xbf16, #tpu.memory_space<vmem>>, vector<16x128xbf16>
    %c0_13 = arith.constant 0 : index
    %c0_14 = arith.constant 0 : index
    %28 = vector.load %arg5[%c0_13, %c0_14] : memref<16x128xbf16, #tpu.memory_space<vmem>>, vector<16x128xbf16>
    %c0_15 = arith.constant 0 : index
    %c0_16 = arith.constant 0 : index
    %29 = vector.load %arg6[%c0_15, %c0_16] : memref<32x128xbf16, #tpu.memory_space<vmem>>, vector<32x128xbf16>
    %30 = vector.extract_strided_slice %24 {offsets = [0, 0], sizes = [8, 128], strides = [1, 1]} : vector<16x128xf32> to vector<8x128xf32>
    %31 = vector.extract_strided_slice %25 {offsets = [0, 0], sizes = [8, 128], strides = [1, 1]} : vector<16x128xf32> to vector<8x128xf32>
    %32 = vector.extract_strided_slice %27 {offsets = [0, 0], sizes = [1, 128], strides = [1, 1]} : vector<16x128xbf16> to vector<1x128xbf16>
    %33 = vector.shape_cast %32 : vector<1x128xbf16> to vector<128xbf16>
    %34 = arith.extf %33 : vector<128xbf16> to vector<128xf32>
    %35 = vector.shape_cast %34 : vector<128xf32> to vector<1x128xf32>
    %36 = vector.broadcast %35 : vector<1x128xf32> to vector<8x128xf32>
    %37 = arith.addf %31, %36 : vector<8x128xf32>
    %38 = arith.mulf %30, %37 : vector<8x128xf32>
    %39 = vector.extract_strided_slice %28 {offsets = [0, 0], sizes = [1, 128], strides = [1, 1]} : vector<16x128xbf16> to vector<1x128xbf16>
    %40 = vector.shape_cast %39 : vector<1x128xbf16> to vector<128xbf16>
    %41 = arith.extf %40 : vector<128xbf16> to vector<128xf32>
    %42 = vector.shape_cast %41 : vector<128xf32> to vector<1x128xf32>
    %43 = vector.broadcast %42 : vector<1x128xf32> to vector<8x128xf32>
    %44 = arith.mulf %31, %43 : vector<8x128xf32>
    %45 = arith.addf %38, %44 : vector<8x128xf32>
    %46 = vector.extract_strided_slice %24 {offsets = [8, 0], sizes = [8, 128], strides = [1, 1]} : vector<16x128xf32> to vector<8x128xf32>
    %47 = vector.extract_strided_slice %25 {offsets = [8, 0], sizes = [8, 128], strides = [1, 1]} : vector<16x128xf32> to vector<8x128xf32>
    %48 = vector.extract_strided_slice %27 {offsets = [1, 0], sizes = [1, 128], strides = [1, 1]} : vector<16x128xbf16> to vector<1x128xbf16>
    %49 = vector.shape_cast %48 : vector<1x128xbf16> to vector<128xbf16>
    %50 = arith.extf %49 : vector<128xbf16> to vector<128xf32>
    %51 = vector.shape_cast %50 : vector<128xf32> to vector<1x128xf32>
    %52 = vector.broadcast %51 : vector<1x128xf32> to vector<8x128xf32>
    %53 = arith.addf %47, %52 : vector<8x128xf32>
    %54 = arith.mulf %46, %53 : vector<8x128xf32>
    %55 = vector.extract_strided_slice %28 {offsets = [1, 0], sizes = [1, 128], strides = [1, 1]} : vector<16x128xbf16> to vector<1x128xbf16>
    %56 = vector.shape_cast %55 : vector<1x128xbf16> to vector<128xbf16>
    %57 = arith.extf %56 : vector<128xbf16> to vector<128xf32>
    %58 = vector.shape_cast %57 : vector<128xf32> to vector<1x128xf32>
    %59 = vector.broadcast %58 : vector<1x128xf32> to vector<8x128xf32>
    %60 = arith.mulf %47, %59 : vector<8x128xf32>
    %61 = arith.addf %54, %60 : vector<8x128xf32>
    %62 = arith.addf %45, %61 : vector<8x128xf32>
    %c16_i32 = arith.constant 16 : i32
    %63 = tpu.dynamic_rotate %25 by %c16_i32 dim 1 : vector<16x128xf32>, i32 -> vector<16x128xf32>
    %64 = vector.extract_strided_slice %24 {offsets = [0, 0], sizes = [8, 128], strides = [1, 1]} : vector<16x128xf32> to vector<8x128xf32>
    %65 = vector.extract_strided_slice %63 {offsets = [0, 0], sizes = [8, 128], strides = [1, 1]} : vector<16x128xf32> to vector<8x128xf32>
    %66 = vector.extract_strided_slice %27 {offsets = [2, 0], sizes = [1, 128], strides = [1, 1]} : vector<16x128xbf16> to vector<1x128xbf16>
    %67 = vector.shape_cast %66 : vector<1x128xbf16> to vector<128xbf16>
    %68 = arith.extf %67 : vector<128xbf16> to vector<128xf32>
    %69 = vector.shape_cast %68 : vector<128xf32> to vector<1x128xf32>
    %70 = vector.broadcast %69 : vector<1x128xf32> to vector<8x128xf32>
    %71 = arith.addf %65, %70 : vector<8x128xf32>
    %72 = arith.mulf %64, %71 : vector<8x128xf32>
    %73 = vector.extract_strided_slice %28 {offsets = [2, 0], sizes = [1, 128], strides = [1, 1]} : vector<16x128xbf16> to vector<1x128xbf16>
    %74 = vector.shape_cast %73 : vector<1x128xbf16> to vector<128xbf16>
    %75 = arith.extf %74 : vector<128xbf16> to vector<128xf32>
    %76 = vector.shape_cast %75 : vector<128xf32> to vector<1x128xf32>
    %77 = vector.broadcast %76 : vector<1x128xf32> to vector<8x128xf32>
    %78 = arith.mulf %65, %77 : vector<8x128xf32>
    %79 = arith.addf %72, %78 : vector<8x128xf32>
    %80 = vector.extract_strided_slice %24 {offsets = [8, 0], sizes = [8, 128], strides = [1, 1]} : vector<16x128xf32> to vector<8x128xf32>
    %81 = vector.extract_strided_slice %63 {offsets = [8, 0], sizes = [8, 128], strides = [1, 1]} : vector<16x128xf32> to vector<8x128xf32>
    %82 = vector.extract_strided_slice %27 {offsets = [3, 0], sizes = [1, 128], strides = [1, 1]} : vector<16x128xbf16> to vector<1x128xbf16>
    %83 = vector.shape_cast %82 : vector<1x128xbf16> to vector<128xbf16>
    %84 = arith.extf %83 : vector<128xbf16> to vector<128xf32>
    %85 = vector.shape_cast %84 : vector<128xf32> to vector<1x128xf32>
    %86 = vector.broadcast %85 : vector<1x128xf32> to vector<8x128xf32>
    %87 = arith.addf %81, %86 : vector<8x128xf32>
    %88 = arith.mulf %80, %87 : vector<8x128xf32>
    %89 = vector.extract_strided_slice %28 {offsets = [3, 0], sizes = [1, 128], strides = [1, 1]} : vector<16x128xbf16> to vector<1x128xbf16>
    %90 = vector.shape_cast %89 : vector<1x128xbf16> to vector<128xbf16>
    %91 = arith.extf %90 : vector<128xbf16> to vector<128xf32>
    %92 = vector.shape_cast %91 : vector<128xf32> to vector<1x128xf32>
    %93 = vector.broadcast %92 : vector<1x128xf32> to vector<8x128xf32>
    %94 = arith.mulf %81, %93 : vector<8x128xf32>
    %95 = arith.addf %88, %94 : vector<8x128xf32>
    %96 = arith.addf %79, %95 : vector<8x128xf32>
    %c32_i32 = arith.constant 32 : i32
    %97 = tpu.dynamic_rotate %25 by %c32_i32 dim 1 : vector<16x128xf32>, i32 -> vector<16x128xf32>
    %98 = vector.extract_strided_slice %24 {offsets = [0, 0], sizes = [8, 128], strides = [1, 1]} : vector<16x128xf32> to vector<8x128xf32>
    %99 = vector.extract_strided_slice %97 {offsets = [0, 0], sizes = [8, 128], strides = [1, 1]} : vector<16x128xf32> to vector<8x128xf32>
    %100 = vector.extract_strided_slice %27 {offsets = [4, 0], sizes = [1, 128], strides = [1, 1]} : vector<16x128xbf16> to vector<1x128xbf16>
    %101 = vector.shape_cast %100 : vector<1x128xbf16> to vector<128xbf16>
    %102 = arith.extf %101 : vector<128xbf16> to vector<128xf32>
    %103 = vector.shape_cast %102 : vector<128xf32> to vector<1x128xf32>
    %104 = vector.broadcast %103 : vector<1x128xf32> to vector<8x128xf32>
    %105 = arith.addf %99, %104 : vector<8x128xf32>
    %106 = arith.mulf %98, %105 : vector<8x128xf32>
    %107 = vector.extract_strided_slice %28 {offsets = [4, 0], sizes = [1, 128], strides = [1, 1]} : vector<16x128xbf16> to vector<1x128xbf16>
    %108 = vector.shape_cast %107 : vector<1x128xbf16> to vector<128xbf16>
    %109 = arith.extf %108 : vector<128xbf16> to vector<128xf32>
    %110 = vector.shape_cast %109 : vector<128xf32> to vector<1x128xf32>
    %111 = vector.broadcast %110 : vector<1x128xf32> to vector<8x128xf32>
    %112 = arith.mulf %99, %111 : vector<8x128xf32>
    %113 = arith.addf %106, %112 : vector<8x128xf32>
    %114 = vector.extract_strided_slice %24 {offsets = [8, 0], sizes = [8, 128], strides = [1, 1]} : vector<16x128xf32> to vector<8x128xf32>
    %115 = vector.extract_strided_slice %97 {offsets = [8, 0], sizes = [8, 128], strides = [1, 1]} : vector<16x128xf32> to vector<8x128xf32>
    %116 = vector.extract_strided_slice %27 {offsets = [5, 0], sizes = [1, 128], strides = [1, 1]} : vector<16x128xbf16> to vector<1x128xbf16>
    %117 = vector.shape_cast %116 : vector<1x128xbf16> to vector<128xbf16>
    %118 = arith.extf %117 : vector<128xbf16> to vector<128xf32>
    %119 = vector.shape_cast %118 : vector<128xf32> to vector<1x128xf32>
    %120 = vector.broadcast %119 : vector<1x128xf32> to vector<8x128xf32>
    %121 = arith.addf %115, %120 : vector<8x128xf32>
    %122 = arith.mulf %114, %121 : vector<8x128xf32>
    %123 = vector.extract_strided_slice %28 {offsets = [5, 0], sizes = [1, 128], strides = [1, 1]} : vector<16x128xbf16> to vector<1x128xbf16>
    %124 = vector.shape_cast %123 : vector<1x128xbf16> to vector<128xbf16>
    %125 = arith.extf %124 : vector<128xbf16> to vector<128xf32>
    %126 = vector.shape_cast %125 : vector<128xf32> to vector<1x128xf32>
    %127 = vector.broadcast %126 : vector<1x128xf32> to vector<8x128xf32>
    %128 = arith.mulf %115, %127 : vector<8x128xf32>
    %129 = arith.addf %122, %128 : vector<8x128xf32>
    %130 = arith.addf %113, %129 : vector<8x128xf32>
    %c48_i32 = arith.constant 48 : i32
    %131 = tpu.dynamic_rotate %25 by %c48_i32 dim 1 : vector<16x128xf32>, i32 -> vector<16x128xf32>
    %132 = vector.extract_strided_slice %24 {offsets = [0, 0], sizes = [8, 128], strides = [1, 1]} : vector<16x128xf32> to vector<8x128xf32>
    %133 = vector.extract_strided_slice %131 {offsets = [0, 0], sizes = [8, 128], strides = [1, 1]} : vector<16x128xf32> to vector<8x128xf32>
    %134 = vector.extract_strided_slice %27 {offsets = [6, 0], sizes = [1, 128], strides = [1, 1]} : vector<16x128xbf16> to vector<1x128xbf16>
    %135 = vector.shape_cast %134 : vector<1x128xbf16> to vector<128xbf16>
    %136 = arith.extf %135 : vector<128xbf16> to vector<128xf32>
    %137 = vector.shape_cast %136 : vector<128xf32> to vector<1x128xf32>
    %138 = vector.broadcast %137 : vector<1x128xf32> to vector<8x128xf32>
    %139 = arith.addf %133, %138 : vector<8x128xf32>
    %140 = arith.mulf %132, %139 : vector<8x128xf32>
    %141 = vector.extract_strided_slice %28 {offsets = [6, 0], sizes = [1, 128], strides = [1, 1]} : vector<16x128xbf16> to vector<1x128xbf16>
    %142 = vector.shape_cast %141 : vector<1x128xbf16> to vector<128xbf16>
    %143 = arith.extf %142 : vector<128xbf16> to vector<128xf32>
    %144 = vector.shape_cast %143 : vector<128xf32> to vector<1x128xf32>
    %145 = vector.broadcast %144 : vector<1x128xf32> to vector<8x128xf32>
    %146 = arith.mulf %133, %145 : vector<8x128xf32>
    %147 = arith.addf %140, %146 : vector<8x128xf32>
    %148 = vector.extract_strided_slice %24 {offsets = [8, 0], sizes = [8, 128], strides = [1, 1]} : vector<16x128xf32> to vector<8x128xf32>
    %149 = vector.extract_strided_slice %131 {offsets = [8, 0], sizes = [8, 128], strides = [1, 1]} : vector<16x128xf32> to vector<8x128xf32>
    %150 = vector.extract_strided_slice %27 {offsets = [7, 0], sizes = [1, 128], strides = [1, 1]} : vector<16x128xbf16> to vector<1x128xbf16>
    %151 = vector.shape_cast %150 : vector<1x128xbf16> to vector<128xbf16>
    %152 = arith.extf %151 : vector<128xbf16> to vector<128xf32>
    %153 = vector.shape_cast %152 : vector<128xf32> to vector<1x128xf32>
    %154 = vector.broadcast %153 : vector<1x128xf32> to vector<8x128xf32>
    %155 = arith.addf %149, %154 : vector<8x128xf32>
    %156 = arith.mulf %148, %155 : vector<8x128xf32>
    %157 = vector.extract_strided_slice %28 {offsets = [7, 0], sizes = [1, 128], strides = [1, 1]} : vector<16x128xbf16> to vector<1x128xbf16>
    %158 = vector.shape_cast %157 : vector<1x128xbf16> to vector<128xbf16>
    %159 = arith.extf %158 : vector<128xbf16> to vector<128xf32>
    %160 = vector.shape_cast %159 : vector<128xf32> to vector<1x128xf32>
    %161 = vector.broadcast %160 : vector<1x128xf32> to vector<8x128xf32>
    %162 = arith.mulf %149, %161 : vector<8x128xf32>
    %163 = arith.addf %156, %162 : vector<8x128xf32>
    %164 = arith.addf %147, %163 : vector<8x128xf32>
    %c64_i32 = arith.constant 64 : i32
    %165 = tpu.dynamic_rotate %25 by %c64_i32 dim 1 : vector<16x128xf32>, i32 -> vector<16x128xf32>
    %166 = vector.extract_strided_slice %24 {offsets = [0, 0], sizes = [8, 128], strides = [1, 1]} : vector<16x128xf32> to vector<8x128xf32>
    %167 = vector.extract_strided_slice %165 {offsets = [0, 0], sizes = [8, 128], strides = [1, 1]} : vector<16x128xf32> to vector<8x128xf32>
    %168 = vector.extract_strided_slice %27 {offsets = [8, 0], sizes = [1, 128], strides = [1, 1]} : vector<16x128xbf16> to vector<1x128xbf16>
    %169 = vector.shape_cast %168 : vector<1x128xbf16> to vector<128xbf16>
    %170 = arith.extf %169 : vector<128xbf16> to vector<128xf32>
    %171 = vector.shape_cast %170 : vector<128xf32> to vector<1x128xf32>
    %172 = vector.broadcast %171 : vector<1x128xf32> to vector<8x128xf32>
    %173 = arith.addf %167, %172 : vector<8x128xf32>
    %174 = arith.mulf %166, %173 : vector<8x128xf32>
    %175 = vector.extract_strided_slice %28 {offsets = [8, 0], sizes = [1, 128], strides = [1, 1]} : vector<16x128xbf16> to vector<1x128xbf16>
    %176 = vector.shape_cast %175 : vector<1x128xbf16> to vector<128xbf16>
    %177 = arith.extf %176 : vector<128xbf16> to vector<128xf32>
    %178 = vector.shape_cast %177 : vector<128xf32> to vector<1x128xf32>
    %179 = vector.broadcast %178 : vector<1x128xf32> to vector<8x128xf32>
    %180 = arith.mulf %167, %179 : vector<8x128xf32>
    %181 = arith.addf %174, %180 : vector<8x128xf32>
    %182 = vector.extract_strided_slice %24 {offsets = [8, 0], sizes = [8, 128], strides = [1, 1]} : vector<16x128xf32> to vector<8x128xf32>
    %183 = vector.extract_strided_slice %165 {offsets = [8, 0], sizes = [8, 128], strides = [1, 1]} : vector<16x128xf32> to vector<8x128xf32>
    %184 = vector.extract_strided_slice %27 {offsets = [9, 0], sizes = [1, 128], strides = [1, 1]} : vector<16x128xbf16> to vector<1x128xbf16>
    %185 = vector.shape_cast %184 : vector<1x128xbf16> to vector<128xbf16>
    %186 = arith.extf %185 : vector<128xbf16> to vector<128xf32>
    %187 = vector.shape_cast %186 : vector<128xf32> to vector<1x128xf32>
    %188 = vector.broadcast %187 : vector<1x128xf32> to vector<8x128xf32>
    %189 = arith.addf %183, %188 : vector<8x128xf32>
    %190 = arith.mulf %182, %189 : vector<8x128xf32>
    %191 = vector.extract_strided_slice %28 {offsets = [9, 0], sizes = [1, 128], strides = [1, 1]} : vector<16x128xbf16> to vector<1x128xbf16>
    %192 = vector.shape_cast %191 : vector<1x128xbf16> to vector<128xbf16>
    %193 = arith.extf %192 : vector<128xbf16> to vector<128xf32>
    %194 = vector.shape_cast %193 : vector<128xf32> to vector<1x128xf32>
    %195 = vector.broadcast %194 : vector<1x128xf32> to vector<8x128xf32>
    %196 = arith.mulf %183, %195 : vector<8x128xf32>
    %197 = arith.addf %190, %196 : vector<8x128xf32>
    %198 = arith.addf %181, %197 : vector<8x128xf32>
    %c80_i32 = arith.constant 80 : i32
    %199 = tpu.dynamic_rotate %25 by %c80_i32 dim 1 : vector<16x128xf32>, i32 -> vector<16x128xf32>
    %200 = vector.extract_strided_slice %24 {offsets = [0, 0], sizes = [8, 128], strides = [1, 1]} : vector<16x128xf32> to vector<8x128xf32>
    %201 = vector.extract_strided_slice %199 {offsets = [0, 0], sizes = [8, 128], strides = [1, 1]} : vector<16x128xf32> to vector<8x128xf32>
    %202 = vector.extract_strided_slice %27 {offsets = [10, 0], sizes = [1, 128], strides = [1, 1]} : vector<16x128xbf16> to vector<1x128xbf16>
    %203 = vector.shape_cast %202 : vector<1x128xbf16> to vector<128xbf16>
    %204 = arith.extf %203 : vector<128xbf16> to vector<128xf32>
    %205 = vector.shape_cast %204 : vector<128xf32> to vector<1x128xf32>
    %206 = vector.broadcast %205 : vector<1x128xf32> to vector<8x128xf32>
    %207 = arith.addf %201, %206 : vector<8x128xf32>
    %208 = arith.mulf %200, %207 : vector<8x128xf32>
    %209 = vector.extract_strided_slice %28 {offsets = [10, 0], sizes = [1, 128], strides = [1, 1]} : vector<16x128xbf16> to vector<1x128xbf16>
    %210 = vector.shape_cast %209 : vector<1x128xbf16> to vector<128xbf16>
    %211 = arith.extf %210 : vector<128xbf16> to vector<128xf32>
    %212 = vector.shape_cast %211 : vector<128xf32> to vector<1x128xf32>
    %213 = vector.broadcast %212 : vector<1x128xf32> to vector<8x128xf32>
    %214 = arith.mulf %201, %213 : vector<8x128xf32>
    %215 = arith.addf %208, %214 : vector<8x128xf32>
    %216 = vector.extract_strided_slice %24 {offsets = [8, 0], sizes = [8, 128], strides = [1, 1]} : vector<16x128xf32> to vector<8x128xf32>
    %217 = vector.extract_strided_slice %199 {offsets = [8, 0], sizes = [8, 128], strides = [1, 1]} : vector<16x128xf32> to vector<8x128xf32>
    %218 = vector.extract_strided_slice %27 {offsets = [11, 0], sizes = [1, 128], strides = [1, 1]} : vector<16x128xbf16> to vector<1x128xbf16>
    %219 = vector.shape_cast %218 : vector<1x128xbf16> to vector<128xbf16>
    %220 = arith.extf %219 : vector<128xbf16> to vector<128xf32>
    %221 = vector.shape_cast %220 : vector<128xf32> to vector<1x128xf32>
    %222 = vector.broadcast %221 : vector<1x128xf32> to vector<8x128xf32>
    %223 = arith.addf %217, %222 : vector<8x128xf32>
    %224 = arith.mulf %216, %223 : vector<8x128xf32>
    %225 = vector.extract_strided_slice %28 {offsets = [11, 0], sizes = [1, 128], strides = [1, 1]} : vector<16x128xbf16> to vector<1x128xbf16>
    %226 = vector.shape_cast %225 : vector<1x128xbf16> to vector<128xbf16>
    %227 = arith.extf %226 : vector<128xbf16> to vector<128xf32>
    %228 = vector.shape_cast %227 : vector<128xf32> to vector<1x128xf32>
    %229 = vector.broadcast %228 : vector<1x128xf32> to vector<8x128xf32>
    %230 = arith.mulf %217, %229 : vector<8x128xf32>
    %231 = arith.addf %224, %230 : vector<8x128xf32>
    %232 = arith.addf %215, %231 : vector<8x128xf32>
    %c96_i32 = arith.constant 96 : i32
    %233 = tpu.dynamic_rotate %25 by %c96_i32 dim 1 : vector<16x128xf32>, i32 -> vector<16x128xf32>
    %234 = vector.extract_strided_slice %24 {offsets = [0, 0], sizes = [8, 128], strides = [1, 1]} : vector<16x128xf32> to vector<8x128xf32>
    %235 = vector.extract_strided_slice %233 {offsets = [0, 0], sizes = [8, 128], strides = [1, 1]} : vector<16x128xf32> to vector<8x128xf32>
    %236 = vector.extract_strided_slice %27 {offsets = [12, 0], sizes = [1, 128], strides = [1, 1]} : vector<16x128xbf16> to vector<1x128xbf16>
    %237 = vector.shape_cast %236 : vector<1x128xbf16> to vector<128xbf16>
    %238 = arith.extf %237 : vector<128xbf16> to vector<128xf32>
    %239 = vector.shape_cast %238 : vector<128xf32> to vector<1x128xf32>
    %240 = vector.broadcast %239 : vector<1x128xf32> to vector<8x128xf32>
    %241 = arith.addf %235, %240 : vector<8x128xf32>
    %242 = arith.mulf %234, %241 : vector<8x128xf32>
    %243 = vector.extract_strided_slice %28 {offsets = [12, 0], sizes = [1, 128], strides = [1, 1]} : vector<16x128xbf16> to vector<1x128xbf16>
    %244 = vector.shape_cast %243 : vector<1x128xbf16> to vector<128xbf16>
    %245 = arith.extf %244 : vector<128xbf16> to vector<128xf32>
    %246 = vector.shape_cast %245 : vector<128xf32> to vector<1x128xf32>
    %247 = vector.broadcast %246 : vector<1x128xf32> to vector<8x128xf32>
    %248 = arith.mulf %235, %247 : vector<8x128xf32>
    %249 = arith.addf %242, %248 : vector<8x128xf32>
    %250 = vector.extract_strided_slice %24 {offsets = [8, 0], sizes = [8, 128], strides = [1, 1]} : vector<16x128xf32> to vector<8x128xf32>
    %251 = vector.extract_strided_slice %233 {offsets = [8, 0], sizes = [8, 128], strides = [1, 1]} : vector<16x128xf32> to vector<8x128xf32>
    %252 = vector.extract_strided_slice %27 {offsets = [13, 0], sizes = [1, 128], strides = [1, 1]} : vector<16x128xbf16> to vector<1x128xbf16>
    %253 = vector.shape_cast %252 : vector<1x128xbf16> to vector<128xbf16>
    %254 = arith.extf %253 : vector<128xbf16> to vector<128xf32>
    %255 = vector.shape_cast %254 : vector<128xf32> to vector<1x128xf32>
    %256 = vector.broadcast %255 : vector<1x128xf32> to vector<8x128xf32>
    %257 = arith.addf %251, %256 : vector<8x128xf32>
    %258 = arith.mulf %250, %257 : vector<8x128xf32>
    %259 = vector.extract_strided_slice %28 {offsets = [13, 0], sizes = [1, 128], strides = [1, 1]} : vector<16x128xbf16> to vector<1x128xbf16>
    %260 = vector.shape_cast %259 : vector<1x128xbf16> to vector<128xbf16>
    %261 = arith.extf %260 : vector<128xbf16> to vector<128xf32>
    %262 = vector.shape_cast %261 : vector<128xf32> to vector<1x128xf32>
    %263 = vector.broadcast %262 : vector<1x128xf32> to vector<8x128xf32>
    %264 = arith.mulf %251, %263 : vector<8x128xf32>
    %265 = arith.addf %258, %264 : vector<8x128xf32>
    %266 = arith.addf %249, %265 : vector<8x128xf32>
    %c112_i32 = arith.constant 112 : i32
    %267 = tpu.dynamic_rotate %25 by %c112_i32 dim 1 : vector<16x128xf32>, i32 -> vector<16x128xf32>
    %268 = vector.extract_strided_slice %24 {offsets = [0, 0], sizes = [8, 128], strides = [1, 1]} : vector<16x128xf32> to vector<8x128xf32>
    %269 = vector.extract_strided_slice %267 {offsets = [0, 0], sizes = [8, 128], strides = [1, 1]} : vector<16x128xf32> to vector<8x128xf32>
    %270 = vector.extract_strided_slice %27 {offsets = [14, 0], sizes = [1, 128], strides = [1, 1]} : vector<16x128xbf16> to vector<1x128xbf16>
    %271 = vector.shape_cast %270 : vector<1x128xbf16> to vector<128xbf16>
    %272 = arith.extf %271 : vector<128xbf16> to vector<128xf32>
    %273 = vector.shape_cast %272 : vector<128xf32> to vector<1x128xf32>
    %274 = vector.broadcast %273 : vector<1x128xf32> to vector<8x128xf32>
    %275 = arith.addf %269, %274 : vector<8x128xf32>
    %276 = arith.mulf %268, %275 : vector<8x128xf32>
    %277 = vector.extract_strided_slice %28 {offsets = [14, 0], sizes = [1, 128], strides = [1, 1]} : vector<16x128xbf16> to vector<1x128xbf16>
    %278 = vector.shape_cast %277 : vector<1x128xbf16> to vector<128xbf16>
    %279 = arith.extf %278 : vector<128xbf16> to vector<128xf32>
    %280 = vector.shape_cast %279 : vector<128xf32> to vector<1x128xf32>
    %281 = vector.broadcast %280 : vector<1x128xf32> to vector<8x128xf32>
    %282 = arith.mulf %269, %281 : vector<8x128xf32>
    %283 = arith.addf %276, %282 : vector<8x128xf32>
    %284 = vector.extract_strided_slice %24 {offsets = [8, 0], sizes = [8, 128], strides = [1, 1]} : vector<16x128xf32> to vector<8x128xf32>
    %285 = vector.extract_strided_slice %267 {offsets = [8, 0], sizes = [8, 128], strides = [1, 1]} : vector<16x128xf32> to vector<8x128xf32>
    %286 = vector.extract_strided_slice %27 {offsets = [15, 0], sizes = [1, 128], strides = [1, 1]} : vector<16x128xbf16> to vector<1x128xbf16>
    %287 = vector.shape_cast %286 : vector<1x128xbf16> to vector<128xbf16>
    %288 = arith.extf %287 : vector<128xbf16> to vector<128xf32>
    %289 = vector.shape_cast %288 : vector<128xf32> to vector<1x128xf32>
    %290 = vector.broadcast %289 : vector<1x128xf32> to vector<8x128xf32>
    %291 = arith.addf %285, %290 : vector<8x128xf32>
    %292 = arith.mulf %284, %291 : vector<8x128xf32>
    %293 = vector.extract_strided_slice %28 {offsets = [15, 0], sizes = [1, 128], strides = [1, 1]} : vector<16x128xbf16> to vector<1x128xbf16>
    %294 = vector.shape_cast %293 : vector<1x128xbf16> to vector<128xbf16>
    %295 = arith.extf %294 : vector<128xbf16> to vector<128xf32>
    %296 = vector.shape_cast %295 : vector<128xf32> to vector<1x128xf32>
    %297 = vector.broadcast %296 : vector<1x128xf32> to vector<8x128xf32>
    %298 = arith.mulf %285, %297 : vector<8x128xf32>
    %299 = arith.addf %292, %298 : vector<8x128xf32>
    %300 = arith.addf %283, %299 : vector<8x128xf32>
    %301 = vector.shape_cast %62 : vector<8x128xf32> to vector<1x8x128xf32>
    %302 = vector.shape_cast %96 : vector<8x128xf32> to vector<1x8x128xf32>
    %303 = vector.shape_cast %130 : vector<8x128xf32> to vector<1x8x128xf32>
    %304 = vector.shape_cast %164 : vector<8x128xf32> to vector<1x8x128xf32>
    %305 = vector.shape_cast %198 : vector<8x128xf32> to vector<1x8x128xf32>
    %306 = vector.shape_cast %232 : vector<8x128xf32> to vector<1x8x128xf32>
    %307 = vector.shape_cast %266 : vector<8x128xf32> to vector<1x8x128xf32>
    %308 = vector.shape_cast %300 : vector<8x128xf32> to vector<1x8x128xf32>
    %309 = tpu.concatenate %301, %302, %303, %304, %305, %306, %307, %308 in 0 : vector<1x8x128xf32>, vector<1x8x128xf32>, vector<1x8x128xf32>, vector<1x8x128xf32>, vector<1x8x128xf32>, vector<1x8x128xf32>, vector<1x8x128xf32>, vector<1x8x128xf32> -> vector<8x8x128xf32>
    %cst_17 = arith.constant dense<0xFF800000> : vector<8x128xf32>
    %310 = vector.multi_reduction <maximumf>, %309, %cst_17 [0] : vector<8x8x128xf32> to vector<8x128xf32>
    %311 = vector.shape_cast %310 : vector<8x128xf32> to vector<1x8x128xf32>
    %312 = vector.broadcast %311 : vector<1x8x128xf32> to vector<8x8x128xf32>
    %313 = arith.subf %309, %312 : vector<8x8x128xf32>
    %314 = math.exp %313 : vector<8x8x128xf32>
    %cst_18 = arith.constant dense<0.000000e+00> : vector<8x128xf32>
    %315 = vector.multi_reduction <add>, %314, %cst_18 [0] : vector<8x8x128xf32> to vector<8x128xf32>
    %316 = tpu.reciprocal %315 {approx = true} : vector<8x128xf32> -> vector<8x128xf32>
    %317 = vector.shape_cast %316 : vector<8x128xf32> to vector<1x8x128xf32>
    %318 = vector.broadcast %317 : vector<1x8x128xf32> to vector<8x8x128xf32>
    %319 = arith.mulf %314, %318 : vector<8x8x128xf32>
    %cst_19 = arith.constant 0.000000e+00 : f32
    %320 = vector.broadcast %cst_19 : f32 to vector<8x128xf32>
    %cst_20 = arith.constant 0.000000e+00 : f32
    %321 = vector.broadcast %cst_20 : f32 to vector<8x128xf32>
    %cst_21 = arith.constant 0.000000e+00 : f32
    %322 = vector.broadcast %cst_21 : f32 to vector<8x128xf32>
    %cst_22 = arith.constant 0.000000e+00 : f32
    %323 = vector.broadcast %cst_22 : f32 to vector<8x128xf32>
    %324 = vector.extract_strided_slice %319 {offsets = [0, 0, 0], sizes = [1, 8, 128], strides = [1, 1, 1]} : vector<8x8x128xf32> to vector<1x8x128xf32>
    %325 = vector.shape_cast %324 : vector<1x8x128xf32> to vector<8x128xf32>
    %326 = vector.extract_strided_slice %26 {offsets = [0, 0], sizes = [8, 128], strides = [1, 1]} : vector<32x128xf32> to vector<8x128xf32>
    %327 = arith.mulf %325, %326 : vector<8x128xf32>
    %328 = arith.addf %320, %327 : vector<8x128xf32>
    %329 = vector.extract_strided_slice %26 {offsets = [8, 0], sizes = [8, 128], strides = [1, 1]} : vector<32x128xf32> to vector<8x128xf32>
    %330 = arith.mulf %325, %329 : vector<8x128xf32>
    %331 = arith.addf %321, %330 : vector<8x128xf32>
    %332 = vector.extract_strided_slice %26 {offsets = [16, 0], sizes = [8, 128], strides = [1, 1]} : vector<32x128xf32> to vector<8x128xf32>
    %333 = arith.mulf %325, %332 : vector<8x128xf32>
    %334 = arith.addf %322, %333 : vector<8x128xf32>
    %335 = vector.extract_strided_slice %26 {offsets = [24, 0], sizes = [8, 128], strides = [1, 1]} : vector<32x128xf32> to vector<8x128xf32>
    %336 = arith.mulf %325, %335 : vector<8x128xf32>
    %337 = arith.addf %323, %336 : vector<8x128xf32>
    %c16_i32_23 = arith.constant 16 : i32
    %338 = tpu.dynamic_rotate %26 by %c16_i32_23 dim 1 : vector<32x128xf32>, i32 -> vector<32x128xf32>
    %339 = vector.extract_strided_slice %319 {offsets = [1, 0, 0], sizes = [1, 8, 128], strides = [1, 1, 1]} : vector<8x8x128xf32> to vector<1x8x128xf32>
    %340 = vector.shape_cast %339 : vector<1x8x128xf32> to vector<8x128xf32>
    %341 = vector.extract_strided_slice %338 {offsets = [0, 0], sizes = [8, 128], strides = [1, 1]} : vector<32x128xf32> to vector<8x128xf32>
    %342 = arith.mulf %340, %341 : vector<8x128xf32>
    %343 = arith.addf %328, %342 : vector<8x128xf32>
    %344 = vector.extract_strided_slice %338 {offsets = [8, 0], sizes = [8, 128], strides = [1, 1]} : vector<32x128xf32> to vector<8x128xf32>
    %345 = arith.mulf %340, %344 : vector<8x128xf32>
    %346 = arith.addf %331, %345 : vector<8x128xf32>
    %347 = vector.extract_strided_slice %338 {offsets = [16, 0], sizes = [8, 128], strides = [1, 1]} : vector<32x128xf32> to vector<8x128xf32>
    %348 = arith.mulf %340, %347 : vector<8x128xf32>
    %349 = arith.addf %334, %348 : vector<8x128xf32>
    %350 = vector.extract_strided_slice %338 {offsets = [24, 0], sizes = [8, 128], strides = [1, 1]} : vector<32x128xf32> to vector<8x128xf32>
    %351 = arith.mulf %340, %350 : vector<8x128xf32>
    %352 = arith.addf %337, %351 : vector<8x128xf32>
    %c32_i32_24 = arith.constant 32 : i32
    %353 = tpu.dynamic_rotate %26 by %c32_i32_24 dim 1 : vector<32x128xf32>, i32 -> vector<32x128xf32>
    %354 = vector.extract_strided_slice %319 {offsets = [2, 0, 0], sizes = [1, 8, 128], strides = [1, 1, 1]} : vector<8x8x128xf32> to vector<1x8x128xf32>
    %355 = vector.shape_cast %354 : vector<1x8x128xf32> to vector<8x128xf32>
    %356 = vector.extract_strided_slice %353 {offsets = [0, 0], sizes = [8, 128], strides = [1, 1]} : vector<32x128xf32> to vector<8x128xf32>
    %357 = arith.mulf %355, %356 : vector<8x128xf32>
    %358 = arith.addf %343, %357 : vector<8x128xf32>
    %359 = vector.extract_strided_slice %353 {offsets = [8, 0], sizes = [8, 128], strides = [1, 1]} : vector<32x128xf32> to vector<8x128xf32>
    %360 = arith.mulf %355, %359 : vector<8x128xf32>
    %361 = arith.addf %346, %360 : vector<8x128xf32>
    %362 = vector.extract_strided_slice %353 {offsets = [16, 0], sizes = [8, 128], strides = [1, 1]} : vector<32x128xf32> to vector<8x128xf32>
    %363 = arith.mulf %355, %362 : vector<8x128xf32>
    %364 = arith.addf %349, %363 : vector<8x128xf32>
    %365 = vector.extract_strided_slice %353 {offsets = [24, 0], sizes = [8, 128], strides = [1, 1]} : vector<32x128xf32> to vector<8x128xf32>
    %366 = arith.mulf %355, %365 : vector<8x128xf32>
    %367 = arith.addf %352, %366 : vector<8x128xf32>
    %c48_i32_25 = arith.constant 48 : i32
    %368 = tpu.dynamic_rotate %26 by %c48_i32_25 dim 1 : vector<32x128xf32>, i32 -> vector<32x128xf32>
    %369 = vector.extract_strided_slice %319 {offsets = [3, 0, 0], sizes = [1, 8, 128], strides = [1, 1, 1]} : vector<8x8x128xf32> to vector<1x8x128xf32>
    %370 = vector.shape_cast %369 : vector<1x8x128xf32> to vector<8x128xf32>
    %371 = vector.extract_strided_slice %368 {offsets = [0, 0], sizes = [8, 128], strides = [1, 1]} : vector<32x128xf32> to vector<8x128xf32>
    %372 = arith.mulf %370, %371 : vector<8x128xf32>
    %373 = arith.addf %358, %372 : vector<8x128xf32>
    %374 = vector.extract_strided_slice %368 {offsets = [8, 0], sizes = [8, 128], strides = [1, 1]} : vector<32x128xf32> to vector<8x128xf32>
    %375 = arith.mulf %370, %374 : vector<8x128xf32>
    %376 = arith.addf %361, %375 : vector<8x128xf32>
    %377 = vector.extract_strided_slice %368 {offsets = [16, 0], sizes = [8, 128], strides = [1, 1]} : vector<32x128xf32> to vector<8x128xf32>
    %378 = arith.mulf %370, %377 : vector<8x128xf32>
    %379 = arith.addf %364, %378 : vector<8x128xf32>
    %380 = vector.extract_strided_slice %368 {offsets = [24, 0], sizes = [8, 128], strides = [1, 1]} : vector<32x128xf32> to vector<8x128xf32>
    %381 = arith.mulf %370, %380 : vector<8x128xf32>
    %382 = arith.addf %367, %381 : vector<8x128xf32>
    %c64_i32_26 = arith.constant 64 : i32
    %383 = tpu.dynamic_rotate %26 by %c64_i32_26 dim 1 : vector<32x128xf32>, i32 -> vector<32x128xf32>
    %384 = vector.extract_strided_slice %319 {offsets = [4, 0, 0], sizes = [1, 8, 128], strides = [1, 1, 1]} : vector<8x8x128xf32> to vector<1x8x128xf32>
    %385 = vector.shape_cast %384 : vector<1x8x128xf32> to vector<8x128xf32>
    %386 = vector.extract_strided_slice %383 {offsets = [0, 0], sizes = [8, 128], strides = [1, 1]} : vector<32x128xf32> to vector<8x128xf32>
    %387 = arith.mulf %385, %386 : vector<8x128xf32>
    %388 = arith.addf %373, %387 : vector<8x128xf32>
    %389 = vector.extract_strided_slice %383 {offsets = [8, 0], sizes = [8, 128], strides = [1, 1]} : vector<32x128xf32> to vector<8x128xf32>
    %390 = arith.mulf %385, %389 : vector<8x128xf32>
    %391 = arith.addf %376, %390 : vector<8x128xf32>
    %392 = vector.extract_strided_slice %383 {offsets = [16, 0], sizes = [8, 128], strides = [1, 1]} : vector<32x128xf32> to vector<8x128xf32>
    %393 = arith.mulf %385, %392 : vector<8x128xf32>
    %394 = arith.addf %379, %393 : vector<8x128xf32>
    %395 = vector.extract_strided_slice %383 {offsets = [24, 0], sizes = [8, 128], strides = [1, 1]} : vector<32x128xf32> to vector<8x128xf32>
    %396 = arith.mulf %385, %395 : vector<8x128xf32>
    %397 = arith.addf %382, %396 : vector<8x128xf32>
    %c80_i32_27 = arith.constant 80 : i32
    %398 = tpu.dynamic_rotate %26 by %c80_i32_27 dim 1 : vector<32x128xf32>, i32 -> vector<32x128xf32>
    %399 = vector.extract_strided_slice %319 {offsets = [5, 0, 0], sizes = [1, 8, 128], strides = [1, 1, 1]} : vector<8x8x128xf32> to vector<1x8x128xf32>
    %400 = vector.shape_cast %399 : vector<1x8x128xf32> to vector<8x128xf32>
    %401 = vector.extract_strided_slice %398 {offsets = [0, 0], sizes = [8, 128], strides = [1, 1]} : vector<32x128xf32> to vector<8x128xf32>
    %402 = arith.mulf %400, %401 : vector<8x128xf32>
    %403 = arith.addf %388, %402 : vector<8x128xf32>
    %404 = vector.extract_strided_slice %398 {offsets = [8, 0], sizes = [8, 128], strides = [1, 1]} : vector<32x128xf32> to vector<8x128xf32>
    %405 = arith.mulf %400, %404 : vector<8x128xf32>
    %406 = arith.addf %391, %405 : vector<8x128xf32>
    %407 = vector.extract_strided_slice %398 {offsets = [16, 0], sizes = [8, 128], strides = [1, 1]} : vector<32x128xf32> to vector<8x128xf32>
    %408 = arith.mulf %400, %407 : vector<8x128xf32>
    %409 = arith.addf %394, %408 : vector<8x128xf32>
    %410 = vector.extract_strided_slice %398 {offsets = [24, 0], sizes = [8, 128], strides = [1, 1]} : vector<32x128xf32> to vector<8x128xf32>
    %411 = arith.mulf %400, %410 : vector<8x128xf32>
    %412 = arith.addf %397, %411 : vector<8x128xf32>
    %c96_i32_28 = arith.constant 96 : i32
    %413 = tpu.dynamic_rotate %26 by %c96_i32_28 dim 1 : vector<32x128xf32>, i32 -> vector<32x128xf32>
    %414 = vector.extract_strided_slice %319 {offsets = [6, 0, 0], sizes = [1, 8, 128], strides = [1, 1, 1]} : vector<8x8x128xf32> to vector<1x8x128xf32>
    %415 = vector.shape_cast %414 : vector<1x8x128xf32> to vector<8x128xf32>
    %416 = vector.extract_strided_slice %413 {offsets = [0, 0], sizes = [8, 128], strides = [1, 1]} : vector<32x128xf32> to vector<8x128xf32>
    %417 = arith.mulf %415, %416 : vector<8x128xf32>
    %418 = arith.addf %403, %417 : vector<8x128xf32>
    %419 = vector.extract_strided_slice %413 {offsets = [8, 0], sizes = [8, 128], strides = [1, 1]} : vector<32x128xf32> to vector<8x128xf32>
    %420 = arith.mulf %415, %419 : vector<8x128xf32>
    %421 = arith.addf %406, %420 : vector<8x128xf32>
    %422 = vector.extract_strided_slice %413 {offsets = [16, 0], sizes = [8, 128], strides = [1, 1]} : vector<32x128xf32> to vector<8x128xf32>
    %423 = arith.mulf %415, %422 : vector<8x128xf32>
    %424 = arith.addf %409, %423 : vector<8x128xf32>
    %425 = vector.extract_strided_slice %413 {offsets = [24, 0], sizes = [8, 128], strides = [1, 1]} : vector<32x128xf32> to vector<8x128xf32>
    %426 = arith.mulf %415, %425 : vector<8x128xf32>
    %427 = arith.addf %412, %426 : vector<8x128xf32>
    %c112_i32_29 = arith.constant 112 : i32
    %428 = tpu.dynamic_rotate %26 by %c112_i32_29 dim 1 : vector<32x128xf32>, i32 -> vector<32x128xf32>
    %429 = vector.extract_strided_slice %319 {offsets = [7, 0, 0], sizes = [1, 8, 128], strides = [1, 1, 1]} : vector<8x8x128xf32> to vector<1x8x128xf32>
    %430 = vector.shape_cast %429 : vector<1x8x128xf32> to vector<8x128xf32>
    %431 = vector.extract_strided_slice %428 {offsets = [0, 0], sizes = [8, 128], strides = [1, 1]} : vector<32x128xf32> to vector<8x128xf32>
    %432 = arith.mulf %430, %431 : vector<8x128xf32>
    %433 = arith.addf %418, %432 : vector<8x128xf32>
    %434 = vector.extract_strided_slice %428 {offsets = [8, 0], sizes = [8, 128], strides = [1, 1]} : vector<32x128xf32> to vector<8x128xf32>
    %435 = arith.mulf %430, %434 : vector<8x128xf32>
    %436 = arith.addf %421, %435 : vector<8x128xf32>
    %437 = vector.extract_strided_slice %428 {offsets = [16, 0], sizes = [8, 128], strides = [1, 1]} : vector<32x128xf32> to vector<8x128xf32>
    %438 = arith.mulf %430, %437 : vector<8x128xf32>
    %439 = arith.addf %424, %438 : vector<8x128xf32>
    %440 = vector.extract_strided_slice %428 {offsets = [24, 0], sizes = [8, 128], strides = [1, 1]} : vector<32x128xf32> to vector<8x128xf32>
    %441 = arith.mulf %430, %440 : vector<8x128xf32>
    %442 = arith.addf %427, %441 : vector<8x128xf32>
    %443 = vector.extract_strided_slice %319 {offsets = [0, 0, 0], sizes = [1, 8, 128], strides = [1, 1, 1]} : vector<8x8x128xf32> to vector<1x8x128xf32>
    %444 = vector.shape_cast %443 : vector<1x8x128xf32> to vector<8x128xf32>
    %445 = vector.extract_strided_slice %29 {offsets = [0, 0], sizes = [1, 128], strides = [1, 1]} : vector<32x128xbf16> to vector<1x128xbf16>
    %446 = vector.shape_cast %445 : vector<1x128xbf16> to vector<128xbf16>
    %447 = arith.extf %446 : vector<128xbf16> to vector<128xf32>
    %448 = vector.shape_cast %447 : vector<128xf32> to vector<1x128xf32>
    %449 = vector.broadcast %448 : vector<1x128xf32> to vector<8x128xf32>
    %450 = arith.mulf %444, %449 : vector<8x128xf32>
    %451 = arith.addf %433, %450 : vector<8x128xf32>
    %452 = vector.extract_strided_slice %319 {offsets = [1, 0, 0], sizes = [1, 8, 128], strides = [1, 1, 1]} : vector<8x8x128xf32> to vector<1x8x128xf32>
    %453 = vector.shape_cast %452 : vector<1x8x128xf32> to vector<8x128xf32>
    %454 = vector.extract_strided_slice %29 {offsets = [4, 0], sizes = [1, 128], strides = [1, 1]} : vector<32x128xbf16> to vector<1x128xbf16>
    %455 = vector.shape_cast %454 : vector<1x128xbf16> to vector<128xbf16>
    %456 = arith.extf %455 : vector<128xbf16> to vector<128xf32>
    %457 = vector.shape_cast %456 : vector<128xf32> to vector<1x128xf32>
    %458 = vector.broadcast %457 : vector<1x128xf32> to vector<8x128xf32>
    %459 = arith.mulf %453, %458 : vector<8x128xf32>
    %460 = arith.addf %451, %459 : vector<8x128xf32>
    %461 = vector.extract_strided_slice %319 {offsets = [2, 0, 0], sizes = [1, 8, 128], strides = [1, 1, 1]} : vector<8x8x128xf32> to vector<1x8x128xf32>
    %462 = vector.shape_cast %461 : vector<1x8x128xf32> to vector<8x128xf32>
    %463 = vector.extract_strided_slice %29 {offsets = [8, 0], sizes = [1, 128], strides = [1, 1]} : vector<32x128xbf16> to vector<1x128xbf16>
    %464 = vector.shape_cast %463 : vector<1x128xbf16> to vector<128xbf16>
    %465 = arith.extf %464 : vector<128xbf16> to vector<128xf32>
    %466 = vector.shape_cast %465 : vector<128xf32> to vector<1x128xf32>
    %467 = vector.broadcast %466 : vector<1x128xf32> to vector<8x128xf32>
    %468 = arith.mulf %462, %467 : vector<8x128xf32>
    %469 = arith.addf %460, %468 : vector<8x128xf32>
    %470 = vector.extract_strided_slice %319 {offsets = [3, 0, 0], sizes = [1, 8, 128], strides = [1, 1, 1]} : vector<8x8x128xf32> to vector<1x8x128xf32>
    %471 = vector.shape_cast %470 : vector<1x8x128xf32> to vector<8x128xf32>
    %472 = vector.extract_strided_slice %29 {offsets = [12, 0], sizes = [1, 128], strides = [1, 1]} : vector<32x128xbf16> to vector<1x128xbf16>
    %473 = vector.shape_cast %472 : vector<1x128xbf16> to vector<128xbf16>
    %474 = arith.extf %473 : vector<128xbf16> to vector<128xf32>
    %475 = vector.shape_cast %474 : vector<128xf32> to vector<1x128xf32>
    %476 = vector.broadcast %475 : vector<1x128xf32> to vector<8x128xf32>
    %477 = arith.mulf %471, %476 : vector<8x128xf32>
    %478 = arith.addf %469, %477 : vector<8x128xf32>
    %479 = vector.extract_strided_slice %319 {offsets = [4, 0, 0], sizes = [1, 8, 128], strides = [1, 1, 1]} : vector<8x8x128xf32> to vector<1x8x128xf32>
    %480 = vector.shape_cast %479 : vector<1x8x128xf32> to vector<8x128xf32>
    %481 = vector.extract_strided_slice %29 {offsets = [16, 0], sizes = [1, 128], strides = [1, 1]} : vector<32x128xbf16> to vector<1x128xbf16>
    %482 = vector.shape_cast %481 : vector<1x128xbf16> to vector<128xbf16>
    %483 = arith.extf %482 : vector<128xbf16> to vector<128xf32>
    %484 = vector.shape_cast %483 : vector<128xf32> to vector<1x128xf32>
    %485 = vector.broadcast %484 : vector<1x128xf32> to vector<8x128xf32>
    %486 = arith.mulf %480, %485 : vector<8x128xf32>
    %487 = arith.addf %478, %486 : vector<8x128xf32>
    %488 = vector.extract_strided_slice %319 {offsets = [5, 0, 0], sizes = [1, 8, 128], strides = [1, 1, 1]} : vector<8x8x128xf32> to vector<1x8x128xf32>
    %489 = vector.shape_cast %488 : vector<1x8x128xf32> to vector<8x128xf32>
    %490 = vector.extract_strided_slice %29 {offsets = [20, 0], sizes = [1, 128], strides = [1, 1]} : vector<32x128xbf16> to vector<1x128xbf16>
    %491 = vector.shape_cast %490 : vector<1x128xbf16> to vector<128xbf16>
    %492 = arith.extf %491 : vector<128xbf16> to vector<128xf32>
    %493 = vector.shape_cast %492 : vector<128xf32> to vector<1x128xf32>
    %494 = vector.broadcast %493 : vector<1x128xf32> to vector<8x128xf32>
    %495 = arith.mulf %489, %494 : vector<8x128xf32>
    %496 = arith.addf %487, %495 : vector<8x128xf32>
    %497 = vector.extract_strided_slice %319 {offsets = [6, 0, 0], sizes = [1, 8, 128], strides = [1, 1, 1]} : vector<8x8x128xf32> to vector<1x8x128xf32>
    %498 = vector.shape_cast %497 : vector<1x8x128xf32> to vector<8x128xf32>
    %499 = vector.extract_strided_slice %29 {offsets = [24, 0], sizes = [1, 128], strides = [1, 1]} : vector<32x128xbf16> to vector<1x128xbf16>
    %500 = vector.shape_cast %499 : vector<1x128xbf16> to vector<128xbf16>
    %501 = arith.extf %500 : vector<128xbf16> to vector<128xf32>
    %502 = vector.shape_cast %501 : vector<128xf32> to vector<1x128xf32>
    %503 = vector.broadcast %502 : vector<1x128xf32> to vector<8x128xf32>
    %504 = arith.mulf %498, %503 : vector<8x128xf32>
    %505 = arith.addf %496, %504 : vector<8x128xf32>
    %506 = vector.extract_strided_slice %319 {offsets = [7, 0, 0], sizes = [1, 8, 128], strides = [1, 1, 1]} : vector<8x8x128xf32> to vector<1x8x128xf32>
    %507 = vector.shape_cast %506 : vector<1x8x128xf32> to vector<8x128xf32>
    %508 = vector.extract_strided_slice %29 {offsets = [28, 0], sizes = [1, 128], strides = [1, 1]} : vector<32x128xbf16> to vector<1x128xbf16>
    %509 = vector.shape_cast %508 : vector<1x128xbf16> to vector<128xbf16>
    %510 = arith.extf %509 : vector<128xbf16> to vector<128xf32>
    %511 = vector.shape_cast %510 : vector<128xf32> to vector<1x128xf32>
    %512 = vector.broadcast %511 : vector<1x128xf32> to vector<8x128xf32>
    %513 = arith.mulf %507, %512 : vector<8x128xf32>
    %514 = arith.addf %505, %513 : vector<8x128xf32>
    %515 = vector.extract_strided_slice %319 {offsets = [0, 0, 0], sizes = [1, 8, 128], strides = [1, 1, 1]} : vector<8x8x128xf32> to vector<1x8x128xf32>
    %516 = vector.shape_cast %515 : vector<1x8x128xf32> to vector<8x128xf32>
    %517 = vector.extract_strided_slice %29 {offsets = [1, 0], sizes = [1, 128], strides = [1, 1]} : vector<32x128xbf16> to vector<1x128xbf16>
    %518 = vector.shape_cast %517 : vector<1x128xbf16> to vector<128xbf16>
    %519 = arith.extf %518 : vector<128xbf16> to vector<128xf32>
    %520 = vector.shape_cast %519 : vector<128xf32> to vector<1x128xf32>
    %521 = vector.broadcast %520 : vector<1x128xf32> to vector<8x128xf32>
    %522 = arith.mulf %516, %521 : vector<8x128xf32>
    %523 = arith.addf %436, %522 : vector<8x128xf32>
    %524 = vector.extract_strided_slice %319 {offsets = [1, 0, 0], sizes = [1, 8, 128], strides = [1, 1, 1]} : vector<8x8x128xf32> to vector<1x8x128xf32>
    %525 = vector.shape_cast %524 : vector<1x8x128xf32> to vector<8x128xf32>
    %526 = vector.extract_strided_slice %29 {offsets = [5, 0], sizes = [1, 128], strides = [1, 1]} : vector<32x128xbf16> to vector<1x128xbf16>
    %527 = vector.shape_cast %526 : vector<1x128xbf16> to vector<128xbf16>
    %528 = arith.extf %527 : vector<128xbf16> to vector<128xf32>
    %529 = vector.shape_cast %528 : vector<128xf32> to vector<1x128xf32>
    %530 = vector.broadcast %529 : vector<1x128xf32> to vector<8x128xf32>
    %531 = arith.mulf %525, %530 : vector<8x128xf32>
    %532 = arith.addf %523, %531 : vector<8x128xf32>
    %533 = vector.extract_strided_slice %319 {offsets = [2, 0, 0], sizes = [1, 8, 128], strides = [1, 1, 1]} : vector<8x8x128xf32> to vector<1x8x128xf32>
    %534 = vector.shape_cast %533 : vector<1x8x128xf32> to vector<8x128xf32>
    %535 = vector.extract_strided_slice %29 {offsets = [9, 0], sizes = [1, 128], strides = [1, 1]} : vector<32x128xbf16> to vector<1x128xbf16>
    %536 = vector.shape_cast %535 : vector<1x128xbf16> to vector<128xbf16>
    %537 = arith.extf %536 : vector<128xbf16> to vector<128xf32>
    %538 = vector.shape_cast %537 : vector<128xf32> to vector<1x128xf32>
    %539 = vector.broadcast %538 : vector<1x128xf32> to vector<8x128xf32>
    %540 = arith.mulf %534, %539 : vector<8x128xf32>
    %541 = arith.addf %532, %540 : vector<8x128xf32>
    %542 = vector.extract_strided_slice %319 {offsets = [3, 0, 0], sizes = [1, 8, 128], strides = [1, 1, 1]} : vector<8x8x128xf32> to vector<1x8x128xf32>
    %543 = vector.shape_cast %542 : vector<1x8x128xf32> to vector<8x128xf32>
    %544 = vector.extract_strided_slice %29 {offsets = [13, 0], sizes = [1, 128], strides = [1, 1]} : vector<32x128xbf16> to vector<1x128xbf16>
    %545 = vector.shape_cast %544 : vector<1x128xbf16> to vector<128xbf16>
    %546 = arith.extf %545 : vector<128xbf16> to vector<128xf32>
    %547 = vector.shape_cast %546 : vector<128xf32> to vector<1x128xf32>
    %548 = vector.broadcast %547 : vector<1x128xf32> to vector<8x128xf32>
    %549 = arith.mulf %543, %548 : vector<8x128xf32>
    %550 = arith.addf %541, %549 : vector<8x128xf32>
    %551 = vector.extract_strided_slice %319 {offsets = [4, 0, 0], sizes = [1, 8, 128], strides = [1, 1, 1]} : vector<8x8x128xf32> to vector<1x8x128xf32>
    %552 = vector.shape_cast %551 : vector<1x8x128xf32> to vector<8x128xf32>
    %553 = vector.extract_strided_slice %29 {offsets = [17, 0], sizes = [1, 128], strides = [1, 1]} : vector<32x128xbf16> to vector<1x128xbf16>
    %554 = vector.shape_cast %553 : vector<1x128xbf16> to vector<128xbf16>
    %555 = arith.extf %554 : vector<128xbf16> to vector<128xf32>
    %556 = vector.shape_cast %555 : vector<128xf32> to vector<1x128xf32>
    %557 = vector.broadcast %556 : vector<1x128xf32> to vector<8x128xf32>
    %558 = arith.mulf %552, %557 : vector<8x128xf32>
    %559 = arith.addf %550, %558 : vector<8x128xf32>
    %560 = vector.extract_strided_slice %319 {offsets = [5, 0, 0], sizes = [1, 8, 128], strides = [1, 1, 1]} : vector<8x8x128xf32> to vector<1x8x128xf32>
    %561 = vector.shape_cast %560 : vector<1x8x128xf32> to vector<8x128xf32>
    %562 = vector.extract_strided_slice %29 {offsets = [21, 0], sizes = [1, 128], strides = [1, 1]} : vector<32x128xbf16> to vector<1x128xbf16>
    %563 = vector.shape_cast %562 : vector<1x128xbf16> to vector<128xbf16>
    %564 = arith.extf %563 : vector<128xbf16> to vector<128xf32>
    %565 = vector.shape_cast %564 : vector<128xf32> to vector<1x128xf32>
    %566 = vector.broadcast %565 : vector<1x128xf32> to vector<8x128xf32>
    %567 = arith.mulf %561, %566 : vector<8x128xf32>
    %568 = arith.addf %559, %567 : vector<8x128xf32>
    %569 = vector.extract_strided_slice %319 {offsets = [6, 0, 0], sizes = [1, 8, 128], strides = [1, 1, 1]} : vector<8x8x128xf32> to vector<1x8x128xf32>
    %570 = vector.shape_cast %569 : vector<1x8x128xf32> to vector<8x128xf32>
    %571 = vector.extract_strided_slice %29 {offsets = [25, 0], sizes = [1, 128], strides = [1, 1]} : vector<32x128xbf16> to vector<1x128xbf16>
    %572 = vector.shape_cast %571 : vector<1x128xbf16> to vector<128xbf16>
    %573 = arith.extf %572 : vector<128xbf16> to vector<128xf32>
    %574 = vector.shape_cast %573 : vector<128xf32> to vector<1x128xf32>
    %575 = vector.broadcast %574 : vector<1x128xf32> to vector<8x128xf32>
    %576 = arith.mulf %570, %575 : vector<8x128xf32>
    %577 = arith.addf %568, %576 : vector<8x128xf32>
    %578 = vector.extract_strided_slice %319 {offsets = [7, 0, 0], sizes = [1, 8, 128], strides = [1, 1, 1]} : vector<8x8x128xf32> to vector<1x8x128xf32>
    %579 = vector.shape_cast %578 : vector<1x8x128xf32> to vector<8x128xf32>
    %580 = vector.extract_strided_slice %29 {offsets = [29, 0], sizes = [1, 128], strides = [1, 1]} : vector<32x128xbf16> to vector<1x128xbf16>
    %581 = vector.shape_cast %580 : vector<1x128xbf16> to vector<128xbf16>
    %582 = arith.extf %581 : vector<128xbf16> to vector<128xf32>
    %583 = vector.shape_cast %582 : vector<128xf32> to vector<1x128xf32>
    %584 = vector.broadcast %583 : vector<1x128xf32> to vector<8x128xf32>
    %585 = arith.mulf %579, %584 : vector<8x128xf32>
    %586 = arith.addf %577, %585 : vector<8x128xf32>
    %587 = vector.extract_strided_slice %319 {offsets = [0, 0, 0], sizes = [1, 8, 128], strides = [1, 1, 1]} : vector<8x8x128xf32> to vector<1x8x128xf32>
    %588 = vector.shape_cast %587 : vector<1x8x128xf32> to vector<8x128xf32>
    %589 = vector.extract_strided_slice %29 {offsets = [2, 0], sizes = [1, 128], strides = [1, 1]} : vector<32x128xbf16> to vector<1x128xbf16>
    %590 = vector.shape_cast %589 : vector<1x128xbf16> to vector<128xbf16>
    %591 = arith.extf %590 : vector<128xbf16> to vector<128xf32>
    %592 = vector.shape_cast %591 : vector<128xf32> to vector<1x128xf32>
    %593 = vector.broadcast %592 : vector<1x128xf32> to vector<8x128xf32>
    %594 = arith.mulf %588, %593 : vector<8x128xf32>
    %595 = arith.addf %439, %594 : vector<8x128xf32>
    %596 = vector.extract_strided_slice %319 {offsets = [1, 0, 0], sizes = [1, 8, 128], strides = [1, 1, 1]} : vector<8x8x128xf32> to vector<1x8x128xf32>
    %597 = vector.shape_cast %596 : vector<1x8x128xf32> to vector<8x128xf32>
    %598 = vector.extract_strided_slice %29 {offsets = [6, 0], sizes = [1, 128], strides = [1, 1]} : vector<32x128xbf16> to vector<1x128xbf16>
    %599 = vector.shape_cast %598 : vector<1x128xbf16> to vector<128xbf16>
    %600 = arith.extf %599 : vector<128xbf16> to vector<128xf32>
    %601 = vector.shape_cast %600 : vector<128xf32> to vector<1x128xf32>
    %602 = vector.broadcast %601 : vector<1x128xf32> to vector<8x128xf32>
    %603 = arith.mulf %597, %602 : vector<8x128xf32>
    %604 = arith.addf %595, %603 : vector<8x128xf32>
    %605 = vector.extract_strided_slice %319 {offsets = [2, 0, 0], sizes = [1, 8, 128], strides = [1, 1, 1]} : vector<8x8x128xf32> to vector<1x8x128xf32>
    %606 = vector.shape_cast %605 : vector<1x8x128xf32> to vector<8x128xf32>
    %607 = vector.extract_strided_slice %29 {offsets = [10, 0], sizes = [1, 128], strides = [1, 1]} : vector<32x128xbf16> to vector<1x128xbf16>
    %608 = vector.shape_cast %607 : vector<1x128xbf16> to vector<128xbf16>
    %609 = arith.extf %608 : vector<128xbf16> to vector<128xf32>
    %610 = vector.shape_cast %609 : vector<128xf32> to vector<1x128xf32>
    %611 = vector.broadcast %610 : vector<1x128xf32> to vector<8x128xf32>
    %612 = arith.mulf %606, %611 : vector<8x128xf32>
    %613 = arith.addf %604, %612 : vector<8x128xf32>
    %614 = vector.extract_strided_slice %319 {offsets = [3, 0, 0], sizes = [1, 8, 128], strides = [1, 1, 1]} : vector<8x8x128xf32> to vector<1x8x128xf32>
    %615 = vector.shape_cast %614 : vector<1x8x128xf32> to vector<8x128xf32>
    %616 = vector.extract_strided_slice %29 {offsets = [14, 0], sizes = [1, 128], strides = [1, 1]} : vector<32x128xbf16> to vector<1x128xbf16>
    %617 = vector.shape_cast %616 : vector<1x128xbf16> to vector<128xbf16>
    %618 = arith.extf %617 : vector<128xbf16> to vector<128xf32>
    %619 = vector.shape_cast %618 : vector<128xf32> to vector<1x128xf32>
    %620 = vector.broadcast %619 : vector<1x128xf32> to vector<8x128xf32>
    %621 = arith.mulf %615, %620 : vector<8x128xf32>
    %622 = arith.addf %613, %621 : vector<8x128xf32>
    %623 = vector.extract_strided_slice %319 {offsets = [4, 0, 0], sizes = [1, 8, 128], strides = [1, 1, 1]} : vector<8x8x128xf32> to vector<1x8x128xf32>
    %624 = vector.shape_cast %623 : vector<1x8x128xf32> to vector<8x128xf32>
    %625 = vector.extract_strided_slice %29 {offsets = [18, 0], sizes = [1, 128], strides = [1, 1]} : vector<32x128xbf16> to vector<1x128xbf16>
    %626 = vector.shape_cast %625 : vector<1x128xbf16> to vector<128xbf16>
    %627 = arith.extf %626 : vector<128xbf16> to vector<128xf32>
    %628 = vector.shape_cast %627 : vector<128xf32> to vector<1x128xf32>
    %629 = vector.broadcast %628 : vector<1x128xf32> to vector<8x128xf32>
    %630 = arith.mulf %624, %629 : vector<8x128xf32>
    %631 = arith.addf %622, %630 : vector<8x128xf32>
    %632 = vector.extract_strided_slice %319 {offsets = [5, 0, 0], sizes = [1, 8, 128], strides = [1, 1, 1]} : vector<8x8x128xf32> to vector<1x8x128xf32>
    %633 = vector.shape_cast %632 : vector<1x8x128xf32> to vector<8x128xf32>
    %634 = vector.extract_strided_slice %29 {offsets = [22, 0], sizes = [1, 128], strides = [1, 1]} : vector<32x128xbf16> to vector<1x128xbf16>
    %635 = vector.shape_cast %634 : vector<1x128xbf16> to vector<128xbf16>
    %636 = arith.extf %635 : vector<128xbf16> to vector<128xf32>
    %637 = vector.shape_cast %636 : vector<128xf32> to vector<1x128xf32>
    %638 = vector.broadcast %637 : vector<1x128xf32> to vector<8x128xf32>
    %639 = arith.mulf %633, %638 : vector<8x128xf32>
    %640 = arith.addf %631, %639 : vector<8x128xf32>
    %641 = vector.extract_strided_slice %319 {offsets = [6, 0, 0], sizes = [1, 8, 128], strides = [1, 1, 1]} : vector<8x8x128xf32> to vector<1x8x128xf32>
    %642 = vector.shape_cast %641 : vector<1x8x128xf32> to vector<8x128xf32>
    %643 = vector.extract_strided_slice %29 {offsets = [26, 0], sizes = [1, 128], strides = [1, 1]} : vector<32x128xbf16> to vector<1x128xbf16>
    %644 = vector.shape_cast %643 : vector<1x128xbf16> to vector<128xbf16>
    %645 = arith.extf %644 : vector<128xbf16> to vector<128xf32>
    %646 = vector.shape_cast %645 : vector<128xf32> to vector<1x128xf32>
    %647 = vector.broadcast %646 : vector<1x128xf32> to vector<8x128xf32>
    %648 = arith.mulf %642, %647 : vector<8x128xf32>
    %649 = arith.addf %640, %648 : vector<8x128xf32>
    %650 = vector.extract_strided_slice %319 {offsets = [7, 0, 0], sizes = [1, 8, 128], strides = [1, 1, 1]} : vector<8x8x128xf32> to vector<1x8x128xf32>
    %651 = vector.shape_cast %650 : vector<1x8x128xf32> to vector<8x128xf32>
    %652 = vector.extract_strided_slice %29 {offsets = [30, 0], sizes = [1, 128], strides = [1, 1]} : vector<32x128xbf16> to vector<1x128xbf16>
    %653 = vector.shape_cast %652 : vector<1x128xbf16> to vector<128xbf16>
    %654 = arith.extf %653 : vector<128xbf16> to vector<128xf32>
    %655 = vector.shape_cast %654 : vector<128xf32> to vector<1x128xf32>
    %656 = vector.broadcast %655 : vector<1x128xf32> to vector<8x128xf32>
    %657 = arith.mulf %651, %656 : vector<8x128xf32>
    %658 = arith.addf %649, %657 : vector<8x128xf32>
    %659 = vector.extract_strided_slice %319 {offsets = [0, 0, 0], sizes = [1, 8, 128], strides = [1, 1, 1]} : vector<8x8x128xf32> to vector<1x8x128xf32>
    %660 = vector.shape_cast %659 : vector<1x8x128xf32> to vector<8x128xf32>
    %661 = vector.extract_strided_slice %29 {offsets = [3, 0], sizes = [1, 128], strides = [1, 1]} : vector<32x128xbf16> to vector<1x128xbf16>
    %662 = vector.shape_cast %661 : vector<1x128xbf16> to vector<128xbf16>
    %663 = arith.extf %662 : vector<128xbf16> to vector<128xf32>
    %664 = vector.shape_cast %663 : vector<128xf32> to vector<1x128xf32>
    %665 = vector.broadcast %664 : vector<1x128xf32> to vector<8x128xf32>
    %666 = arith.mulf %660, %665 : vector<8x128xf32>
    %667 = arith.addf %442, %666 : vector<8x128xf32>
    %668 = vector.extract_strided_slice %319 {offsets = [1, 0, 0], sizes = [1, 8, 128], strides = [1, 1, 1]} : vector<8x8x128xf32> to vector<1x8x128xf32>
    %669 = vector.shape_cast %668 : vector<1x8x128xf32> to vector<8x128xf32>
    %670 = vector.extract_strided_slice %29 {offsets = [7, 0], sizes = [1, 128], strides = [1, 1]} : vector<32x128xbf16> to vector<1x128xbf16>
    %671 = vector.shape_cast %670 : vector<1x128xbf16> to vector<128xbf16>
    %672 = arith.extf %671 : vector<128xbf16> to vector<128xf32>
    %673 = vector.shape_cast %672 : vector<128xf32> to vector<1x128xf32>
    %674 = vector.broadcast %673 : vector<1x128xf32> to vector<8x128xf32>
    %675 = arith.mulf %669, %674 : vector<8x128xf32>
    %676 = arith.addf %667, %675 : vector<8x128xf32>
    %677 = vector.extract_strided_slice %319 {offsets = [2, 0, 0], sizes = [1, 8, 128], strides = [1, 1, 1]} : vector<8x8x128xf32> to vector<1x8x128xf32>
    %678 = vector.shape_cast %677 : vector<1x8x128xf32> to vector<8x128xf32>
    %679 = vector.extract_strided_slice %29 {offsets = [11, 0], sizes = [1, 128], strides = [1, 1]} : vector<32x128xbf16> to vector<1x128xbf16>
    %680 = vector.shape_cast %679 : vector<1x128xbf16> to vector<128xbf16>
    %681 = arith.extf %680 : vector<128xbf16> to vector<128xf32>
    %682 = vector.shape_cast %681 : vector<128xf32> to vector<1x128xf32>
    %683 = vector.broadcast %682 : vector<1x128xf32> to vector<8x128xf32>
    %684 = arith.mulf %678, %683 : vector<8x128xf32>
    %685 = arith.addf %676, %684 : vector<8x128xf32>
    %686 = vector.extract_strided_slice %319 {offsets = [3, 0, 0], sizes = [1, 8, 128], strides = [1, 1, 1]} : vector<8x8x128xf32> to vector<1x8x128xf32>
    %687 = vector.shape_cast %686 : vector<1x8x128xf32> to vector<8x128xf32>
    %688 = vector.extract_strided_slice %29 {offsets = [15, 0], sizes = [1, 128], strides = [1, 1]} : vector<32x128xbf16> to vector<1x128xbf16>
    %689 = vector.shape_cast %688 : vector<1x128xbf16> to vector<128xbf16>
    %690 = arith.extf %689 : vector<128xbf16> to vector<128xf32>
    %691 = vector.shape_cast %690 : vector<128xf32> to vector<1x128xf32>
    %692 = vector.broadcast %691 : vector<1x128xf32> to vector<8x128xf32>
    %693 = arith.mulf %687, %692 : vector<8x128xf32>
    %694 = arith.addf %685, %693 : vector<8x128xf32>
    %695 = vector.extract_strided_slice %319 {offsets = [4, 0, 0], sizes = [1, 8, 128], strides = [1, 1, 1]} : vector<8x8x128xf32> to vector<1x8x128xf32>
    %696 = vector.shape_cast %695 : vector<1x8x128xf32> to vector<8x128xf32>
    %697 = vector.extract_strided_slice %29 {offsets = [19, 0], sizes = [1, 128], strides = [1, 1]} : vector<32x128xbf16> to vector<1x128xbf16>
    %698 = vector.shape_cast %697 : vector<1x128xbf16> to vector<128xbf16>
    %699 = arith.extf %698 : vector<128xbf16> to vector<128xf32>
    %700 = vector.shape_cast %699 : vector<128xf32> to vector<1x128xf32>
    %701 = vector.broadcast %700 : vector<1x128xf32> to vector<8x128xf32>
    %702 = arith.mulf %696, %701 : vector<8x128xf32>
    %703 = arith.addf %694, %702 : vector<8x128xf32>
    %704 = vector.extract_strided_slice %319 {offsets = [5, 0, 0], sizes = [1, 8, 128], strides = [1, 1, 1]} : vector<8x8x128xf32> to vector<1x8x128xf32>
    %705 = vector.shape_cast %704 : vector<1x8x128xf32> to vector<8x128xf32>
    %706 = vector.extract_strided_slice %29 {offsets = [23, 0], sizes = [1, 128], strides = [1, 1]} : vector<32x128xbf16> to vector<1x128xbf16>
    %707 = vector.shape_cast %706 : vector<1x128xbf16> to vector<128xbf16>
    %708 = arith.extf %707 : vector<128xbf16> to vector<128xf32>
    %709 = vector.shape_cast %708 : vector<128xf32> to vector<1x128xf32>
    %710 = vector.broadcast %709 : vector<1x128xf32> to vector<8x128xf32>
    %711 = arith.mulf %705, %710 : vector<8x128xf32>
    %712 = arith.addf %703, %711 : vector<8x128xf32>
    %713 = vector.extract_strided_slice %319 {offsets = [6, 0, 0], sizes = [1, 8, 128], strides = [1, 1, 1]} : vector<8x8x128xf32> to vector<1x8x128xf32>
    %714 = vector.shape_cast %713 : vector<1x8x128xf32> to vector<8x128xf32>
    %715 = vector.extract_strided_slice %29 {offsets = [27, 0], sizes = [1, 128], strides = [1, 1]} : vector<32x128xbf16> to vector<1x128xbf16>
    %716 = vector.shape_cast %715 : vector<1x128xbf16> to vector<128xbf16>
    %717 = arith.extf %716 : vector<128xbf16> to vector<128xf32>
    %718 = vector.shape_cast %717 : vector<128xf32> to vector<1x128xf32>
    %719 = vector.broadcast %718 : vector<1x128xf32> to vector<8x128xf32>
    %720 = arith.mulf %714, %719 : vector<8x128xf32>
    %721 = arith.addf %712, %720 : vector<8x128xf32>
    %722 = vector.extract_strided_slice %319 {offsets = [7, 0, 0], sizes = [1, 8, 128], strides = [1, 1, 1]} : vector<8x8x128xf32> to vector<1x8x128xf32>
    %723 = vector.shape_cast %722 : vector<1x8x128xf32> to vector<8x128xf32>
    %724 = vector.extract_strided_slice %29 {offsets = [31, 0], sizes = [1, 128], strides = [1, 1]} : vector<32x128xbf16> to vector<1x128xbf16>
    %725 = vector.shape_cast %724 : vector<1x128xbf16> to vector<128xbf16>
    %726 = arith.extf %725 : vector<128xbf16> to vector<128xf32>
    %727 = vector.shape_cast %726 : vector<128xf32> to vector<1x128xf32>
    %728 = vector.broadcast %727 : vector<1x128xf32> to vector<8x128xf32>
    %729 = arith.mulf %723, %728 : vector<8x128xf32>
    %730 = arith.addf %721, %729 : vector<8x128xf32>
    %731 = tpu.concatenate %514, %586, %658, %730 in 0 : vector<8x128xf32>, vector<8x128xf32>, vector<8x128xf32>, vector<8x128xf32> -> vector<32x128xf32>
    %c0_30 = arith.constant 0 : index
    %c0_31 = arith.constant 0 : index
    %732 = vector.load %arg7[%c0_30, %c0_31] : memref<32x32xbf16, #tpu.memory_space<vmem>>, vector<32x32xbf16>
    %733 = arith.truncf %731 : vector<32x128xf32> to vector<32x128xbf16>
    %cst_32 = arith.constant dense<0.000000e+00> : vector<32x128xf32>
    %734 = tpu.matmul %732, %733, %cst_32 {dimension_numbers = #tpu.dot_dimension_numbers<[1], [0], [0], [1], [0, 0, 1, 1], [], []>} : vector<32x32xbf16>, vector<32x128xbf16>, vector<32x128xf32> -> vector<32x128xf32>
    %735 = arith.addf %1, %734 : vector<32x128xf32>
    %c0_33 = arith.constant 0 : index
    %c0_34 = arith.constant 0 : index
    %736 = vector.load %arg8[%c0_33, %c0_34] : memref<64x32xbf16, #tpu.memory_space<vmem>>, vector<64x32xbf16>
    %737 = arith.truncf %735 : vector<32x128xf32> to vector<32x128xbf16>
    %cst_35 = arith.constant dense<0.000000e+00> : vector<64x128xf32>
    %738 = tpu.matmul %736, %737, %cst_35 {dimension_numbers = #tpu.dot_dimension_numbers<[1], [0], [0], [1], [0, 0, 1, 1], [], []>} : vector<64x32xbf16>, vector<32x128xbf16>, vector<64x128xf32> -> vector<64x128xf32>
    %c0_36 = arith.constant 0 : index
    %c0_37 = arith.constant 0 : index
    %739 = vector.load %arg9[%c0_36, %c0_37] : memref<64x2xf32, #tpu.memory_space<vmem>>, vector<64x1xf32>
    %740 = vector.broadcast %739 : vector<64x1xf32> to vector<64x128xf32>
    %741 = arith.addf %738, %740 : vector<64x128xf32>
    %cst_38 = arith.constant 5.000000e-01 : f32
    %742 = vector.broadcast %cst_38 : f32 to vector<64x128xf32>
    %743 = arith.mulf %742, %741 : vector<64x128xf32>
    %cst_39 = arith.constant 4.471500e-02 : f32
    %744 = vector.broadcast %cst_39 : f32 to vector<64x128xf32>
    %745 = arith.mulf %744, %741 : vector<64x128xf32>
    %746 = arith.mulf %745, %741 : vector<64x128xf32>
    %747 = arith.mulf %746, %741 : vector<64x128xf32>
    %748 = arith.addf %741, %747 : vector<64x128xf32>
    %cst_40 = arith.constant 0.797884583 : f32
    %749 = vector.broadcast %cst_40 : f32 to vector<64x128xf32>
    %750 = arith.mulf %749, %748 : vector<64x128xf32>
    %751 = math.tanh %750 : vector<64x128xf32>
    %cst_41 = arith.constant 1.000000e+00 : f32
    %752 = vector.broadcast %cst_41 : f32 to vector<64x128xf32>
    %753 = arith.addf %752, %751 : vector<64x128xf32>
    %754 = arith.mulf %743, %753 : vector<64x128xf32>
    %c0_42 = arith.constant 0 : index
    %c4 = arith.constant 4 : index
    %755 = vector.load %arg10[%c0_42, %c4] : memref<64x9xf32, #tpu.memory_space<vmem>>, vector<64x1xf32>
    %756 = vector.broadcast %755 : vector<64x1xf32> to vector<64x128xf32>
    %757 = arith.mulf %754, %756 : vector<64x128xf32>
    %c17_i32 = arith.constant 17 : i32
    %758 = tpu.dynamic_rotate %754 by %c17_i32 dim 1 : vector<64x128xf32>, i32 -> vector<64x128xf32>
    %c0_43 = arith.constant 0 : index
    %c0_44 = arith.constant 0 : index
    %759 = vector.load %arg11[%c0_43, %c0_44] : memref<9x128xf32, #tpu.memory_space<vmem>>, vector<1x128xf32>
    %760 = vector.broadcast %759 : vector<1x128xf32> to vector<64x128xf32>
    %761 = arith.mulf %758, %760 : vector<64x128xf32>
    %c0_45 = arith.constant 0 : index
    %c0_46 = arith.constant 0 : index
    %762 = vector.load %arg10[%c0_45, %c0_46] : memref<64x9xf32, #tpu.memory_space<vmem>>, vector<64x1xf32>
    %763 = vector.broadcast %762 : vector<64x1xf32> to vector<64x128xf32>
    %764 = arith.mulf %761, %763 : vector<64x128xf32>
    %765 = arith.addf %757, %764 : vector<64x128xf32>
    %c16_i32_47 = arith.constant 16 : i32
    %766 = tpu.dynamic_rotate %754 by %c16_i32_47 dim 1 : vector<64x128xf32>, i32 -> vector<64x128xf32>
    %c1 = arith.constant 1 : index
    %c0_48 = arith.constant 0 : index
    %767 = vector.load %arg11[%c1, %c0_48] : memref<9x128xf32, #tpu.memory_space<vmem>>, vector<1x128xf32>
    %768 = vector.broadcast %767 : vector<1x128xf32> to vector<64x128xf32>
    %769 = arith.mulf %766, %768 : vector<64x128xf32>
    %c0_49 = arith.constant 0 : index
    %c1_50 = arith.constant 1 : index
    %770 = vector.load %arg10[%c0_49, %c1_50] : memref<64x9xf32, #tpu.memory_space<vmem>>, vector<64x1xf32>
    %771 = vector.broadcast %770 : vector<64x1xf32> to vector<64x128xf32>
    %772 = arith.mulf %769, %771 : vector<64x128xf32>
    %773 = arith.addf %765, %772 : vector<64x128xf32>
    %c15_i32 = arith.constant 15 : i32
    %774 = tpu.dynamic_rotate %754 by %c15_i32 dim 1 : vector<64x128xf32>, i32 -> vector<64x128xf32>
    %c2 = arith.constant 2 : index
    %c0_51 = arith.constant 0 : index
    %775 = vector.load %arg11[%c2, %c0_51] : memref<9x128xf32, #tpu.memory_space<vmem>>, vector<1x128xf32>
    %776 = vector.broadcast %775 : vector<1x128xf32> to vector<64x128xf32>
    %777 = arith.mulf %774, %776 : vector<64x128xf32>
    %c0_52 = arith.constant 0 : index
    %c2_53 = arith.constant 2 : index
    %778 = vector.load %arg10[%c0_52, %c2_53] : memref<64x9xf32, #tpu.memory_space<vmem>>, vector<64x1xf32>
    %779 = vector.broadcast %778 : vector<64x1xf32> to vector<64x128xf32>
    %780 = arith.mulf %777, %779 : vector<64x128xf32>
    %781 = arith.addf %773, %780 : vector<64x128xf32>
    %c1_i32 = arith.constant 1 : i32
    %782 = tpu.dynamic_rotate %754 by %c1_i32 dim 1 : vector<64x128xf32>, i32 -> vector<64x128xf32>
    %c3 = arith.constant 3 : index
    %c0_54 = arith.constant 0 : index
    %783 = vector.load %arg11[%c3, %c0_54] : memref<9x128xf32, #tpu.memory_space<vmem>>, vector<1x128xf32>
    %784 = vector.broadcast %783 : vector<1x128xf32> to vector<64x128xf32>
    %785 = arith.mulf %782, %784 : vector<64x128xf32>
    %c0_55 = arith.constant 0 : index
    %c3_56 = arith.constant 3 : index
    %786 = vector.load %arg10[%c0_55, %c3_56] : memref<64x9xf32, #tpu.memory_space<vmem>>, vector<64x1xf32>
    %787 = vector.broadcast %786 : vector<64x1xf32> to vector<64x128xf32>
    %788 = arith.mulf %785, %787 : vector<64x128xf32>
    %789 = arith.addf %781, %788 : vector<64x128xf32>
    %c127_i32 = arith.constant 127 : i32
    %790 = tpu.dynamic_rotate %754 by %c127_i32 dim 1 : vector<64x128xf32>, i32 -> vector<64x128xf32>
    %c5 = arith.constant 5 : index
    %c0_57 = arith.constant 0 : index
    %791 = vector.load %arg11[%c5, %c0_57] : memref<9x128xf32, #tpu.memory_space<vmem>>, vector<1x128xf32>
    %792 = vector.broadcast %791 : vector<1x128xf32> to vector<64x128xf32>
    %793 = arith.mulf %790, %792 : vector<64x128xf32>
    %c0_58 = arith.constant 0 : index
    %c5_59 = arith.constant 5 : index
    %794 = vector.load %arg10[%c0_58, %c5_59] : memref<64x9xf32, #tpu.memory_space<vmem>>, vector<64x1xf32>
    %795 = vector.broadcast %794 : vector<64x1xf32> to vector<64x128xf32>
    %796 = arith.mulf %793, %795 : vector<64x128xf32>
    %797 = arith.addf %789, %796 : vector<64x128xf32>
    %c113_i32 = arith.constant 113 : i32
    %798 = tpu.dynamic_rotate %754 by %c113_i32 dim 1 : vector<64x128xf32>, i32 -> vector<64x128xf32>
    %c6 = arith.constant 6 : index
    %c0_60 = arith.constant 0 : index
    %799 = vector.load %arg11[%c6, %c0_60] : memref<9x128xf32, #tpu.memory_space<vmem>>, vector<1x128xf32>
    %800 = vector.broadcast %799 : vector<1x128xf32> to vector<64x128xf32>
    %801 = arith.mulf %798, %800 : vector<64x128xf32>
    %c0_61 = arith.constant 0 : index
    %c6_62 = arith.constant 6 : index
    %802 = vector.load %arg10[%c0_61, %c6_62] : memref<64x9xf32, #tpu.memory_space<vmem>>, vector<64x1xf32>
    %803 = vector.broadcast %802 : vector<64x1xf32> to vector<64x128xf32>
    %804 = arith.mulf %801, %803 : vector<64x128xf32>
    %805 = arith.addf %797, %804 : vector<64x128xf32>
    %c112_i32_63 = arith.constant 112 : i32
    %806 = tpu.dynamic_rotate %754 by %c112_i32_63 dim 1 : vector<64x128xf32>, i32 -> vector<64x128xf32>
    %c7 = arith.constant 7 : index
    %c0_64 = arith.constant 0 : index
    %807 = vector.load %arg11[%c7, %c0_64] : memref<9x128xf32, #tpu.memory_space<vmem>>, vector<1x128xf32>
    %808 = vector.broadcast %807 : vector<1x128xf32> to vector<64x128xf32>
    %809 = arith.mulf %806, %808 : vector<64x128xf32>
    %c0_65 = arith.constant 0 : index
    %c7_66 = arith.constant 7 : index
    %810 = vector.load %arg10[%c0_65, %c7_66] : memref<64x9xf32, #tpu.memory_space<vmem>>, vector<64x1xf32>
    %811 = vector.broadcast %810 : vector<64x1xf32> to vector<64x128xf32>
    %812 = arith.mulf %809, %811 : vector<64x128xf32>
    %813 = arith.addf %805, %812 : vector<64x128xf32>
    %c111_i32 = arith.constant 111 : i32
    %814 = tpu.dynamic_rotate %754 by %c111_i32 dim 1 : vector<64x128xf32>, i32 -> vector<64x128xf32>
    %c8 = arith.constant 8 : index
    %c0_67 = arith.constant 0 : index
    %815 = vector.load %arg11[%c8, %c0_67] : memref<9x128xf32, #tpu.memory_space<vmem>>, vector<1x128xf32>
    %816 = vector.broadcast %815 : vector<1x128xf32> to vector<64x128xf32>
    %817 = arith.mulf %814, %816 : vector<64x128xf32>
    %c0_68 = arith.constant 0 : index
    %c8_69 = arith.constant 8 : index
    %818 = vector.load %arg10[%c0_68, %c8_69] : memref<64x9xf32, #tpu.memory_space<vmem>>, vector<64x1xf32>
    %819 = vector.broadcast %818 : vector<64x1xf32> to vector<64x128xf32>
    %820 = arith.mulf %817, %819 : vector<64x128xf32>
    %821 = arith.addf %813, %820 : vector<64x128xf32>
    %c0_70 = arith.constant 0 : index
    %c1_71 = arith.constant 1 : index
    %822 = vector.load %arg9[%c0_70, %c1_71] : memref<64x2xf32, #tpu.memory_space<vmem>>, vector<64x1xf32>
    %823 = vector.broadcast %822 : vector<64x1xf32> to vector<64x128xf32>
    %824 = arith.addf %821, %823 : vector<64x128xf32>
    %cst_72 = arith.constant 5.000000e-01 : f32
    %825 = vector.broadcast %cst_72 : f32 to vector<64x128xf32>
    %826 = arith.mulf %825, %824 : vector<64x128xf32>
    %cst_73 = arith.constant 4.471500e-02 : f32
    %827 = vector.broadcast %cst_73 : f32 to vector<64x128xf32>
    %828 = arith.mulf %827, %824 : vector<64x128xf32>
    %829 = arith.mulf %828, %824 : vector<64x128xf32>
    %830 = arith.mulf %829, %824 : vector<64x128xf32>
    %831 = arith.addf %824, %830 : vector<64x128xf32>
    %cst_74 = arith.constant 0.797884583 : f32
    %832 = vector.broadcast %cst_74 : f32 to vector<64x128xf32>
    %833 = arith.mulf %832, %831 : vector<64x128xf32>
    %834 = math.tanh %833 : vector<64x128xf32>
    %cst_75 = arith.constant 1.000000e+00 : f32
    %835 = vector.broadcast %cst_75 : f32 to vector<64x128xf32>
    %836 = arith.addf %835, %834 : vector<64x128xf32>
    %837 = arith.mulf %826, %836 : vector<64x128xf32>
    %c0_76 = arith.constant 0 : index
    %c0_77 = arith.constant 0 : index
    %838 = vector.load %arg12[%c0_76, %c0_77] : memref<32x64xbf16, #tpu.memory_space<vmem>>, vector<32x64xbf16>
    %839 = arith.truncf %837 : vector<64x128xf32> to vector<64x128xbf16>
    %cst_78 = arith.constant dense<0.000000e+00> : vector<32x128xf32>
    %840 = tpu.matmul %838, %839, %cst_78 {dimension_numbers = #tpu.dot_dimension_numbers<[1], [0], [0], [1], [0, 0, 1, 1], [], []>} : vector<32x64xbf16>, vector<64x128xbf16>, vector<32x128xf32> -> vector<32x128xf32>
    %c0_79 = arith.constant 0 : index
    %c0_80 = arith.constant 0 : index
    %841 = vector.load %arg13[%c0_79, %c0_80] : memref<32x1xf32, #tpu.memory_space<vmem>>, vector<32x1xf32>
    %842 = vector.broadcast %841 : vector<32x1xf32> to vector<32x128xf32>
    %843 = arith.addf %840, %842 : vector<32x128xf32>
    %844 = arith.addf %735, %843 : vector<32x128xf32>
    %c0_81 = arith.constant 0 : index
    %c0_82 = arith.constant 0 : index
    %c0_83 = arith.constant 0 : index
    %845 = vector.load %arg14[%c0_81, %c0_82, %c0_83] : memref<1x32x128xf32, #tpu.memory_space<vmem>>, vector<1x32x128xf32>
    %846 = vector.shape_cast %845 : vector<1x32x128xf32> to vector<32x128xf32>
    %847 = vector.shape_cast %844 : vector<32x128xf32> to vector<1x32x128xf32>
    tpu.vector_store %arg14[%c0_81, %c0_82, %c0_83], %847 {strides = array<i32>} : memref<1x32x128xf32, #tpu.memory_space<vmem>>, vector<1x32x128xf32>,
    return
  }
  func.func @transform_0(%arg0: i32) -> (i32, i32, i32) {
    %c0_i32 = arith.constant 0 : i32
    %c0_i32_0 = arith.constant 0 : i32
    %c0_i32_1 = arith.constant 0 : i32
    return %arg0, %c0_i32, %c0_i32_0 : i32, i32, i32
  }
  func.func @transform_1(%arg0: i32) -> (i32, i32) {
    %c0_i32 = arith.constant 0 : i32
    %c0_i32_0 = arith.constant 0 : i32
    %c0_i32_1 = arith.constant 0 : i32
    return %c0_i32, %c0_i32_0 : i32, i32
  }
  func.func @transform_2(%arg0: i32) -> (i32, i32) {
    %c0_i32 = arith.constant 0 : i32
    %c0_i32_0 = arith.constant 0 : i32
    %c0_i32_1 = arith.constant 0 : i32
    return %c0_i32, %c0_i32_0 : i32, i32
  }
  func.func @transform_3(%arg0: i32) -> (i32, i32) {
    %c0_i32 = arith.constant 0 : i32
    %c0_i32_0 = arith.constant 0 : i32
    %c0_i32_1 = arith.constant 0 : i32
    return %c0_i32, %c0_i32_0 : i32, i32
  }
  func.func @transform_4(%arg0: i32) -> (i32, i32) {
    %c0_i32 = arith.constant 0 : i32
    %c0_i32_0 = arith.constant 0 : i32
    %c0_i32_1 = arith.constant 0 : i32
    return %c0_i32, %c0_i32_0 : i32, i32
  }
  func.func @transform_5(%arg0: i32) -> (i32, i32) {
    %c0_i32 = arith.constant 0 : i32
    %c0_i32_0 = arith.constant 0 : i32
    %c0_i32_1 = arith.constant 0 : i32
    return %c0_i32, %c0_i32_0 : i32, i32
  }
  func.func @transform_6(%arg0: i32) -> (i32, i32) {
    %c0_i32 = arith.constant 0 : i32
    %c0_i32_0 = arith.constant 0 : i32
    %c0_i32_1 = arith.constant 0 : i32
    return %c0_i32, %c0_i32_0 : i32, i32
  }
  func.func @transform_7(%arg0: i32) -> (i32, i32) {
    %c0_i32 = arith.constant 0 : i32
    %c0_i32_0 = arith.constant 0 : i32
    %c0_i32_1 = arith.constant 0 : i32
    return %c0_i32, %c0_i32_0 : i32, i32
  }
  func.func @transform_8(%arg0: i32) -> (i32, i32) {
    %c0_i32 = arith.constant 0 : i32
    %c0_i32_0 = arith.constant 0 : i32
    %c0_i32_1 = arith.constant 0 : i32
    return %c0_i32, %c0_i32_0 : i32, i32
  }
  func.func @transform_9(%arg0: i32) -> (i32, i32) {
    %c0_i32 = arith.constant 0 : i32
    %c0_i32_0 = arith.constant 0 : i32
    %c0_i32_1 = arith.constant 0 : i32
    return %c0_i32, %c0_i32_0 : i32, i32
  }
  func.func @transform_10(%arg0: i32) -> (i32, i32) {
    %c0_i32 = arith.constant 0 : i32
    %c0_i32_0 = arith.constant 0 : i32
    %c0_i32_1 = arith.constant 0 : i32
    return %c0_i32, %c0_i32_0 : i32, i32
  }
  func.func @transform_11(%arg0: i32) -> (i32, i32) {
    %c0_i32 = arith.constant 0 : i32
    %c0_i32_0 = arith.constant 0 : i32
    %c0_i32_1 = arith.constant 0 : i32
    return %c0_i32, %c0_i32_0 : i32, i32
  }
  func.func @transform_12(%arg0: i32) -> (i32, i32) {
    %c0_i32 = arith.constant 0 : i32
    %c0_i32_0 = arith.constant 0 : i32
    %c0_i32_1 = arith.constant 0 : i32
    return %c0_i32, %c0_i32_0 : i32, i32
  }
  func.func @transform_13(%arg0: i32) -> (i32, i32, i32) {
    %c0_i32 = arith.constant 0 : i32
    %c0_i32_0 = arith.constant 0 : i32
    %c0_i32_1 = arith.constant 0 : i32
    return %arg0, %c0_i32, %c0_i32_0 : i32, i32, i32
  }
}

</mosaic_0001>

<llo_original>
// kernel: backtracing_decoder_layer_forward.1
$region0: #{backtracing_decoder_layer_forward.1}
  #allocation0 [shape = 'u32[]', space=smem, size = 0x4, offset = 0x4, fixed_abs, tag = 'smem constant byte address 0x4 - core index']
  #allocation1 [shape = 'u32[144,128]{1,0:T(1,128)}', space=vmem, size = 0x12000, scoped, tag = 'internal scratch']
  %s0 = inlined_call_operand.vmem [shape: f32[2,32,128], index: 0, kind: input, shape index: {}]
  %s1 = inlined_call_operand.vmem [shape: bf16[64,32], index: 1, kind: input, shape index: {}]
  %s2 = inlined_call_operand.vmem [shape: f32[64,1], index: 2, kind: input, shape index: {}]
  %s3 = inlined_call_operand.vmem [shape: bf16[16,128], index: 3, kind: input, shape index: {}]
  %s4 = inlined_call_operand.vmem [shape: bf16[16,128], index: 4, kind: input, shape index: {}]
  %s5 = inlined_call_operand.vmem [shape: bf16[32,128], index: 5, kind: input, shape index: {}]
  %s6 = inlined_call_operand.vmem [shape: bf16[32,32], index: 6, kind: input, shape index: {}]
  %s7 = inlined_call_operand.vmem [shape: bf16[64,32], index: 7, kind: input, shape index: {}]
  %s8 = inlined_call_operand.vmem [shape: f32[64,2], index: 8, kind: input, shape index: {}]
  %s9 = inlined_call_operand.vmem [shape: f32[64,9], index: 9, kind: input, shape index: {}]
  %s10 = inlined_call_operand.vmem [shape: f32[9,128], index: 10, kind: input, shape index: {}]
  %s11 = inlined_call_operand.vmem [shape: bf16[32,64], index: 11, kind: input, shape index: {}]
  %s12 = inlined_call_operand.vmem [shape: f32[32,1], index: 12, kind: input, shape index: {}]
  %s13 = inlined_call_operand.hbm [shape: f32[2,32,128], index: 13, kind: output, shape index: {}]
  %s14 = sld [smem:[#allocation0]]
  $region85: #{backtracing_decoder_layer_forward.1} parent=0
    _
  %s16 = ssub.s32 1, %s14
  %s17 = scalar_select 0, %s16, %s14
  $region1: #{backtracing_decoder_layer_forward.1} parent=0
    #allocation2 [shape = 'u8[32768]{0}', space=vmem, size = 0x8000, scoped, tag = 'output window, operand 0']
    #allocation3 [shape = 's32[2]{0}', space=sflag, size = 0x8, scoped, tag = 'scoped memory for backtracing_decoder_layer_forward.1']
    %18 = vsyncpa [#allocation3], 0
    %s19 = scalar_lea.sflag [#allocation3], 1
    %20 = vsyncpa %s19, 0
    loop: start=0, step=1, limit=4
    $region2: #{backtracing_decoder_layer_forward.1} parent=1 // loop_pre_header
      _
    $region3: #{backtracing_decoder_layer_forward.1} parent=1 // loop_header
      %s22 = sphi 0, %s26
      %p23 = scmp.ge.s32.totalorder %s22, 4
      %s32 = sphi 0, %s34
      %s35 = sphi 0, %s32
      %s36 = sphi 0, %s35
      %s52 = sphi 0, %s36
      %s56 = sphi 0, %s56
      %s58 = sphi 0, %s56
      %s59 = sphi 0, %s58
      %s73 = sphi 0, %s59
      %s77 = sphi 0, %s77
      %s79 = sphi 0, %s77
      %s80 = sphi 0, %s79
      %s94 = sphi 0, %s80
      %s98 = sphi 0, %s98
      %s100 = sphi 0, %s98
      %s101 = sphi 0, %s100
      %s115 = sphi 0, %s101
      %s119 = sphi 0, %s119
      %s121 = sphi 0, %s119
      %s122 = sphi 0, %s121
      %s136 = sphi 0, %s122
      %s140 = sphi 0, %s140
      %s142 = sphi 0, %s140
      %s143 = sphi 0, %s142
      %s157 = sphi 0, %s143
      %s161 = sphi 0, %s161
      %s163 = sphi 0, %s161
      %s164 = sphi 0, %s163
      %s178 = sphi 0, %s164
      %s182 = sphi 0, %s182
      %s184 = sphi 0, %s182
      %s185 = sphi 0, %s184
      %s199 = sphi 0, %s185
      %s203 = sphi 0, %s203
      %s205 = sphi 0, %s203
      %s206 = sphi 0, %s205
      %s220 = sphi 0, %s206
      %s224 = sphi 0, %s224
      %s226 = sphi 0, %s224
      %s227 = sphi 0, %s226
      %s241 = sphi 0, %s227
      %s245 = sphi 0, %s245
      %s247 = sphi 0, %s245
      %s248 = sphi 0, %s247
      %s262 = sphi 0, %s248
      %s266 = sphi 0, %s266
      %s268 = sphi 0, %s266
      %s269 = sphi 0, %s268
      %s283 = sphi 0, %s269
      %s287 = sphi 0, %s287
      %s289 = sphi 0, %s287
      %s290 = sphi 0, %s289
      %s304 = sphi 0, %s290
      %s310 = sphi 0, %s312
      %s313 = sphi 0, %s310
      %s314 = sphi 0, %s313
      %s330 = sphi 0, %s314
    $region4: #{backtracing_decoder_layer_forward.1} parent=1 // loop_header_branch
      %25 = sbr.rel (%p23) target = $region8
    $region5: #{backtracing_decoder_layer_forward.1} parent=1 // loop_body
      %s27 = ssub.s32 %s22, 1
      %s28 = ssub.s32 %s22, 2
      %s29 = sadd.s32 %s22, 1
      %s30 = ssub.s32 %s22, %s29
      %p31 = scmp.eq.s32.totalorder %s30, 0
      %s33 = sadd.s32 %s32, 1
      %s34 = scalar_select %p31, %s32, %s33
      %p37 = pneg %p31
      %p38 = scmp.eq.s32.totalorder %s22, 1
      %p39 = por %p37, %p38
      %p40 = scmp.ne.s32.totalorder %s32, %s35
      %p41 = scmp.eq.s32.totalorder %s22, 0
      %p42 = por %p40, %p41
      %p43 = scmp.ne.s32.totalorder %s32, %s35
      %p44 = scmp.eq.s32.totalorder %s27, 1
      %p45 = por %p43, %p44
      %p46 = scmp.ne.s32.totalorder %s35, %s36
      %p47 = scmp.eq.s32.totalorder %s27, 0
      %p48 = por %p46, %p47
      %p49 = scmp.ne.s32.totalorder %s35, %s36
      %p50 = scmp.eq.s32.totalorder %s28, 1
      %p51 = por %p49, %p50
      %p53 = scmp.ne.s32.totalorder %s36, %s52
      %p54 = scmp.eq.s32.totalorder %s28, 0
      %p55 = por %p53, %p54
      %s57 = sadd.s32 %s56, 1
      %p60 = scmp.eq.s32.totalorder %s22, 1
      %p61 = scmp.ne.s32.totalorder %s56, %s58
      %p62 = scmp.eq.s32.totalorder %s22, 0
      %p63 = por %p61, %p62
      %p64 = scmp.ne.s32.totalorder %s56, %s58
      %p65 = scmp.eq.s32.totalorder %s27, 1
      %p66 = por %p64, %p65
      %p67 = scmp.ne.s32.totalorder %s58, %s59
      %p68 = scmp.eq.s32.totalorder %s27, 0
      %p69 = por %p67, %p68
      %p70 = scmp.ne.s32.totalorder %s58, %s59
      %p71 = scmp.eq.s32.totalorder %s28, 1
      %p72 = por %p70, %p71
      %p74 = scmp.ne.s32.totalorder %s59, %s73
      %p75 = scmp.eq.s32.totalorder %s28, 0
      %p76 = por %p74, %p75
      %s78 = sadd.s32 %s77, 1
      %p81 = scmp.eq.s32.totalorder %s22, 1
      %p82 = scmp.ne.s32.totalorder %s77, %s79
      %p83 = scmp.eq.s32.totalorder %s22, 0
      %p84 = por %p82, %p83
      %p85 = scmp.ne.s32.totalorder %s77, %s79
      %p86 = scmp.eq.s32.totalorder %s27, 1
      %p87 = por %p85, %p86
      %p88 = scmp.ne.s32.totalorder %s79, %s80
      %p89 = scmp.eq.s32.totalorder %s27, 0
      %p90 = por %p88, %p89
      %p91 = scmp.ne.s32.totalorder %s79, %s80
      %p92 = scmp.eq.s32.totalorder %s28, 1
      %p93 = por %p91, %p92
      %p95 = scmp.ne.s32.totalorder %s80, %s94
      %p96 = scmp.eq.s32.totalorder %s28, 0
      %p97 = por %p95, %p96
      %s99 = sadd.s32 %s98, 1
      %p102 = scmp.eq.s32.totalorder %s22, 1
      %p103 = scmp.ne.s32.totalorder %s98, %s100
      %p104 = scmp.eq.s32.totalorder %s22, 0
      %p105 = por %p103, %p104
      %p106 = scmp.ne.s32.totalorder %s98, %s100
      %p107 = scmp.eq.s32.totalorder %s27, 1
      %p108 = por %p106, %p107
      %p109 = scmp.ne.s32.totalorder %s100, %s101
      %p110 = scmp.eq.s32.totalorder %s27, 0
      %p111 = por %p109, %p110
      %p112 = scmp.ne.s32.totalorder %s100, %s101
      %p113 = scmp.eq.s32.totalorder %s28, 1
      %p114 = por %p112, %p113
      %p116 = scmp.ne.s32.totalorder %s101, %s115
      %p117 = scmp.eq.s32.totalorder %s28, 0
      %p118 = por %p116, %p117
      %s120 = sadd.s32 %s119, 1
      %p123 = scmp.eq.s32.totalorder %s22, 1
      %p124 = scmp.ne.s32.totalorder %s119, %s121
      %p125 = scmp.eq.s32.totalorder %s22, 0
      %p126 = por %p124, %p125
      %p127 = scmp.ne.s32.totalorder %s119, %s121
      %p128 = scmp.eq.s32.totalorder %s27, 1
      %p129 = por %p127, %p128
      %p130 = scmp.ne.s32.totalorder %s121, %s122
      %p131 = scmp.eq.s32.totalorder %s27, 0
      %p132 = por %p130, %p131
      %p133 = scmp.ne.s32.totalorder %s121, %s122
      %p134 = scmp.eq.s32.totalorder %s28, 1
      %p135 = por %p133, %p134
      %p137 = scmp.ne.s32.totalorder %s122, %s136
      %p138 = scmp.eq.s32.totalorder %s28, 0
      %p139 = por %p137, %p138
      %s141 = sadd.s32 %s140, 1
      %p144 = scmp.eq.s32.totalorder %s22, 1
      %p145 = scmp.ne.s32.totalorder %s140, %s142
      %p146 = scmp.eq.s32.totalorder %s22, 0
      %p147 = por %p145, %p146
      %p148 = scmp.ne.s32.totalorder %s140, %s142
      %p149 = scmp.eq.s32.totalorder %s27, 1
      %p150 = por %p148, %p149
      %p151 = scmp.ne.s32.totalorder %s142, %s143
      %p152 = scmp.eq.s32.totalorder %s27, 0
      %p153 = por %p151, %p152
      %p154 = scmp.ne.s32.totalorder %s142, %s143
      %p155 = scmp.eq.s32.totalorder %s28, 1
      %p156 = por %p154, %p155
      %p158 = scmp.ne.s32.totalorder %s143, %s157
      %p159 = scmp.eq.s32.totalorder %s28, 0
      %p160 = por %p158, %p159
      %s162 = sadd.s32 %s161, 1
      %p165 = scmp.eq.s32.totalorder %s22, 1
      %p166 = scmp.ne.s32.totalorder %s161, %s163
      %p167 = scmp.eq.s32.totalorder %s22, 0
      %p168 = por %p166, %p167
      %p169 = scmp.ne.s32.totalorder %s161, %s163
      %p170 = scmp.eq.s32.totalorder %s27, 1
      %p171 = por %p169, %p170
      %p172 = scmp.ne.s32.totalorder %s163, %s164
      %p173 = scmp.eq.s32.totalorder %s27, 0
      %p174 = por %p172, %p173
      %p175 = scmp.ne.s32.totalorder %s163, %s164
      %p176 = scmp.eq.s32.totalorder %s28, 1
      %p177 = por %p175, %p176
      %p179 = scmp.ne.s32.totalorder %s164, %s178
      %p180 = scmp.eq.s32.totalorder %s28, 0
      %p181 = por %p179, %p180
      %s183 = sadd.s32 %s182, 1
      %p186 = scmp.eq.s32.totalorder %s22, 1
      %p187 = scmp.ne.s32.totalorder %s182, %s184
      %p188 = scmp.eq.s32.totalorder %s22, 0
      %p189 = por %p187, %p188
      %p190 = scmp.ne.s32.totalorder %s182, %s184
      %p191 = scmp.eq.s32.totalorder %s27, 1
      %p192 = por %p190, %p191
      %p193 = scmp.ne.s32.totalorder %s184, %s185
      %p194 = scmp.eq.s32.totalorder %s27, 0
      %p195 = por %p193, %p194
      %p196 = scmp.ne.s32.totalorder %s184, %s185
      %p197 = scmp.eq.s32.totalorder %s28, 1
      %p198 = por %p196, %p197
      %p200 = scmp.ne.s32.totalorder %s185, %s199
      %p201 = scmp.eq.s32.totalorder %s28, 0
      %p202 = por %p200, %p201
      %s204 = sadd.s32 %s203, 1
      %p207 = scmp.eq.s32.totalorder %s22, 1
      %p208 = scmp.ne.s32.totalorder %s203, %s205
      %p209 = scmp.eq.s32.totalorder %s22, 0
      %p210 = por %p208, %p209
      %p211 = scmp.ne.s32.totalorder %s203, %s205
      %p212 = scmp.eq.s32.totalorder %s27, 1
      %p213 = por %p211, %p212
      %p214 = scmp.ne.s32.totalorder %s205, %s206
      %p215 = scmp.eq.s32.totalorder %s27, 0
      %p216 = por %p214, %p215
      %p217 = scmp.ne.s32.totalorder %s205, %s206
      %p218 = scmp.eq.s32.totalorder %s28, 1
      %p219 = por %p217, %p218
      %p221 = scmp.ne.s32.totalorder %s206, %s220
      %p222 = scmp.eq.s32.totalorder %s28, 0
      %p223 = por %p221, %p222
      %s225 = sadd.s32 %s224, 1
      %p228 = scmp.eq.s32.totalorder %s22, 1
      %p229 = scmp.ne.s32.totalorder %s224, %s226
      %p230 = scmp.eq.s32.totalorder %s22, 0
      %p231 = por %p229, %p230
      %p232 = scmp.ne.s32.totalorder %s224, %s226
      %p233 = scmp.eq.s32.totalorder %s27, 1
      %p234 = por %p232, %p233
      %p235 = scmp.ne.s32.totalorder %s226, %s227
      %p236 = scmp.eq.s32.totalorder %s27, 0
      %p237 = por %p235, %p236
      %p238 = scmp.ne.s32.totalorder %s226, %s227
      %p239 = scmp.eq.s32.totalorder %s28, 1
      %p240 = por %p238, %p239
      %p242 = scmp.ne.s32.totalorder %s227, %s241
      %p243 = scmp.eq.s32.totalorder %s28, 0
      %p244 = por %p242, %p243
      %s246 = sadd.s32 %s245, 1
      %p249 = scmp.eq.s32.totalorder %s22, 1
      %p250 = scmp.ne.s32.totalorder %s245, %s247
      %p251 = scmp.eq.s32.totalorder %s22, 0
      %p252 = por %p250, %p251
      %p253 = scmp.ne.s32.totalorder %s245, %s247
      %p254 = scmp.eq.s32.totalorder %s27, 1
      %p255 = por %p253, %p254
      %p256 = scmp.ne.s32.totalorder %s247, %s248
      %p257 = scmp.eq.s32.totalorder %s27, 0
      %p258 = por %p256, %p257
      %p259 = scmp.ne.s32.totalorder %s247, %s248
      %p260 = scmp.eq.s32.totalorder %s28, 1
      %p261 = por %p259, %p260
      %p263 = scmp.ne.s32.totalorder %s248, %s262
      %p264 = scmp.eq.s32.totalorder %s28, 0
      %p265 = por %p263, %p264
      %s267 = sadd.s32 %s266, 1
      %p270 = scmp.eq.s32.totalorder %s22, 1
      %p271 = scmp.ne.s32.totalorder %s266, %s268
      %p272 = scmp.eq.s32.totalorder %s22, 0
      %p273 = por %p271, %p272
      %p274 = scmp.ne.s32.totalorder %s266, %s268
      %p275 = scmp.eq.s32.totalorder %s27, 1
      %p276 = por %p274, %p275
      %p277 = scmp.ne.s32.totalorder %s268, %s269
      %p278 = scmp.eq.s32.totalorder %s27, 0
      %p279 = por %p277, %p278
      %p280 = scmp.ne.s32.totalorder %s268, %s269
      %p281 = scmp.eq.s32.totalorder %s28, 1
      %p282 = por %p280, %p281
      %p284 = scmp.ne.s32.totalorder %s269, %s283
      %p285 = scmp.eq.s32.totalorder %s28, 0
      %p286 = por %p284, %p285
      %s288 = sadd.s32 %s287, 1
      %p291 = scmp.eq.s32.totalorder %s22, 1
      %p292 = scmp.ne.s32.totalorder %s287, %s289
      %p293 = scmp.eq.s32.totalorder %s22, 0
      %p294 = por %p292, %p293
      %p295 = scmp.ne.s32.totalorder %s287, %s289
      %p296 = scmp.eq.s32.totalorder %s27, 1
      %p297 = por %p295, %p296
      %p298 = scmp.ne.s32.totalorder %s289, %s290
      %p299 = scmp.eq.s32.totalorder %s27, 0
      %p300 = por %p298, %p299
      %p301 = scmp.ne.s32.totalorder %s289, %s290
      %p302 = scmp.eq.s32.totalorder %s28, 1
      %p303 = por %p301, %p302
      %p305 = scmp.ne.s32.totalorder %s290, %s304
      %p306 = scmp.eq.s32.totalorder %s28, 0
      %p307 = por %p305, %p306
      %s308 = ssub.s32 %s22, %s29
      %p309 = scmp.eq.s32.totalorder %s308, 0
      %s311 = sadd.s32 %s310, 1
      %s312 = scalar_select %p309, %s310, %s311
      %p315 = pneg %p309
      %p316 = scmp.eq.s32.totalorder %s22, 1
      %p317 = por %p315, %p316
      %p318 = scmp.ne.s32.totalorder %s310, %s313
      %p319 = scmp.eq.s32.totalorder %s22, 0
      %p320 = por %p318, %p319
      %p321 = scmp.ne.s32.totalorder %s310, %s313
      %p322 = scmp.eq.s32.totalorder %s27, 1
      %p323 = por %p321, %p322
      %p324 = scmp.ne.s32.totalorder %s313, %s314
      %p325 = scmp.eq.s32.totalorder %s27, 0
      %p326 = por %p324, %p325
      %p327 = scmp.ne.s32.totalorder %s313, %s314
      %p328 = scmp.eq.s32.totalorder %s28, 1
      %p329 = por %p327, %p328
      %p331 = scmp.ne.s32.totalorder %s314, %s330
      %p332 = scmp.eq.s32.totalorder %s28, 0
      %p333 = por %p331, %p332
      %p334 = scmp.le.s32.totalorder 1, %s22
      %p335 = scmp.lt.s32.totalorder %s22, 3
      %p336 = pnand %p334, %p335
      %p337 = pneg %p336
      // Predicated region
      $region9: #{backtracing_decoder_layer_forward.1} parent=5 // pred_check
        _
      $region10: #{backtracing_decoder_layer_forward.1} parent=5 // pred_check_branch
        %339 = sbr.rel (%p336) target = $region12
      $region11: #{backtracing_decoder_layer_forward.1} parent=5 // pred_region
        %s340 = ssub.s32 %s22, 1
        // Predicated region
        $region13: #{backtracing_decoder_layer_forward.1} parent=11 // pred_check
          %p341 = pneg %p69
        $region14: #{backtracing_decoder_layer_forward.1} parent=11 // pred_check_branch
          %343 = sbr.rel (%p341) target = $region16
        $region15: #{backtracing_decoder_layer_forward.1} parent=11 // pred_region
          _
        $region16: #{backtracing_decoder_layer_forward.1} parent=11 // pred_fallthru
          _
        // Predicated region
        $region17: #{backtracing_decoder_layer_forward.1} parent=11 // pred_check
          %p344 = pneg %p90
        $region18: #{backtracing_decoder_layer_forward.1} parent=11 // pred_check_branch
          %346 = sbr.rel (%p344) target = $region20
        $region19: #{backtracing_decoder_layer_forward.1} parent=11 // pred_region
          _
        $region20: #{backtracing_decoder_layer_forward.1} parent=11 // pred_fallthru
          _
        // Predicated region
        $region21: #{backtracing_decoder_layer_forward.1} parent=11 // pred_check
          %p347 = pneg %p111
        $region22: #{backtracing_decoder_layer_forward.1} parent=11 // pred_check_branch
          %349 = sbr.rel (%p347) target = $region24
        $region23: #{backtracing_decoder_layer_forward.1} parent=11 // pred_region
          _
        $region24: #{backtracing_decoder_layer_forward.1} parent=11 // pred_fallthru
          _
        // Predicated region
        $region25: #{backtracing_decoder_layer_forward.1} parent=11 // pred_check
          %p350 = pneg %p132
        $region26: #{backtracing_decoder_layer_forward.1} parent=11 // pred_check_branch
          %352 = sbr.rel (%p350) target = $region28
        $region27: #{backtracing_decoder_layer_forward.1} parent=11 // pred_region
          _
        $region28: #{backtracing_decoder_layer_forward.1} parent=11 // pred_fallthru
          _
        // Predicated region
        $region29: #{backtracing_decoder_layer_forward.1} parent=11 // pred_check
          %p353 = pneg %p153
        $region30: #{backtracing_decoder_layer_forward.1} parent=11 // pred_check_branch
          %355 = sbr.rel (%p353) target = $region32
        $region31: #{backtracing_decoder_layer_forward.1} parent=11 // pred_region
          _
        $region32: #{backtracing_decoder_layer_forward.1} parent=11 // pred_fallthru
          _
        // Predicated region
        $region33: #{backtracing_decoder_layer_forward.1} parent=11 // pred_check
          %p356 = pneg %p174
        $region34: #{backtracing_decoder_layer_forward.1} parent=11 // pred_check_branch
          %358 = sbr.rel (%p356) target = $region36
        $region35: #{backtracing_decoder_layer_forward.1} parent=11 // pred_region
          _
        $region36: #{backtracing_decoder_layer_forward.1} parent=11 // pred_fallthru
          _
        // Predicated region
        $region37: #{backtracing_decoder_layer_forward.1} parent=11 // pred_check
          %p359 = pneg %p195
        $region38: #{backtracing_decoder_layer_forward.1} parent=11 // pred_check_branch
          %361 = sbr.rel (%p359) target = $region40
        $region39: #{backtracing_decoder_layer_forward.1} parent=11 // pred_region
          _
        $region40: #{backtracing_decoder_layer_forward.1} parent=11 // pred_fallthru
          _
        // Predicated region
        $region41: #{backtracing_decoder_layer_forward.1} parent=11 // pred_check
          %p362 = pneg %p216
        $region42: #{backtracing_decoder_layer_forward.1} parent=11 // pred_check_branch
          %364 = sbr.rel (%p362) target = $region44
        $region43: #{backtracing_decoder_layer_forward.1} parent=11 // pred_region
          _
        $region44: #{backtracing_decoder_layer_forward.1} parent=11 // pred_fallthru
          _
        // Predicated region
        $region45: #{backtracing_decoder_layer_forward.1} parent=11 // pred_check
          %p365 = pneg %p237
        $region46: #{backtracing_decoder_layer_forward.1} parent=11 // pred_check_branch
          %367 = sbr.rel (%p365) target = $region48
        $region47: #{backtracing_decoder_layer_forward.1} parent=11 // pred_region
          _
        $region48: #{backtracing_decoder_layer_forward.1} parent=11 // pred_fallthru
          _
        // Predicated region
        $region49: #{backtracing_decoder_layer_forward.1} parent=11 // pred_check
          %p368 = pneg %p258
        $region50: #{backtracing_decoder_layer_forward.1} parent=11 // pred_check_branch
          %370 = sbr.rel (%p368) target = $region52
        $region51: #{backtracing_decoder_layer_forward.1} parent=11 // pred_region
          _
        $region52: #{backtracing_decoder_layer_forward.1} parent=11 // pred_fallthru
          _
        // Predicated region
        $region53: #{backtracing_decoder_layer_forward.1} parent=11 // pred_check
          %p371 = pneg %p279
        $region54: #{backtracing_decoder_layer_forward.1} parent=11 // pred_check_branch
          %373 = sbr.rel (%p371) target = $region56
        $region55: #{backtracing_decoder_layer_forward.1} parent=11 // pred_region
          _
        $region56: #{backtracing_decoder_layer_forward.1} parent=11 // pred_fallthru
          _
        // Predicated region
        $region57: #{backtracing_decoder_layer_forward.1} parent=11 // pred_check
          %p374 = pneg %p300
        $region58: #{backtracing_decoder_layer_forward.1} parent=11 // pred_check_branch
          %376 = sbr.rel (%p374) target = $region60
        $region59: #{backtracing_decoder_layer_forward.1} parent=11 // pred_region
          _
        $region60: #{backtracing_decoder_layer_forward.1} parent=11 // pred_fallthru
          _
      $region12: #{backtracing_decoder_layer_forward.1} parent=5 // pred_fallthru
        _
      %p377 = scmp.lt.s32.totalorder %s22, 2
      // Predicated region
      $region61: #{backtracing_decoder_layer_forward.1} parent=5 // pred_check
        %p378 = pneg %p377
      $region62: #{backtracing_decoder_layer_forward.1} parent=5 // pred_check_branch
        %380 = sbr.rel (%p378) target = $region64
      $region63: #{backtracing_decoder_layer_forward.1} parent=5 // pred_region
        // Predicated region
        $region65: #{backtracing_decoder_layer_forward.1} parent=63 // pred_check
          %p381 = pneg %p42
        $region66: #{backtracing_decoder_layer_forward.1} parent=63 // pred_check_branch
          %383 = sbr.rel (%p381) target = $region68
        $region67: #{backtracing_decoder_layer_forward.1} parent=63 // pred_region
          %p384 = scmp.lt.s32.totalorder %s22, 1
          %s385 = scalar_select %p384, %s22, 1
          %s386 = smul.addr %s385, 4
          %s387 = smul.addr %s386, 8
          %s388 = scalar_lea.vmem %s0, %s387
        $region68: #{backtracing_decoder_layer_forward.1} parent=63 // pred_fallthru
          _
      $region64: #{backtracing_decoder_layer_forward.1} parent=5 // pred_fallthru
        _
      %p389 = scmp.le.s32.totalorder 1, %s22
      %p390 = scmp.lt.s32.totalorder %s22, 3
      %p391 = pnand %p389, %p390
      %p392 = pneg %p391
      // Predicated region
      $region69: #{backtracing_decoder_layer_forward.1} parent=5 // pred_check
        _
      $region70: #{backtracing_decoder_layer_forward.1} parent=5 // pred_check_branch
        %394 = sbr.rel (%p391) target = $region72
      $region71: #{backtracing_decoder_layer_forward.1} parent=5 // pred_region
        %s395 = ssub.s32 %s22, 1
        %p396 = scmp.lt.s32.totalorder %s27, 1
        %s397 = scalar_select %p396, %s27, 1
        %s398 = smul.addr %s397, 4
        %s399 = smul.addr %s398, 8
        %s400 = scalar_lea.vmem %s0, %s399
        %p401 = pneg %p48
        %p402 = pneg %p45
        %p403 = pneg %p69
        %p404 = pneg %p66
        %p405 = pneg %p90
        %p406 = pneg %p87
        %p407 = pneg %p111
        %p408 = pneg %p108
        %p409 = pneg %p132
        %p410 = pneg %p129
        %p411 = pneg %p153
        %p412 = pneg %p150
        %p413 = pneg %p174
        %p414 = pneg %p171
        %p415 = pneg %p195
        %p416 = pneg %p192
        %p417 = pneg %p216
        %p418 = pneg %p213
        %p419 = pneg %p237
        %p420 = pneg %p234
        %p421 = pneg %p258
        %p422 = pneg %p255
        %p423 = pneg %p279
        %p424 = pneg %p276
        %p425 = pneg %p300
        %p426 = pneg %p297
        %p427 = pneg %p326
        %p428 = pneg %p323
        %s429 = sand.u32 %s313, 1
        %s430 = scalar_lea.sflag [#allocation3], %s429
        %s431 = sand.u32 %s313, 1
        %s432 = smul.addr %s431, 32
        %s433 = scalar_lea.vmem [#allocation2], %s432
        %p434 = scmp.lt.s32.totalorder %s27, 1
        %s435 = scalar_select %p434, %s27, 1
        %s436 = smul.addr %s435, 4
        %s437 = smul.addr %s436, 8
        %s438 = scalar_lea.vmem %s0, %s437
        %v440 = vld [vmem:[%s438] sm:$0xff]
        %v441 = vld [vmem:[%s438 + $0x8] sm:$0xff]
        %v442 = vld [vmem:[%s438 + $0x10] sm:$0xff]
        %v443 = vld [vmem:[%s438 + $0x18] sm:$0xff]
        %v444 = vadd.f32 %v440, %v441
        %v445 = vadd.f32 %v444, %v442
        %v446 = vadd.f32 %v445, %v443
        %v447 = vrot.slane %v446, 4
        %v448 = vadd.f32 %v446, %v447
        %v449 = vrot.slane %v448, 2
        %v450 = vadd.f32 %v448, %v449
        %v451 = vrot.slane %v450, 1
        %v452 = vadd.f32 %v450, %v451
        %v453 = vrcp.pop 32.0
        %v454 = vmul.f32 %v452, %v453
        %v455 = vsub.f32 %v440, %v454
        %v456 = vsub.f32 %v441, %v454
        %v457 = vsub.f32 %v442, %v454
        %v458 = vsub.f32 %v443, %v454
        %v459 = vmul.f32 %v455, %v455
        %v460 = vmul.f32 %v456, %v456
        %v461 = vmul.f32 %v457, %v457
        %v462 = vmul.f32 %v458, %v458
        %v463 = vadd.f32 %v459, %v460
        %v464 = vadd.f32 %v463, %v461
        %v465 = vadd.f32 %v464, %v462
        %v466 = vrot.slane %v465, 4
        %v467 = vadd.f32 %v465, %v466
        %v468 = vrot.slane %v467, 2
        %v469 = vadd.f32 %v467, %v468
        %v470 = vrot.slane %v469, 1
        %v471 = vadd.f32 %v469, %v470
        %v472 = vmul.f32 %v471, %v453
        %v473 = vadd.f32 %v472, 1e-05
        %v474 = vrsqrt.pop %v473
        %v475 = vmul.f32 %v455, %v474
        %v476 = vmul.f32 %v456, %v474
        %v477 = vmul.f32 %v457, %v474
        %v478 = vmul.f32 %v458, %v474
        %v479 = vpack.c.bf16 %v476, %v475
        %v480 = vpack.c.bf16 %v478, %v477
        %v481 = vld [vmem:[%s1] sm:$0xf]
        %v482 = vld [vmem:[%s1 + $0x4] sm:$0xf]
        %v483 = vld [vmem:[%s1 + $0x8] sm:$0xf]
        %v484 = vld [vmem:[%s1 + $0xc] sm:$0xf]
        %v485 = vld [vmem:[%s1 + $0x10] sm:$0xf]
        %v486 = vld [vmem:[%s1 + $0x14] sm:$0xf]
        %v487 = vld [vmem:[%s1 + $0x18] sm:$0xf]
        %v488 = vld [vmem:[%s1 + $0x1c] sm:$0xf]
        %v489 = vld [vmem:[%s2] sm:$0xff]
        %v490 = vld [vmem:[%s2 + $0x8] sm:$0xff]
        %v491 = vld [vmem:[%s2 + $0x10] sm:$0xff]
        %v492 = vld [vmem:[%s2 + $0x18] sm:$0xff]
        %v493 = vld [vmem:[%s2 + $0x20] sm:$0xff]
        %v494 = vld [vmem:[%s2 + $0x28] sm:$0xff]
        %v495 = vld [vmem:[%s2 + $0x30] sm:$0xff]
        %v496 = vld [vmem:[%s2 + $0x38] sm:$0xff]
        %498 = vset.pattern.permute.xlu0 0
        %499 = vperm.xlu0 %498, %v489
        %v500 = vpop.permute.xlu0 %499
        %503 = vset.pattern.permute.xlu0 0
        %504 = vperm.xlu0 %503, %v490
        %v505 = vpop.permute.xlu0 %504
        %508 = vset.pattern.permute.xlu0 0
        %509 = vperm.xlu0 %508, %v491
        %v510 = vpop.permute.xlu0 %509
        %513 = vset.pattern.permute.xlu0 0
        %514 = vperm.xlu0 %513, %v492
        %v515 = vpop.permute.xlu0 %514
        %518 = vset.pattern.permute.xlu0 0
        %519 = vperm.xlu0 %518, %v493
        %v520 = vpop.permute.xlu0 %519
        %523 = vset.pattern.permute.xlu0 0
        %524 = vperm.xlu0 %523, %v494
        %v525 = vpop.permute.xlu0 %524
        %528 = vset.pattern.permute.xlu0 0
        %529 = vperm.xlu0 %528, %v495
        %v530 = vpop.permute.xlu0 %529
        %533 = vset.pattern.permute.xlu0 0
        %534 = vperm.xlu0 %533, %v496
        %v535 = vpop.permute.xlu0 %534
        %v545 = vunpack.c.l.b16 %v481
        %v546 = vunpack.c.l.b16 %v482
        %v547 = vunpack.c.l.b16 %v483
        %v548 = vunpack.c.l.b16 %v484
        %v549 = vunpack.c.l.b16 %v485
        %v550 = vunpack.c.l.b16 %v486
        %v551 = vunpack.c.l.b16 %v487
        %v552 = vunpack.c.l.b16 %v488
        %v553 = vpack.c.b16 %v546, %v545
        %v554 = vpack.c.b16 %v548, %v547
        %v555 = vpack.c.b16 %v550, %v549
        %v556 = vpack.c.b16 %v552, %v551
        %vm557 = vcmask 261120
        %v559 = vsel %vm557, %v553, 0
        %v562 = vsel %vm557, %v554, 0
        %v565 = vsel %vm557, %v555, 0
        %v568 = vsel %vm557, %v556, 0
        %570 = vmatprep.subr.bf16.mxu0 0
        %571 = vmatpush1.bf16.msra.mxu0 %v479
        %572 = vmatprep.subr.bf16.mxu0 0
        %573 = vmatpush1.bf16.msra.mxu0 %v480
        %574 = vmatprep.subr.bf16.mxu0 0
        %575 = vmatpush1.bf16.msra.mxu0 0
        %576 = vmatprep.subr.bf16.mxu0 0
        %577 = vmatpush1.bf16.msra.mxu0 0
        %578 = vmatprep.subr.bf16.mxu0 0
        %579 = vmatpush1.bf16.msra.mxu0 0
        %580 = vmatprep.subr.bf16.mxu0 0
        %581 = vmatpush1.bf16.msra.mxu0 0
        %582 = vmatprep.subr.bf16.mxu0 0
        %583 = vmatpush1.bf16.msra.mxu0 0
        %584 = vmatprep.subr.bf16.mxu0 0
        %585 = vmatpush1.bf16.msra.mxu0 0
        %586 = vmatprep.subr.bf16.mxu0 0
        %587 = vmatpush1.bf16.msra.mxu0 0
        %588 = vmatprep.subr.bf16.mxu0 0
        %589 = vmatpush1.bf16.msra.mxu0 0
        %590 = vmatprep.subr.bf16.mxu0 0
        %591 = vmatpush1.bf16.msra.mxu0 0
        %592 = vmatprep.subr.bf16.mxu0 0
        %593 = vmatpush1.bf16.msra.mxu0 0
        %594 = vmatprep.subr.bf16.mxu0 0
        %595 = vmatpush1.bf16.msra.mxu0 0
        %596 = vmatprep.subr.bf16.mxu0 0
        %597 = vmatpush1.bf16.msra.mxu0 0
        %598 = vmatprep.subr.bf16.mxu0 0
        %599 = vmatpush1.bf16.msra.mxu0 0
        %600 = vmatprep.subr.bf16.mxu0 0
        %601 = vmatpush1.bf16.msra.mxu0 0
        %602 = vmatprep.mubr.bf16.mxu0 0
        %603 = vmatmul.mubr.bf16.gmra.mrb[0].mxu0 %v559
        %v604 = vpop.f32.mrb[0].mxu0
        %v605 = vadd.f32 %v500, %v604
        %v606 = vpop.f32.mrb[0].mxu0
        %v607 = vpop.f32.mrb[0].mxu0
        %v608 = vadd.f32 %v505, %v607
        %v609 = vpop.f32.mrb[0].mxu0
        %610 = vmatprep.mubr.bf16.mxu0 0
        %611 = vmatmul.mubr.bf16.gmra.mrb[0].mxu0 %v562
        %v612 = vpop.f32.mrb[0].mxu0
        %v613 = vadd.f32 %v510, %v612
        %v614 = vpop.f32.mrb[0].mxu0
        %v615 = vpop.f32.mrb[0].mxu0
        %v616 = vadd.f32 %v515, %v615
        %v617 = vpop.f32.mrb[0].mxu0
        %618 = vmatprep.mubr.bf16.mxu0 0
        %619 = vmatmul.mubr.bf16.gmra.mrb[0].mxu0 %v565
        %v620 = vpop.f32.mrb[0].mxu0
        %v621 = vadd.f32 %v520, %v620
        %v622 = vpop.f32.mrb[0].mxu0
        %v623 = vpop.f32.mrb[0].mxu0
        %v624 = vadd.f32 %v525, %v623
        %v625 = vpop.f32.mrb[0].mxu0
        %626 = vmatprep.mubr.bf16.mxu0 0
        %627 = vmatmul.mubr.bf16.gmra.mrb[0].mxu0 %v568
        %v628 = vpop.f32.mrb[0].mxu0
        %v629 = vadd.f32 %v530, %v628
        %v630 = vpop.f32.mrb[0].mxu0
        %v631 = vpop.f32.mrb[0].mxu0
        %v632 = vadd.f32 %v535, %v631
        %v633 = vpop.f32.mrb[0].mxu0
        %634 = vdwg.mxu0
        %v635 = vld [vmem:[%s3] sm:$0xf]
        %v636 = vld [vmem:[%s3 + $0x4] sm:$0xf]
        %v637 = vld [vmem:[%s4] sm:$0xf]
        %v638 = vld [vmem:[%s4 + $0x4] sm:$0xf]
        %v639 = vld [vmem:[%s5] sm:$0xf]
        %v640 = vld [vmem:[%s5 + $0x4] sm:$0xf]
        %v641 = vld [vmem:[%s5 + $0x8] sm:$0xf]
        %v642 = vld [vmem:[%s5 + $0xc] sm:$0xf]
        %v643 = vunpack.c.l.bf16 %v635
        %v644 = vlaneseq
        %v645 = vshrl.u32 %v644, 7
        %v646 = vsub.s32 0, %v645
        %v647 = vrot.slane %v643, %v646
        %v648 = vadd.f32 %v613, %v647
        %v649 = vmul.f32 %v605, %v648
        %v650 = vunpack.c.l.bf16 %v637
        %v651 = vlaneseq
        %v652 = vshrl.u32 %v651, 7
        %v653 = vsub.s32 0, %v652
        %v654 = vrot.slane %v650, %v653
        %v655 = vmul.f32 %v613, %v654
        %v656 = vadd.f32 %v649, %v655
        %v657 = vlaneseq
        %v658 = vshrl.u32 %v657, 7
        %v659 = vsub.s32 1, %v658
        %v660 = vrot.slane %v643, %v659
        %v661 = vadd.f32 %v616, %v660
        %v662 = vmul.f32 %v608, %v661
        %v663 = vlaneseq
        %v664 = vshrl.u32 %v663, 7
        %v665 = vsub.s32 1, %v664
        %v666 = vrot.slane %v650, %v665
        %v667 = vmul.f32 %v616, %v666
        %v668 = vadd.f32 %v662, %v667
        %v669 = vadd.f32 %v656, %v668
        %670 = vrot.lane.b32.xlu0 %v613, 16
        %v671 = vpop.permute.xlu0 %670
        %672 = vrot.lane.b32.xlu0 %v616, 16
        %v673 = vpop.permute.xlu0 %672
        %v674 = vlaneseq
        %v675 = vshrl.u32 %v674, 7
        %v676 = vsub.s32 2, %v675
        %v677 = vrot.slane %v643, %v676
        %v678 = vadd.f32 %v671, %v677
        %v679 = vmul.f32 %v605, %v678
        %v680 = vlaneseq
        %v681 = vshrl.u32 %v680, 7
        %v682 = vsub.s32 2, %v681
        %v683 = vrot.slane %v650, %v682
        %v684 = vmul.f32 %v671, %v683
        %v685 = vadd.f32 %v679, %v684
        %v686 = vlaneseq
        %v687 = vshrl.u32 %v686, 7
        %v688 = vsub.s32 3, %v687
        %v689 = vrot.slane %v643, %v688
        %v690 = vadd.f32 %v673, %v689
        %v691 = vmul.f32 %v608, %v690
        %v692 = vlaneseq
        %v693 = vshrl.u32 %v692, 7
        %v694 = vsub.s32 3, %v693
        %v695 = vrot.slane %v650, %v694
        %v696 = vmul.f32 %v673, %v695
        %v697 = vadd.f32 %v691, %v696
        %v698 = vadd.f32 %v685, %v697
        %699 = vrot.lane.b32.xlu0 %v613, 32
        %v700 = vpop.permute.xlu0 %699
        %701 = vrot.lane.b32.xlu0 %v616, 32
        %v702 = vpop.permute.xlu0 %701
        %v703 = vlaneseq
        %v704 = vshrl.u32 %v703, 7
        %v705 = vsub.s32 4, %v704
        %v706 = vrot.slane %v643, %v705
        %v707 = vadd.f32 %v700, %v706
        %v708 = vmul.f32 %v605, %v707
        %v709 = vlaneseq
        %v710 = vshrl.u32 %v709, 7
        %v711 = vsub.s32 4, %v710
        %v712 = vrot.slane %v650, %v711
        %v713 = vmul.f32 %v700, %v712
        %v714 = vadd.f32 %v708, %v713
        %v715 = vlaneseq
        %v716 = vshrl.u32 %v715, 7
        %v717 = vsub.s32 5, %v716
        %v718 = vrot.slane %v643, %v717
        %v719 = vadd.f32 %v702, %v718
        %v720 = vmul.f32 %v608, %v719
        %v721 = vlaneseq
        %v722 = vshrl.u32 %v721, 7
        %v723 = vsub.s32 5, %v722
        %v724 = vrot.slane %v650, %v723
        %v725 = vmul.f32 %v702, %v724
        %v726 = vadd.f32 %v720, %v725
        %v727 = vadd.f32 %v714, %v726
        %728 = vrot.lane.b32.xlu0 %v613, 48
        %v729 = vpop.permute.xlu0 %728
        %730 = vrot.lane.b32.xlu0 %v616, 48
        %v731 = vpop.permute.xlu0 %730
        %v732 = vlaneseq
        %v733 = vshrl.u32 %v732, 7
        %v734 = vsub.s32 6, %v733
        %v735 = vrot.slane %v643, %v734
        %v736 = vadd.f32 %v729, %v735
        %v737 = vmul.f32 %v605, %v736
        %v738 = vlaneseq
        %v739 = vshrl.u32 %v738, 7
        %v740 = vsub.s32 6, %v739
        %v741 = vrot.slane %v650, %v740
        %v742 = vmul.f32 %v729, %v741
        %v743 = vadd.f32 %v737, %v742
        %v744 = vlaneseq
        %v745 = vshrl.u32 %v744, 7
        %v746 = vsub.s32 7, %v745
        %v747 = vrot.slane %v643, %v746
        %v748 = vadd.f32 %v731, %v747
        %v749 = vmul.f32 %v608, %v748
        %v750 = vlaneseq
        %v751 = vshrl.u32 %v750, 7
        %v752 = vsub.s32 7, %v751
        %v753 = vrot.slane %v650, %v752
        %v754 = vmul.f32 %v731, %v753
        %v755 = vadd.f32 %v749, %v754
        %v756 = vadd.f32 %v743, %v755
        %757 = vrot.lane.b32.xlu0 %v613, 64
        %v758 = vpop.permute.xlu0 %757
        %759 = vrot.lane.b32.xlu0 %v616, 64
        %v760 = vpop.permute.xlu0 %759
        %v761 = vunpack.c.l.bf16 %v636
        %v762 = vlaneseq
        %v763 = vshrl.u32 %v762, 7
        %v764 = vsub.s32 0, %v763
        %v765 = vrot.slane %v761, %v764
        %v766 = vadd.f32 %v758, %v765
        %v767 = vmul.f32 %v605, %v766
        %v768 = vunpack.c.l.bf16 %v638
        %v769 = vlaneseq
        %v770 = vshrl.u32 %v769, 7
        %v771 = vsub.s32 0, %v770
        %v772 = vrot.slane %v768, %v771
        %v773 = vmul.f32 %v758, %v772
        %v774 = vadd.f32 %v767, %v773
        %v775 = vlaneseq
        %v776 = vshrl.u32 %v775, 7
        %v777 = vsub.s32 1, %v776
        %v778 = vrot.slane %v761, %v777
        %v779 = vadd.f32 %v760, %v778
        %v780 = vmul.f32 %v608, %v779
        %v781 = vlaneseq
        %v782 = vshrl.u32 %v781, 7
        %v783 = vsub.s32 1, %v782
        %v784 = vrot.slane %v768, %v783
        %v785 = vmul.f32 %v760, %v784
        %v786 = vadd.f32 %v780, %v785
        %v787 = vadd.f32 %v774, %v786
        %788 = vrot.lane.b32.xlu0 %v613, 80
        %v789 = vpop.permute.xlu0 %788
        %790 = vrot.lane.b32.xlu0 %v616, 80
        %v791 = vpop.permute.xlu0 %790
        %v792 = vlaneseq
        %v793 = vshrl.u32 %v792, 7
        %v794 = vsub.s32 2, %v793
        %v795 = vrot.slane %v761, %v794
        %v796 = vadd.f32 %v789, %v795
        %v797 = vmul.f32 %v605, %v796
        %v798 = vlaneseq
        %v799 = vshrl.u32 %v798, 7
        %v800 = vsub.s32 2, %v799
        %v801 = vrot.slane %v768, %v800
        %v802 = vmul.f32 %v789, %v801
        %v803 = vadd.f32 %v797, %v802
        %v804 = vlaneseq
        %v805 = vshrl.u32 %v804, 7
        %v806 = vsub.s32 3, %v805
        %v807 = vrot.slane %v761, %v806
        %v808 = vadd.f32 %v791, %v807
        %v809 = vmul.f32 %v608, %v808
        %v810 = vlaneseq
        %v811 = vshrl.u32 %v810, 7
        %v812 = vsub.s32 3, %v811
        %v813 = vrot.slane %v768, %v812
        %v814 = vmul.f32 %v791, %v813
        %v815 = vadd.f32 %v809, %v814
        %v816 = vadd.f32 %v803, %v815
        %817 = vrot.lane.b32.xlu0 %v613, 96
        %v818 = vpop.permute.xlu0 %817
        %819 = vrot.lane.b32.xlu0 %v616, 96
        %v820 = vpop.permute.xlu0 %819
        %v821 = vlaneseq
        %v822 = vshrl.u32 %v821, 7
        %v823 = vsub.s32 4, %v822
        %v824 = vrot.slane %v761, %v823
        %v825 = vadd.f32 %v818, %v824
        %v826 = vmul.f32 %v605, %v825
        %v827 = vlaneseq
        %v828 = vshrl.u32 %v827, 7
        %v829 = vsub.s32 4, %v828
        %v830 = vrot.slane %v768, %v829
        %v831 = vmul.f32 %v818, %v830
        %v832 = vadd.f32 %v826, %v831
        %v833 = vlaneseq
        %v834 = vshrl.u32 %v833, 7
        %v835 = vsub.s32 5, %v834
        %v836 = vrot.slane %v761, %v835
        %v837 = vadd.f32 %v820, %v836
        %v838 = vmul.f32 %v608, %v837
        %v839 = vlaneseq
        %v840 = vshrl.u32 %v839, 7
        %v841 = vsub.s32 5, %v840
        %v842 = vrot.slane %v768, %v841
        %v843 = vmul.f32 %v820, %v842
        %v844 = vadd.f32 %v838, %v843
        %v845 = vadd.f32 %v832, %v844
        %846 = vrot.lane.b32.xlu0 %v613, 112
        %v847 = vpop.permute.xlu0 %846
        %848 = vrot.lane.b32.xlu0 %v616, 112
        %v849 = vpop.permute.xlu0 %848
        %v850 = vlaneseq
        %v851 = vshrl.u32 %v850, 7
        %v852 = vsub.s32 6, %v851
        %v853 = vrot.slane %v761, %v852
        %v854 = vadd.f32 %v847, %v853
        %v855 = vmul.f32 %v605, %v854
        %v856 = vlaneseq
        %v857 = vshrl.u32 %v856, 7
        %v858 = vsub.s32 6, %v857
        %v859 = vrot.slane %v768, %v858
        %v860 = vmul.f32 %v847, %v859
        %v861 = vadd.f32 %v855, %v860
        %v862 = vlaneseq
        %v863 = vshrl.u32 %v862, 7
        %v864 = vsub.s32 7, %v863
        %v865 = vrot.slane %v761, %v864
        %v866 = vadd.f32 %v849, %v865
        %v867 = vmul.f32 %v608, %v866
        %v868 = vlaneseq
        %v869 = vshrl.u32 %v868, 7
        %v870 = vsub.s32 7, %v869
        %v871 = vrot.slane %v768, %v870
        %v872 = vmul.f32 %v849, %v871
        %v873 = vadd.f32 %v867, %v872
        %v874 = vadd.f32 %v861, %v873
        %v875 = vmax.f32 %v669, %v787
        %v876 = vmax.f32 %v698, %v816
        %v877 = vmax.f32 %v727, %v845
        %v878 = vmax.f32 %v756, %v874
        %v879 = vmax.f32 %v875, %v876
        %v880 = vmax.f32 %v877, %v878
        %v881 = vmax.f32 %v879, %v880
        %v882 = vsub.f32 %v669, %v881
        %v883 = vsub.f32 %v698, %v881
        %v884 = vsub.f32 %v727, %v881
        %v885 = vsub.f32 %v756, %v881
        %v886 = vsub.f32 %v787, %v881
        %v887 = vsub.f32 %v816, %v881
        %v888 = vsub.f32 %v845, %v881
        %v889 = vsub.f32 %v874, %v881
        %v890 = vmul.f32 %v882, 1.442695
        %v891 = vpow.pop %v890
        %v892 = vmul.f32 %v883, 1.442695
        %v893 = vpow.pop %v892
        %v894 = vmul.f32 %v884, 1.442695
        %v895 = vpow.pop %v894
        %v896 = vmul.f32 %v885, 1.442695
        %v897 = vpow.pop %v896
        %v898 = vmul.f32 %v886, 1.442695
        %v899 = vpow.pop %v898
        %v900 = vmul.f32 %v887, 1.442695
        %v901 = vpow.pop %v900
        %v902 = vmul.f32 %v888, 1.442695
        %v903 = vpow.pop %v902
        %v904 = vmul.f32 %v889, 1.442695
        %v905 = vpow.pop %v904
        %v906 = vadd.f32 %v891, %v893
        %v907 = vadd.f32 %v906, %v895
        %v908 = vadd.f32 %v907, %v897
        %v909 = vadd.f32 %v908, %v899
        %v910 = vadd.f32 %v909, %v901
        %v911 = vadd.f32 %v910, %v903
        %v912 = vadd.f32 %v911, %v905
        %v913 = vrcp.pop %v912
        %v914 = vmul.f32 %v891, %v913
        %v915 = vmul.f32 %v893, %v913
        %v916 = vmul.f32 %v895, %v913
        %v917 = vmul.f32 %v897, %v913
        %v918 = vmul.f32 %v899, %v913
        %v919 = vmul.f32 %v901, %v913
        %v920 = vmul.f32 %v903, %v913
        %v921 = vmul.f32 %v905, %v913
        %v922 = vmul.f32 %v914, %v621
        %v923 = vadd.f32 %v922, 0.0
        %v924 = vmul.f32 %v914, %v624
        %v925 = vadd.f32 %v924, 0.0
        %v926 = vmul.f32 %v914, %v629
        %v927 = vadd.f32 %v926, 0.0
        %v928 = vmul.f32 %v914, %v632
        %v929 = vadd.f32 %v928, 0.0
        %930 = vrot.lane.b32.xlu0 %v621, 16
        %v931 = vpop.permute.xlu0 %930
        %932 = vrot.lane.b32.xlu0 %v624, 16
        %v933 = vpop.permute.xlu0 %932
        %934 = vrot.lane.b32.xlu0 %v629, 16
        %v935 = vpop.permute.xlu0 %934
        %936 = vrot.lane.b32.xlu0 %v632, 16
        %v937 = vpop.permute.xlu0 %936
        %v938 = vmul.f32 %v915, %v931
        %v939 = vadd.f32 %v923, %v938
        %v940 = vmul.f32 %v915, %v933
        %v941 = vadd.f32 %v925, %v940
        %v942 = vmul.f32 %v915, %v935
        %v943 = vadd.f32 %v927, %v942
        %v944 = vmul.f32 %v915, %v937
        %v945 = vadd.f32 %v929, %v944
        %946 = vrot.lane.b32.xlu0 %v621, 32
        %v947 = vpop.permute.xlu0 %946
        %948 = vrot.lane.b32.xlu0 %v624, 32
        %v949 = vpop.permute.xlu0 %948
        %950 = vrot.lane.b32.xlu0 %v629, 32
        %v951 = vpop.permute.xlu0 %950
        %952 = vrot.lane.b32.xlu0 %v632, 32
        %v953 = vpop.permute.xlu0 %952
        %v954 = vmul.f32 %v916, %v947
        %v955 = vadd.f32 %v939, %v954
        %v956 = vmul.f32 %v916, %v949
        %v957 = vadd.f32 %v941, %v956
        %v958 = vmul.f32 %v916, %v951
        %v959 = vadd.f32 %v943, %v958
        %v960 = vmul.f32 %v916, %v953
        %v961 = vadd.f32 %v945, %v960
        %962 = vrot.lane.b32.xlu0 %v621, 48
        %v963 = vpop.permute.xlu0 %962
        %964 = vrot.lane.b32.xlu0 %v624, 48
        %v965 = vpop.permute.xlu0 %964
        %966 = vrot.lane.b32.xlu0 %v629, 48
        %v967 = vpop.permute.xlu0 %966
        %968 = vrot.lane.b32.xlu0 %v632, 48
        %v969 = vpop.permute.xlu0 %968
        %v970 = vmul.f32 %v917, %v963
        %v971 = vadd.f32 %v955, %v970
        %v972 = vmul.f32 %v917, %v965
        %v973 = vadd.f32 %v957, %v972
        %v974 = vmul.f32 %v917, %v967
        %v975 = vadd.f32 %v959, %v974
        %v976 = vmul.f32 %v917, %v969
        %v977 = vadd.f32 %v961, %v976
        %978 = vrot.lane.b32.xlu0 %v621, 64
        %v979 = vpop.permute.xlu0 %978
        %980 = vrot.lane.b32.xlu0 %v624, 64
        %v981 = vpop.permute.xlu0 %980
        %982 = vrot.lane.b32.xlu0 %v629, 64
        %v983 = vpop.permute.xlu0 %982
        %984 = vrot.lane.b32.xlu0 %v632, 64
        %v985 = vpop.permute.xlu0 %984
        %v986 = vmul.f32 %v918, %v979
        %v987 = vadd.f32 %v971, %v986
        %v988 = vmul.f32 %v918, %v981
        %v989 = vadd.f32 %v973, %v988
        %v990 = vmul.f32 %v918, %v983
        %v991 = vadd.f32 %v975, %v990
        %v992 = vmul.f32 %v918, %v985
        %v993 = vadd.f32 %v977, %v992
        %994 = vrot.lane.b32.xlu0 %v621, 80
        %v995 = vpop.permute.xlu0 %994
        %996 = vrot.lane.b32.xlu0 %v624, 80
        %v997 = vpop.permute.xlu0 %996
        %998 = vrot.lane.b32.xlu0 %v629, 80
        %v999 = vpop.permute.xlu0 %998
        %1000 = vrot.lane.b32.xlu0 %v632, 80
        %v1001 = vpop.permute.xlu0 %1000
        %v1002 = vmul.f32 %v919, %v995
        %v1003 = vadd.f32 %v987, %v1002
        %v1004 = vmul.f32 %v919, %v997
        %v1005 = vadd.f32 %v989, %v1004
        %v1006 = vmul.f32 %v919, %v999
        %v1007 = vadd.f32 %v991, %v1006
        %v1008 = vmul.f32 %v919, %v1001
        %v1009 = vadd.f32 %v993, %v1008
        %1010 = vrot.lane.b32.xlu0 %v621, 96
        %v1011 = vpop.permute.xlu0 %1010
        %1012 = vrot.lane.b32.xlu0 %v624, 96
        %v1013 = vpop.permute.xlu0 %1012
        %1014 = vrot.lane.b32.xlu0 %v629, 96
        %v1015 = vpop.permute.xlu0 %1014
        %1016 = vrot.lane.b32.xlu0 %v632, 96
        %v1017 = vpop.permute.xlu0 %1016
        %v1018 = vmul.f32 %v920, %v1011
        %v1019 = vadd.f32 %v1003, %v1018
        %v1020 = vmul.f32 %v920, %v1013
        %v1021 = vadd.f32 %v1005, %v1020
        %v1022 = vmul.f32 %v920, %v1015
        %v1023 = vadd.f32 %v1007, %v1022
        %v1024 = vmul.f32 %v920, %v1017
        %v1025 = vadd.f32 %v1009, %v1024
        %1026 = vrot.lane.b32.xlu0 %v621, 112
        %v1027 = vpop.permute.xlu0 %1026
        %1028 = vrot.lane.b32.xlu0 %v624, 112
        %v1029 = vpop.permute.xlu0 %1028
        %1030 = vrot.lane.b32.xlu0 %v629, 112
        %v1031 = vpop.permute.xlu0 %1030
        %1032 = vrot.lane.b32.xlu0 %v632, 112
        %v1033 = vpop.permute.xlu0 %1032
        %v1034 = vmul.f32 %v921, %v1027
        %v1035 = vadd.f32 %v1019, %v1034
        %v1036 = vmul.f32 %v921, %v1029
        %v1037 = vadd.f32 %v1021, %v1036
        %v1038 = vmul.f32 %v921, %v1031
        %v1039 = vadd.f32 %v1023, %v1038
        %v1040 = vmul.f32 %v921, %v1033
        %v1041 = vadd.f32 %v1025, %v1040
        %v1042 = vunpack.c.l.bf16 %v639
        %v1043 = vlaneseq
        %v1044 = vshrl.u32 %v1043, 7
        %v1045 = vsub.s32 0, %v1044
        %v1046 = vrot.slane %v1042, %v1045
        %v1047 = vmul.f32 %v914, %v1046
        %v1048 = vadd.f32 %v1035, %v1047
        %v1049 = vlaneseq
        %v1050 = vshrl.u32 %v1049, 7
        %v1051 = vsub.s32 4, %v1050
        %v1052 = vrot.slane %v1042, %v1051
        %v1053 = vmul.f32 %v915, %v1052
        %v1054 = vadd.f32 %v1048, %v1053
        %v1055 = vunpack.c.l.bf16 %v640
        %v1056 = vlaneseq
        %v1057 = vshrl.u32 %v1056, 7
        %v1058 = vsub.s32 0, %v1057
        %v1059 = vrot.slane %v1055, %v1058
        %v1060 = vmul.f32 %v916, %v1059
        %v1061 = vadd.f32 %v1054, %v1060
        %v1062 = vlaneseq
        %v1063 = vshrl.u32 %v1062, 7
        %v1064 = vsub.s32 4, %v1063
        %v1065 = vrot.slane %v1055, %v1064
        %v1066 = vmul.f32 %v917, %v1065
        %v1067 = vadd.f32 %v1061, %v1066
        %v1068 = vunpack.c.l.bf16 %v641
        %v1069 = vlaneseq
        %v1070 = vshrl.u32 %v1069, 7
        %v1071 = vsub.s32 0, %v1070
        %v1072 = vrot.slane %v1068, %v1071
        %v1073 = vmul.f32 %v918, %v1072
        %v1074 = vadd.f32 %v1067, %v1073
        %v1075 = vlaneseq
        %v1076 = vshrl.u32 %v1075, 7
        %v1077 = vsub.s32 4, %v1076
        %v1078 = vrot.slane %v1068, %v1077
        %v1079 = vmul.f32 %v919, %v1078
        %v1080 = vadd.f32 %v1074, %v1079
        %v1081 = vunpack.c.l.bf16 %v642
        %v1082 = vlaneseq
        %v1083 = vshrl.u32 %v1082, 7
        %v1084 = vsub.s32 0, %v1083
        %v1085 = vrot.slane %v1081, %v1084
        %v1086 = vmul.f32 %v920, %v1085
        %v1087 = vadd.f32 %v1080, %v1086
        %v1088 = vlaneseq
        %v1089 = vshrl.u32 %v1088, 7
        %v1090 = vsub.s32 4, %v1089
        %v1091 = vrot.slane %v1081, %v1090
        %v1092 = vmul.f32 %v921, %v1091
        %v1093 = vadd.f32 %v1087, %v1092
        %v1094 = vlaneseq
        %v1095 = vshrl.u32 %v1094, 7
        %v1096 = vsub.s32 1, %v1095
        %v1097 = vrot.slane %v1042, %v1096
        %v1098 = vmul.f32 %v914, %v1097
        %v1099 = vadd.f32 %v1037, %v1098
        %v1100 = vlaneseq
        %v1101 = vshrl.u32 %v1100, 7
        %v1102 = vsub.s32 5, %v1101
        %v1103 = vrot.slane %v1042, %v1102
        %v1104 = vmul.f32 %v915, %v1103
        %v1105 = vadd.f32 %v1099, %v1104
        %v1106 = vlaneseq
        %v1107 = vshrl.u32 %v1106, 7
        %v1108 = vsub.s32 1, %v1107
        %v1109 = vrot.slane %v1055, %v1108
        %v1110 = vmul.f32 %v916, %v1109
        %v1111 = vadd.f32 %v1105, %v1110
        %v1112 = vlaneseq
        %v1113 = vshrl.u32 %v1112, 7
        %v1114 = vsub.s32 5, %v1113
        %v1115 = vrot.slane %v1055, %v1114
        %v1116 = vmul.f32 %v917, %v1115
        %v1117 = vadd.f32 %v1111, %v1116
        %v1118 = vlaneseq
        %v1119 = vshrl.u32 %v1118, 7
        %v1120 = vsub.s32 1, %v1119
        %v1121 = vrot.slane %v1068, %v1120
        %v1122 = vmul.f32 %v918, %v1121
        %v1123 = vadd.f32 %v1117, %v1122
        %v1124 = vlaneseq
        %v1125 = vshrl.u32 %v1124, 7
        %v1126 = vsub.s32 5, %v1125
        %v1127 = vrot.slane %v1068, %v1126
        %v1128 = vmul.f32 %v919, %v1127
        %v1129 = vadd.f32 %v1123, %v1128
        %v1130 = vlaneseq
        %v1131 = vshrl.u32 %v1130, 7
        %v1132 = vsub.s32 1, %v1131
        %v1133 = vrot.slane %v1081, %v1132
        %v1134 = vmul.f32 %v920, %v1133
        %v1135 = vadd.f32 %v1129, %v1134
        %v1136 = vlaneseq
        %v1137 = vshrl.u32 %v1136, 7
        %v1138 = vsub.s32 5, %v1137
        %v1139 = vrot.slane %v1081, %v1138
        %v1140 = vmul.f32 %v921, %v1139
        %v1141 = vadd.f32 %v1135, %v1140
        %v1142 = vlaneseq
        %v1143 = vshrl.u32 %v1142, 7
        %v1144 = vsub.s32 2, %v1143
        %v1145 = vrot.slane %v1042, %v1144
        %v1146 = vmul.f32 %v914, %v1145
        %v1147 = vadd.f32 %v1039, %v1146
        %v1148 = vlaneseq
        %v1149 = vshrl.u32 %v1148, 7
        %v1150 = vsub.s32 6, %v1149
        %v1151 = vrot.slane %v1042, %v1150
        %v1152 = vmul.f32 %v915, %v1151
        %v1153 = vadd.f32 %v1147, %v1152
        %v1154 = vlaneseq
        %v1155 = vshrl.u32 %v1154, 7
        %v1156 = vsub.s32 2, %v1155
        %v1157 = vrot.slane %v1055, %v1156
        %v1158 = vmul.f32 %v916, %v1157
        %v1159 = vadd.f32 %v1153, %v1158
        %v1160 = vlaneseq
        %v1161 = vshrl.u32 %v1160, 7
        %v1162 = vsub.s32 6, %v1161
        %v1163 = vrot.slane %v1055, %v1162
        %v1164 = vmul.f32 %v917, %v1163
        %v1165 = vadd.f32 %v1159, %v1164
        %v1166 = vlaneseq
        %v1167 = vshrl.u32 %v1166, 7
        %v1168 = vsub.s32 2, %v1167
        %v1169 = vrot.slane %v1068, %v1168
        %v1170 = vmul.f32 %v918, %v1169
        %v1171 = vadd.f32 %v1165, %v1170
        %v1172 = vlaneseq
        %v1173 = vshrl.u32 %v1172, 7
        %v1174 = vsub.s32 6, %v1173
        %v1175 = vrot.slane %v1068, %v1174
        %v1176 = vmul.f32 %v919, %v1175
        %v1177 = vadd.f32 %v1171, %v1176
        %v1178 = vlaneseq
        %v1179 = vshrl.u32 %v1178, 7
        %v1180 = vsub.s32 2, %v1179
        %v1181 = vrot.slane %v1081, %v1180
        %v1182 = vmul.f32 %v920, %v1181
        %v1183 = vadd.f32 %v1177, %v1182
        %v1184 = vlaneseq
        %v1185 = vshrl.u32 %v1184, 7
        %v1186 = vsub.s32 6, %v1185
        %v1187 = vrot.slane %v1081, %v1186
        %v1188 = vmul.f32 %v921, %v1187
        %v1189 = vadd.f32 %v1183, %v1188
        %v1190 = vlaneseq
        %v1191 = vshrl.u32 %v1190, 7
        %v1192 = vsub.s32 3, %v1191
        %v1193 = vrot.slane %v1042, %v1192
        %v1194 = vmul.f32 %v914, %v1193
        %v1195 = vadd.f32 %v1041, %v1194
        %v1196 = vlaneseq
        %v1197 = vshrl.u32 %v1196, 7
        %v1198 = vsub.s32 7, %v1197
        %v1199 = vrot.slane %v1042, %v1198
        %v1200 = vmul.f32 %v915, %v1199
        %v1201 = vadd.f32 %v1195, %v1200
        %v1202 = vlaneseq
        %v1203 = vshrl.u32 %v1202, 7
        %v1204 = vsub.s32 3, %v1203
        %v1205 = vrot.slane %v1055, %v1204
        %v1206 = vmul.f32 %v916, %v1205
        %v1207 = vadd.f32 %v1201, %v1206
        %v1208 = vlaneseq
        %v1209 = vshrl.u32 %v1208, 7
        %v1210 = vsub.s32 7, %v1209
        %v1211 = vrot.slane %v1055, %v1210
        %v1212 = vmul.f32 %v917, %v1211
        %v1213 = vadd.f32 %v1207, %v1212
        %v1214 = vlaneseq
        %v1215 = vshrl.u32 %v1214, 7
        %v1216 = vsub.s32 3, %v1215
        %v1217 = vrot.slane %v1068, %v1216
        %v1218 = vmul.f32 %v918, %v1217
        %v1219 = vadd.f32 %v1213, %v1218
        %v1220 = vlaneseq
        %v1221 = vshrl.u32 %v1220, 7
        %v1222 = vsub.s32 7, %v1221
        %v1223 = vrot.slane %v1068, %v1222
        %v1224 = vmul.f32 %v919, %v1223
        %v1225 = vadd.f32 %v1219, %v1224
        %v1226 = vlaneseq
        %v1227 = vshrl.u32 %v1226, 7
        %v1228 = vsub.s32 3, %v1227
        %v1229 = vrot.slane %v1081, %v1228
        %v1230 = vmul.f32 %v920, %v1229
        %v1231 = vadd.f32 %v1225, %v1230
        %v1232 = vlaneseq
        %v1233 = vshrl.u32 %v1232, 7
        %v1234 = vsub.s32 7, %v1233
        %v1235 = vrot.slane %v1081, %v1234
        %v1236 = vmul.f32 %v921, %v1235
        %v1237 = vadd.f32 %v1231, %v1236
        %v1238 = vld [vmem:[%s6] sm:$0xf]
        %v1239 = vld [vmem:[%s6 + $0x4] sm:$0xf]
        %v1240 = vld [vmem:[%s6 + $0x8] sm:$0xf]
        %v1241 = vld [vmem:[%s6 + $0xc] sm:$0xf]
        %v1242 = vpack.c.bf16 %v1141, %v1093
        %v1243 = vpack.c.bf16 %v1237, %v1189
        %v1248 = vunpack.c.l.b16 %v1238
        %v1249 = vunpack.c.l.b16 %v1239
        %v1250 = vunpack.c.l.b16 %v1240
        %v1251 = vunpack.c.l.b16 %v1241
        %v1252 = vpack.c.b16 %v1249, %v1248
        %v1253 = vpack.c.b16 %v1251, %v1250
        %v1255 = vsel %vm557, %v1252, 0
        %v1258 = vsel %vm557, %v1253, 0
        %1260 = vmatprep.subr.bf16.mxu0 0
        %1261 = vmatpush1.bf16.msra.mxu0 %v1242
        %1262 = vmatprep.subr.bf16.mxu0 0
        %1263 = vmatpush1.bf16.msra.mxu0 %v1243
        %1264 = vmatprep.subr.bf16.mxu0 0
        %1265 = vmatpush1.bf16.msra.mxu0 0
        %1266 = vmatprep.subr.bf16.mxu0 0
        %1267 = vmatpush1.bf16.msra.mxu0 0
        %1268 = vmatprep.subr.bf16.mxu0 0
        %1269 = vmatpush1.bf16.msra.mxu0 0
        %1270 = vmatprep.subr.bf16.mxu0 0
        %1271 = vmatpush1.bf16.msra.mxu0 0
        %1272 = vmatprep.subr.bf16.mxu0 0
        %1273 = vmatpush1.bf16.msra.mxu0 0
        %1274 = vmatprep.subr.bf16.mxu0 0
        %1275 = vmatpush1.bf16.msra.mxu0 0
        %1276 = vmatprep.subr.bf16.mxu0 0
        %1277 = vmatpush1.bf16.msra.mxu0 0
        %1278 = vmatprep.subr.bf16.mxu0 0
        %1279 = vmatpush1.bf16.msra.mxu0 0
        %1280 = vmatprep.subr.bf16.mxu0 0
        %1281 = vmatpush1.bf16.msra.mxu0 0
        %1282 = vmatprep.subr.bf16.mxu0 0
        %1283 = vmatpush1.bf16.msra.mxu0 0
        %1284 = vmatprep.subr.bf16.mxu0 0
        %1285 = vmatpush1.bf16.msra.mxu0 0
        %1286 = vmatprep.subr.bf16.mxu0 0
        %1287 = vmatpush1.bf16.msra.mxu0 0
        %1288 = vmatprep.subr.bf16.mxu0 0
        %1289 = vmatpush1.bf16.msra.mxu0 0
        %1290 = vmatprep.subr.bf16.mxu0 0
        %1291 = vmatpush1.bf16.msra.mxu0 0
        %1292 = vmatprep.mubr.bf16.mxu0 0
        %1293 = vmatmul.mubr.bf16.gmra.mrb[0].mxu0 %v1255
        %v1294 = vpop.f32.mrb[0].mxu0
        %v1295 = vadd.f32 0.0, %v1294
        %v1296 = vpop.f32.mrb[0].mxu0
        %v1297 = vpop.f32.mrb[0].mxu0
        %v1298 = vadd.f32 0.0, %v1297
        %v1299 = vpop.f32.mrb[0].mxu0
        %1300 = vmatprep.mubr.bf16.mxu0 0
        %1301 = vmatmul.mubr.bf16.gmra.mrb[0].mxu0 %v1258
        %v1302 = vpop.f32.mrb[0].mxu0
        %v1303 = vadd.f32 0.0, %v1302
        %v1304 = vpop.f32.mrb[0].mxu0
        %v1305 = vpop.f32.mrb[0].mxu0
        %v1306 = vadd.f32 0.0, %v1305
        %v1307 = vpop.f32.mrb[0].mxu0
        %1308 = vdwg.mxu0
        %v1309 = vadd.f32 %v440, %v1295
        %v1310 = vadd.f32 %v441, %v1298
        %v1311 = vadd.f32 %v442, %v1303
        %v1312 = vadd.f32 %v443, %v1306
        %v1313 = vld [vmem:[%s7] sm:$0xf]
        %v1314 = vld [vmem:[%s7 + $0x4] sm:$0xf]
        %v1315 = vld [vmem:[%s7 + $0x8] sm:$0xf]
        %v1316 = vld [vmem:[%s7 + $0xc] sm:$0xf]
        %v1317 = vld [vmem:[%s7 + $0x10] sm:$0xf]
        %v1318 = vld [vmem:[%s7 + $0x14] sm:$0xf]
        %v1319 = vld [vmem:[%s7 + $0x18] sm:$0xf]
        %v1320 = vld [vmem:[%s7 + $0x1c] sm:$0xf]
        %v1321 = vpack.c.bf16 %v1310, %v1309
        %v1322 = vpack.c.bf16 %v1312, %v1311
        %v1323 = vld [vmem:[%s8] sm:$0xff]
        %v1324 = vld [vmem:[%s8 + $0x8] sm:$0xff]
        %v1325 = vld [vmem:[%s8 + $0x10] sm:$0xff]
        %v1326 = vld [vmem:[%s8 + $0x18] sm:$0xff]
        %v1327 = vld [vmem:[%s8 + $0x20] sm:$0xff]
        %v1328 = vld [vmem:[%s8 + $0x28] sm:$0xff]
        %v1329 = vld [vmem:[%s8 + $0x30] sm:$0xff]
        %v1330 = vld [vmem:[%s8 + $0x38] sm:$0xff]
        %1332 = vset.pattern.permute.xlu0 0
        %1333 = vperm.xlu0 %1332, %v1323
        %v1334 = vpop.permute.xlu0 %1333
        %1337 = vset.pattern.permute.xlu0 0
        %1338 = vperm.xlu0 %1337, %v1324
        %v1339 = vpop.permute.xlu0 %1338
        %1342 = vset.pattern.permute.xlu0 0
        %1343 = vperm.xlu0 %1342, %v1325
        %v1344 = vpop.permute.xlu0 %1343
        %1347 = vset.pattern.permute.xlu0 0
        %1348 = vperm.xlu0 %1347, %v1326
        %v1349 = vpop.permute.xlu0 %1348
        %1352 = vset.pattern.permute.xlu0 0
        %1353 = vperm.xlu0 %1352, %v1327
        %v1354 = vpop.permute.xlu0 %1353
        %1357 = vset.pattern.permute.xlu0 0
        %1358 = vperm.xlu0 %1357, %v1328
        %v1359 = vpop.permute.xlu0 %1358
        %1362 = vset.pattern.permute.xlu0 0
        %1363 = vperm.xlu0 %1362, %v1329
        %v1364 = vpop.permute.xlu0 %1363
        %1367 = vset.pattern.permute.xlu0 0
        %1368 = vperm.xlu0 %1367, %v1330
        %v1369 = vpop.permute.xlu0 %1368
        %v1379 = vunpack.c.l.b16 %v1313
        %v1380 = vunpack.c.l.b16 %v1314
        %v1381 = vunpack.c.l.b16 %v1315
        %v1382 = vunpack.c.l.b16 %v1316
        %v1383 = vunpack.c.l.b16 %v1317
        %v1384 = vunpack.c.l.b16 %v1318
        %v1385 = vunpack.c.l.b16 %v1319
        %v1386 = vunpack.c.l.b16 %v1320
        %v1387 = vpack.c.b16 %v1380, %v1379
        %v1388 = vpack.c.b16 %v1382, %v1381
        %v1389 = vpack.c.b16 %v1384, %v1383
        %v1390 = vpack.c.b16 %v1386, %v1385
        %v1392 = vsel %vm557, %v1387, 0
        %v1395 = vsel %vm557, %v1388, 0
        %v1398 = vsel %vm557, %v1389, 0
        %v1401 = vsel %vm557, %v1390, 0
        %1403 = vmatprep.subr.bf16.mxu0 0
        %1404 = vmatpush1.bf16.msra.mxu0 %v1321
        %1405 = vmatprep.subr.bf16.mxu0 0
        %1406 = vmatpush1.bf16.msra.mxu0 %v1322
        %1407 = vmatprep.subr.bf16.mxu0 0
        %1408 = vmatpush1.bf16.msra.mxu0 0
        %1409 = vmatprep.subr.bf16.mxu0 0
        %1410 = vmatpush1.bf16.msra.mxu0 0
        %1411 = vmatprep.subr.bf16.mxu0 0
        %1412 = vmatpush1.bf16.msra.mxu0 0
        %1413 = vmatprep.subr.bf16.mxu0 0
        %1414 = vmatpush1.bf16.msra.mxu0 0
        %1415 = vmatprep.subr.bf16.mxu0 0
        %1416 = vmatpush1.bf16.msra.mxu0 0
        %1417 = vmatprep.subr.bf16.mxu0 0
        %1418 = vmatpush1.bf16.msra.mxu0 0
        %1419 = vmatprep.subr.bf16.mxu0 0
        %1420 = vmatpush1.bf16.msra.mxu0 0
        %1421 = vmatprep.subr.bf16.mxu0 0
        %1422 = vmatpush1.bf16.msra.mxu0 0
        %1423 = vmatprep.subr.bf16.mxu0 0
        %1424 = vmatpush1.bf16.msra.mxu0 0
        %1425 = vmatprep.subr.bf16.mxu0 0
        %1426 = vmatpush1.bf16.msra.mxu0 0
        %1427 = vmatprep.subr.bf16.mxu0 0
        %1428 = vmatpush1.bf16.msra.mxu0 0
        %1429 = vmatprep.subr.bf16.mxu0 0
        %1430 = vmatpush1.bf16.msra.mxu0 0
        %1431 = vmatprep.subr.bf16.mxu0 0
        %1432 = vmatpush1.bf16.msra.mxu0 0
        %1433 = vmatprep.subr.bf16.mxu0 0
        %1434 = vmatpush1.bf16.msra.mxu0 0
        %1435 = vmatprep.mubr.bf16.mxu0 0
        %1436 = vmatmul.mubr.bf16.gmra.mrb[0].mxu0 %v1392
        %v1437 = vpop.f32.mrb[0].mxu0
        %v1438 = vadd.f32 %v1334, %v1437
        %v1439 = vpop.f32.mrb[0].mxu0
        %v1440 = vpop.f32.mrb[0].mxu0
        %v1441 = vadd.f32 %v1339, %v1440
        %v1442 = vpop.f32.mrb[0].mxu0
        %1443 = vmatprep.mubr.bf16.mxu0 0
        %1444 = vmatmul.mubr.bf16.gmra.mrb[0].mxu0 %v1395
        %v1445 = vpop.f32.mrb[0].mxu0
        %v1446 = vadd.f32 %v1344, %v1445
        %v1447 = vpop.f32.mrb[0].mxu0
        %v1448 = vpop.f32.mrb[0].mxu0
        %v1449 = vadd.f32 %v1349, %v1448
        %v1450 = vpop.f32.mrb[0].mxu0
        %1451 = vmatprep.mubr.bf16.mxu0 0
        %1452 = vmatmul.mubr.bf16.gmra.mrb[0].mxu0 %v1398
        %v1453 = vpop.f32.mrb[0].mxu0
        %v1454 = vadd.f32 %v1354, %v1453
        %v1455 = vpop.f32.mrb[0].mxu0
        %v1456 = vpop.f32.mrb[0].mxu0
        %v1457 = vadd.f32 %v1359, %v1456
        %v1458 = vpop.f32.mrb[0].mxu0
        %1459 = vmatprep.mubr.bf16.mxu0 0
        %1460 = vmatmul.mubr.bf16.gmra.mrb[0].mxu0 %v1401
        %v1461 = vpop.f32.mrb[0].mxu0
        %v1462 = vadd.f32 %v1364, %v1461
        %v1463 = vpop.f32.mrb[0].mxu0
        %v1464 = vpop.f32.mrb[0].mxu0
        %v1465 = vadd.f32 %v1369, %v1464
        %v1466 = vpop.f32.mrb[0].mxu0
        %1467 = vdwg.mxu0
        %v1468 = vmul.f32 %v1438, 0.5
        %v1469 = vmul.f32 %v1441, 0.5
        %v1470 = vmul.f32 %v1446, 0.5
        %v1471 = vmul.f32 %v1449, 0.5
        %v1472 = vmul.f32 %v1454, 0.5
        %v1473 = vmul.f32 %v1457, 0.5
        %v1474 = vmul.f32 %v1462, 0.5
        %v1475 = vmul.f32 %v1465, 0.5
        %v1476 = vmul.f32 %v1438, 0.044715
        %v1477 = vmul.f32 %v1441, 0.044715
        %v1478 = vmul.f32 %v1446, 0.044715
        %v1479 = vmul.f32 %v1449, 0.044715
        %v1480 = vmul.f32 %v1454, 0.044715
        %v1481 = vmul.f32 %v1457, 0.044715
        %v1482 = vmul.f32 %v1462, 0.044715
        %v1483 = vmul.f32 %v1465, 0.044715
        %v1484 = vmul.f32 %v1476, %v1438
        %v1485 = vmul.f32 %v1477, %v1441
        %v1486 = vmul.f32 %v1478, %v1446
        %v1487 = vmul.f32 %v1479, %v1449
        %v1488 = vmul.f32 %v1480, %v1454
        %v1489 = vmul.f32 %v1481, %v1457
        %v1490 = vmul.f32 %v1482, %v1462
        %v1491 = vmul.f32 %v1483, %v1465
        %v1492 = vmul.f32 %v1484, %v1438
        %v1493 = vmul.f32 %v1485, %v1441
        %v1494 = vmul.f32 %v1486, %v1446
        %v1495 = vmul.f32 %v1487, %v1449
        %v1496 = vmul.f32 %v1488, %v1454
        %v1497 = vmul.f32 %v1489, %v1457
        %v1498 = vmul.f32 %v1490, %v1462
        %v1499 = vmul.f32 %v1491, %v1465
        %v1500 = vadd.f32 %v1438, %v1492
        %v1501 = vadd.f32 %v1441, %v1493
        %v1502 = vadd.f32 %v1446, %v1494
        %v1503 = vadd.f32 %v1449, %v1495
        %v1504 = vadd.f32 %v1454, %v1496
        %v1505 = vadd.f32 %v1457, %v1497
        %v1506 = vadd.f32 %v1462, %v1498
        %v1507 = vadd.f32 %v1465, %v1499
        %v1508 = vmul.f32 %v1500, 0.7978846
        %v1509 = vmul.f32 %v1501, 0.7978846
        %v1510 = vmul.f32 %v1502, 0.7978846
        %v1511 = vmul.f32 %v1503, 0.7978846
        %v1512 = vmul.f32 %v1504, 0.7978846
        %v1513 = vmul.f32 %v1505, 0.7978846
        %v1514 = vmul.f32 %v1506, 0.7978846
        %v1515 = vmul.f32 %v1507, 0.7978846
        %v1516 = vtanh.pop %v1508
        %v1517 = vtanh.pop %v1509
        %v1518 = vtanh.pop %v1510
        %v1519 = vtanh.pop %v1511
        %v1520 = vtanh.pop %v1512
        %v1521 = vtanh.pop %v1513
        %v1522 = vtanh.pop %v1514
        %v1523 = vtanh.pop %v1515
        %v1524 = vadd.f32 %v1516, 1.0
        %v1525 = vadd.f32 %v1517, 1.0
        %v1526 = vadd.f32 %v1518, 1.0
        %v1527 = vadd.f32 %v1519, 1.0
        %v1528 = vadd.f32 %v1520, 1.0
        %v1529 = vadd.f32 %v1521, 1.0
        %v1530 = vadd.f32 %v1522, 1.0
        %v1531 = vadd.f32 %v1523, 1.0
        %v1532 = vmul.f32 %v1468, %v1524
        %v1533 = vmul.f32 %v1469, %v1525
        %v1534 = vmul.f32 %v1470, %v1526
        %v1535 = vmul.f32 %v1471, %v1527
        %v1536 = vmul.f32 %v1472, %v1528
        %v1537 = vmul.f32 %v1473, %v1529
        %v1538 = vmul.f32 %v1474, %v1530
        %v1539 = vmul.f32 %v1475, %v1531
        %v1540 = vld [vmem:[%s9] sm:$0xff]
        %v1541 = vld [vmem:[%s9 + $0x8] sm:$0xff]
        %v1542 = vld [vmem:[%s9 + $0x10] sm:$0xff]
        %v1543 = vld [vmem:[%s9 + $0x18] sm:$0xff]
        %v1544 = vld [vmem:[%s9 + $0x20] sm:$0xff]
        %v1545 = vld [vmem:[%s9 + $0x28] sm:$0xff]
        %v1546 = vld [vmem:[%s9 + $0x30] sm:$0xff]
        %v1547 = vld [vmem:[%s9 + $0x38] sm:$0xff]
        %1549 = vset.pattern.permute.xlu0 4
        %1550 = vperm.xlu0 %1549, %v1540
        %v1551 = vpop.permute.xlu0 %1550
        %1554 = vset.pattern.permute.xlu0 4
        %1555 = vperm.xlu0 %1554, %v1541
        %v1556 = vpop.permute.xlu0 %1555
        %1559 = vset.pattern.permute.xlu0 4
        %1560 = vperm.xlu0 %1559, %v1542
        %v1561 = vpop.permute.xlu0 %1560
        %1564 = vset.pattern.permute.xlu0 4
        %1565 = vperm.xlu0 %1564, %v1543
        %v1566 = vpop.permute.xlu0 %1565
        %1569 = vset.pattern.permute.xlu0 4
        %1570 = vperm.xlu0 %1569, %v1544
        %v1571 = vpop.permute.xlu0 %1570
        %1574 = vset.pattern.permute.xlu0 4
        %1575 = vperm.xlu0 %1574, %v1545
        %v1576 = vpop.permute.xlu0 %1575
        %1579 = vset.pattern.permute.xlu0 4
        %1580 = vperm.xlu0 %1579, %v1546
        %v1581 = vpop.permute.xlu0 %1580
        %1584 = vset.pattern.permute.xlu0 4
        %1585 = vperm.xlu0 %1584, %v1547
        %v1586 = vpop.permute.xlu0 %1585
        %v1588 = vmul.f32 %v1532, %v1551
        %v1589 = vmul.f32 %v1533, %v1556
        %v1590 = vmul.f32 %v1534, %v1561
        %v1591 = vmul.f32 %v1535, %v1566
        %v1592 = vmul.f32 %v1536, %v1571
        %v1593 = vmul.f32 %v1537, %v1576
        %v1594 = vmul.f32 %v1538, %v1581
        %v1595 = vmul.f32 %v1539, %v1586
        %1596 = vrot.lane.b32.xlu0 %v1532, 17
        %v1597 = vpop.permute.xlu0 %1596
        %1598 = vrot.lane.b32.xlu0 %v1533, 17
        %v1599 = vpop.permute.xlu0 %1598
        %1600 = vrot.lane.b32.xlu0 %v1534, 17
        %v1601 = vpop.permute.xlu0 %1600
        %1602 = vrot.lane.b32.xlu0 %v1535, 17
        %v1603 = vpop.permute.xlu0 %1602
        %1604 = vrot.lane.b32.xlu0 %v1536, 17
        %v1605 = vpop.permute.xlu0 %1604
        %1606 = vrot.lane.b32.xlu0 %v1537, 17
        %v1607 = vpop.permute.xlu0 %1606
        %1608 = vrot.lane.b32.xlu0 %v1538, 17
        %v1609 = vpop.permute.xlu0 %1608
        %1610 = vrot.lane.b32.xlu0 %v1539, 17
        %v1611 = vpop.permute.xlu0 %1610
        %v1612 = vld [vmem:[%s10] sm:$0x1]
        %v1613 = vlaneseq
        %v1614 = vshrl.u32 %v1613, 7
        %v1615 = vsub.s32 0, %v1614
        %v1616 = vrot.slane %v1612, %v1615
        %v1617 = vmul.f32 %v1597, %v1616
        %v1618 = vmul.f32 %v1599, %v1616
        %v1619 = vmul.f32 %v1601, %v1616
        %v1620 = vmul.f32 %v1603, %v1616
        %v1621 = vmul.f32 %v1605, %v1616
        %v1622 = vmul.f32 %v1607, %v1616
        %v1623 = vmul.f32 %v1609, %v1616
        %v1624 = vmul.f32 %v1611, %v1616
        %1625 = vset.pattern.permute.xlu0 0
        %1626 = vperm.xlu0 %1625, %v1540
        %v1627 = vpop.permute.xlu0 %1626
        %1629 = vset.pattern.permute.xlu0 0
        %1630 = vperm.xlu0 %1629, %v1541
        %v1631 = vpop.permute.xlu0 %1630
        %1633 = vset.pattern.permute.xlu0 0
        %1634 = vperm.xlu0 %1633, %v1542
        %v1635 = vpop.permute.xlu0 %1634
        %1637 = vset.pattern.permute.xlu0 0
        %1638 = vperm.xlu0 %1637, %v1543
        %v1639 = vpop.permute.xlu0 %1638
        %1641 = vset.pattern.permute.xlu0 0
        %1642 = vperm.xlu0 %1641, %v1544
        %v1643 = vpop.permute.xlu0 %1642
        %1645 = vset.pattern.permute.xlu0 0
        %1646 = vperm.xlu0 %1645, %v1545
        %v1647 = vpop.permute.xlu0 %1646
        %1649 = vset.pattern.permute.xlu0 0
        %1650 = vperm.xlu0 %1649, %v1546
        %v1651 = vpop.permute.xlu0 %1650
        %1653 = vset.pattern.permute.xlu0 0
        %1654 = vperm.xlu0 %1653, %v1547
        %v1655 = vpop.permute.xlu0 %1654
        %v1657 = vmul.f32 %v1617, %v1627
        %v1658 = vmul.f32 %v1618, %v1631
        %v1659 = vmul.f32 %v1619, %v1635
        %v1660 = vmul.f32 %v1620, %v1639
        %v1661 = vmul.f32 %v1621, %v1643
        %v1662 = vmul.f32 %v1622, %v1647
        %v1663 = vmul.f32 %v1623, %v1651
        %v1664 = vmul.f32 %v1624, %v1655
        %v1665 = vadd.f32 %v1588, %v1657
        %v1666 = vadd.f32 %v1589, %v1658
        %v1667 = vadd.f32 %v1590, %v1659
        %v1668 = vadd.f32 %v1591, %v1660
        %v1669 = vadd.f32 %v1592, %v1661
        %v1670 = vadd.f32 %v1593, %v1662
        %v1671 = vadd.f32 %v1594, %v1663
        %v1672 = vadd.f32 %v1595, %v1664
        %1673 = vrot.lane.b32.xlu0 %v1532, 16
        %v1674 = vpop.permute.xlu0 %1673
        %1675 = vrot.lane.b32.xlu0 %v1533, 16
        %v1676 = vpop.permute.xlu0 %1675
        %1677 = vrot.lane.b32.xlu0 %v1534, 16
        %v1678 = vpop.permute.xlu0 %1677
        %1679 = vrot.lane.b32.xlu0 %v1535, 16
        %v1680 = vpop.permute.xlu0 %1679
        %1681 = vrot.lane.b32.xlu0 %v1536, 16
        %v1682 = vpop.permute.xlu0 %1681
        %1683 = vrot.lane.b32.xlu0 %v1537, 16
        %v1684 = vpop.permute.xlu0 %1683
        %1685 = vrot.lane.b32.xlu0 %v1538, 16
        %v1686 = vpop.permute.xlu0 %1685
        %1687 = vrot.lane.b32.xlu0 %v1539, 16
        %v1688 = vpop.permute.xlu0 %1687
        %v1689 = vld [vmem:[%s10 + $0x1] sm:$0x1]
        %v1690 = vlaneseq
        %v1691 = vshrl.u32 %v1690, 7
        %v1692 = vsub.s32 0, %v1691
        %v1693 = vrot.slane %v1689, %v1692
        %v1694 = vmul.f32 %v1674, %v1693
        %v1695 = vmul.f32 %v1676, %v1693
        %v1696 = vmul.f32 %v1678, %v1693
        %v1697 = vmul.f32 %v1680, %v1693
        %v1698 = vmul.f32 %v1682, %v1693
        %v1699 = vmul.f32 %v1684, %v1693
        %v1700 = vmul.f32 %v1686, %v1693
        %v1701 = vmul.f32 %v1688, %v1693
        %1702 = vset.pattern.permute.xlu0 1
        %1703 = vperm.xlu0 %1702, %v1540
        %v1704 = vpop.permute.xlu0 %1703
        %1706 = vset.pattern.permute.xlu0 1
        %1707 = vperm.xlu0 %1706, %v1541
        %v1708 = vpop.permute.xlu0 %1707
        %1710 = vset.pattern.permute.xlu0 1
        %1711 = vperm.xlu0 %1710, %v1542
        %v1712 = vpop.permute.xlu0 %1711
        %1714 = vset.pattern.permute.xlu0 1
        %1715 = vperm.xlu0 %1714, %v1543
        %v1716 = vpop.permute.xlu0 %1715
        %1718 = vset.pattern.permute.xlu0 1
        %1719 = vperm.xlu0 %1718, %v1544
        %v1720 = vpop.permute.xlu0 %1719
        %1722 = vset.pattern.permute.xlu0 1
        %1723 = vperm.xlu0 %1722, %v1545
        %v1724 = vpop.permute.xlu0 %1723
        %1726 = vset.pattern.permute.xlu0 1
        %1727 = vperm.xlu0 %1726, %v1546
        %v1728 = vpop.permute.xlu0 %1727
        %1730 = vset.pattern.permute.xlu0 1
        %1731 = vperm.xlu0 %1730, %v1547
        %v1732 = vpop.permute.xlu0 %1731
        %v1734 = vmul.f32 %v1694, %v1704
        %v1735 = vmul.f32 %v1695, %v1708
        %v1736 = vmul.f32 %v1696, %v1712
        %v1737 = vmul.f32 %v1697, %v1716
        %v1738 = vmul.f32 %v1698, %v1720
        %v1739 = vmul.f32 %v1699, %v1724
        %v1740 = vmul.f32 %v1700, %v1728
        %v1741 = vmul.f32 %v1701, %v1732
        %v1742 = vadd.f32 %v1665, %v1734
        %v1743 = vadd.f32 %v1666, %v1735
        %v1744 = vadd.f32 %v1667, %v1736
        %v1745 = vadd.f32 %v1668, %v1737
        %v1746 = vadd.f32 %v1669, %v1738
        %v1747 = vadd.f32 %v1670, %v1739
        %v1748 = vadd.f32 %v1671, %v1740
        %v1749 = vadd.f32 %v1672, %v1741
        %1750 = vrot.lane.b32.xlu0 %v1532, 15
        %v1751 = vpop.permute.xlu0 %1750
        %1752 = vrot.lane.b32.xlu0 %v1533, 15
        %v1753 = vpop.permute.xlu0 %1752
        %1754 = vrot.lane.b32.xlu0 %v1534, 15
        %v1755 = vpop.permute.xlu0 %1754
        %1756 = vrot.lane.b32.xlu0 %v1535, 15
        %v1757 = vpop.permute.xlu0 %1756
        %1758 = vrot.lane.b32.xlu0 %v1536, 15
        %v1759 = vpop.permute.xlu0 %1758
        %1760 = vrot.lane.b32.xlu0 %v1537, 15
        %v1761 = vpop.permute.xlu0 %1760
        %1762 = vrot.lane.b32.xlu0 %v1538, 15
        %v1763 = vpop.permute.xlu0 %1762
        %1764 = vrot.lane.b32.xlu0 %v1539, 15
        %v1765 = vpop.permute.xlu0 %1764
        %v1766 = vld [vmem:[%s10 + $0x2] sm:$0x1]
        %v1767 = vlaneseq
        %v1768 = vshrl.u32 %v1767, 7
        %v1769 = vsub.s32 0, %v1768
        %v1770 = vrot.slane %v1766, %v1769
        %v1771 = vmul.f32 %v1751, %v1770
        %v1772 = vmul.f32 %v1753, %v1770
        %v1773 = vmul.f32 %v1755, %v1770
        %v1774 = vmul.f32 %v1757, %v1770
        %v1775 = vmul.f32 %v1759, %v1770
        %v1776 = vmul.f32 %v1761, %v1770
        %v1777 = vmul.f32 %v1763, %v1770
        %v1778 = vmul.f32 %v1765, %v1770
        %1779 = vset.pattern.permute.xlu0 2
        %1780 = vperm.xlu0 %1779, %v1540
        %v1781 = vpop.permute.xlu0 %1780
        %1783 = vset.pattern.permute.xlu0 2
        %1784 = vperm.xlu0 %1783, %v1541
        %v1785 = vpop.permute.xlu0 %1784
        %1787 = vset.pattern.permute.xlu0 2
        %1788 = vperm.xlu0 %1787, %v1542
        %v1789 = vpop.permute.xlu0 %1788
        %1791 = vset.pattern.permute.xlu0 2
        %1792 = vperm.xlu0 %1791, %v1543
        %v1793 = vpop.permute.xlu0 %1792
        %1795 = vset.pattern.permute.xlu0 2
        %1796 = vperm.xlu0 %1795, %v1544
        %v1797 = vpop.permute.xlu0 %1796
        %1799 = vset.pattern.permute.xlu0 2
        %1800 = vperm.xlu0 %1799, %v1545
        %v1801 = vpop.permute.xlu0 %1800
        %1803 = vset.pattern.permute.xlu0 2
        %1804 = vperm.xlu0 %1803, %v1546
        %v1805 = vpop.permute.xlu0 %1804
        %1807 = vset.pattern.permute.xlu0 2
        %1808 = vperm.xlu0 %1807, %v1547
        %v1809 = vpop.permute.xlu0 %1808
        %v1811 = vmul.f32 %v1771, %v1781
        %v1812 = vmul.f32 %v1772, %v1785
        %v1813 = vmul.f32 %v1773, %v1789
        %v1814 = vmul.f32 %v1774, %v1793
        %v1815 = vmul.f32 %v1775, %v1797
        %v1816 = vmul.f32 %v1776, %v1801
        %v1817 = vmul.f32 %v1777, %v1805
        %v1818 = vmul.f32 %v1778, %v1809
        %v1819 = vadd.f32 %v1742, %v1811
        %v1820 = vadd.f32 %v1743, %v1812
        %v1821 = vadd.f32 %v1744, %v1813
        %v1822 = vadd.f32 %v1745, %v1814
        %v1823 = vadd.f32 %v1746, %v1815
        %v1824 = vadd.f32 %v1747, %v1816
        %v1825 = vadd.f32 %v1748, %v1817
        %v1826 = vadd.f32 %v1749, %v1818
        %1827 = vrot.lane.b32.xlu0 %v1532, 1
        %v1828 = vpop.permute.xlu0 %1827
        %1829 = vrot.lane.b32.xlu0 %v1533, 1
        %v1830 = vpop.permute.xlu0 %1829
        %1831 = vrot.lane.b32.xlu0 %v1534, 1
        %v1832 = vpop.permute.xlu0 %1831
        %1833 = vrot.lane.b32.xlu0 %v1535, 1
        %v1834 = vpop.permute.xlu0 %1833
        %1835 = vrot.lane.b32.xlu0 %v1536, 1
        %v1836 = vpop.permute.xlu0 %1835
        %1837 = vrot.lane.b32.xlu0 %v1537, 1
        %v1838 = vpop.permute.xlu0 %1837
        %1839 = vrot.lane.b32.xlu0 %v1538, 1
        %v1840 = vpop.permute.xlu0 %1839
        %1841 = vrot.lane.b32.xlu0 %v1539, 1
        %v1842 = vpop.permute.xlu0 %1841
        %v1843 = vld [vmem:[%s10 + $0x3] sm:$0x1]
        %v1844 = vlaneseq
        %v1845 = vshrl.u32 %v1844, 7
        %v1846 = vsub.s32 0, %v1845
        %v1847 = vrot.slane %v1843, %v1846
        %v1848 = vmul.f32 %v1828, %v1847
        %v1849 = vmul.f32 %v1830, %v1847
        %v1850 = vmul.f32 %v1832, %v1847
        %v1851 = vmul.f32 %v1834, %v1847
        %v1852 = vmul.f32 %v1836, %v1847
        %v1853 = vmul.f32 %v1838, %v1847
        %v1854 = vmul.f32 %v1840, %v1847
        %v1855 = vmul.f32 %v1842, %v1847
        %1856 = vset.pattern.permute.xlu0 3
        %1857 = vperm.xlu0 %1856, %v1540
        %v1858 = vpop.permute.xlu0 %1857
        %1860 = vset.pattern.permute.xlu0 3
        %1861 = vperm.xlu0 %1860, %v1541
        %v1862 = vpop.permute.xlu0 %1861
        %1864 = vset.pattern.permute.xlu0 3
        %1865 = vperm.xlu0 %1864, %v1542
        %v1866 = vpop.permute.xlu0 %1865
        %1868 = vset.pattern.permute.xlu0 3
        %1869 = vperm.xlu0 %1868, %v1543
        %v1870 = vpop.permute.xlu0 %1869
        %1872 = vset.pattern.permute.xlu0 3
        %1873 = vperm.xlu0 %1872, %v1544
        %v1874 = vpop.permute.xlu0 %1873
        %1876 = vset.pattern.permute.xlu0 3
        %1877 = vperm.xlu0 %1876, %v1545
        %v1878 = vpop.permute.xlu0 %1877
        %1880 = vset.pattern.permute.xlu0 3
        %1881 = vperm.xlu0 %1880, %v1546
        %v1882 = vpop.permute.xlu0 %1881
        %1884 = vset.pattern.permute.xlu0 3
        %1885 = vperm.xlu0 %1884, %v1547
        %v1886 = vpop.permute.xlu0 %1885
        %v1888 = vmul.f32 %v1848, %v1858
        %v1889 = vmul.f32 %v1849, %v1862
        %v1890 = vmul.f32 %v1850, %v1866
        %v1891 = vmul.f32 %v1851, %v1870
        %v1892 = vmul.f32 %v1852, %v1874
        %v1893 = vmul.f32 %v1853, %v1878
        %v1894 = vmul.f32 %v1854, %v1882
        %v1895 = vmul.f32 %v1855, %v1886
        %v1896 = vadd.f32 %v1819, %v1888
        %v1897 = vadd.f32 %v1820, %v1889
        %v1898 = vadd.f32 %v1821, %v1890
        %v1899 = vadd.f32 %v1822, %v1891
        %v1900 = vadd.f32 %v1823, %v1892
        %v1901 = vadd.f32 %v1824, %v1893
        %v1902 = vadd.f32 %v1825, %v1894
        %v1903 = vadd.f32 %v1826, %v1895
        %1904 = vrot.lane.b32.xlu0 %v1532, 127
        %v1905 = vpop.permute.xlu0 %1904
        %1906 = vrot.lane.b32.xlu0 %v1533, 127
        %v1907 = vpop.permute.xlu0 %1906
        %1908 = vrot.lane.b32.xlu0 %v1534, 127
        %v1909 = vpop.permute.xlu0 %1908
        %1910 = vrot.lane.b32.xlu0 %v1535, 127
        %v1911 = vpop.permute.xlu0 %1910
        %1912 = vrot.lane.b32.xlu0 %v1536, 127
        %v1913 = vpop.permute.xlu0 %1912
        %1914 = vrot.lane.b32.xlu0 %v1537, 127
        %v1915 = vpop.permute.xlu0 %1914
        %1916 = vrot.lane.b32.xlu0 %v1538, 127
        %v1917 = vpop.permute.xlu0 %1916
        %1918 = vrot.lane.b32.xlu0 %v1539, 127
        %v1919 = vpop.permute.xlu0 %1918
        %v1920 = vld [vmem:[%s10 + $0x5] sm:$0x1]
        %v1921 = vlaneseq
        %v1922 = vshrl.u32 %v1921, 7
        %v1923 = vsub.s32 0, %v1922
        %v1924 = vrot.slane %v1920, %v1923
        %v1925 = vmul.f32 %v1905, %v1924
        %v1926 = vmul.f32 %v1907, %v1924
        %v1927 = vmul.f32 %v1909, %v1924
        %v1928 = vmul.f32 %v1911, %v1924
        %v1929 = vmul.f32 %v1913, %v1924
        %v1930 = vmul.f32 %v1915, %v1924
        %v1931 = vmul.f32 %v1917, %v1924
        %v1932 = vmul.f32 %v1919, %v1924
        %1933 = vset.pattern.permute.xlu0 5
        %1934 = vperm.xlu0 %1933, %v1540
        %v1935 = vpop.permute.xlu0 %1934
        %1937 = vset.pattern.permute.xlu0 5
        %1938 = vperm.xlu0 %1937, %v1541
        %v1939 = vpop.permute.xlu0 %1938
        %1941 = vset.pattern.permute.xlu0 5
        %1942 = vperm.xlu0 %1941, %v1542
        %v1943 = vpop.permute.xlu0 %1942
        %1945 = vset.pattern.permute.xlu0 5
        %1946 = vperm.xlu0 %1945, %v1543
        %v1947 = vpop.permute.xlu0 %1946
        %1949 = vset.pattern.permute.xlu0 5
        %1950 = vperm.xlu0 %1949, %v1544
        %v1951 = vpop.permute.xlu0 %1950
        %1953 = vset.pattern.permute.xlu0 5
        %1954 = vperm.xlu0 %1953, %v1545
        %v1955 = vpop.permute.xlu0 %1954
        %1957 = vset.pattern.permute.xlu0 5
        %1958 = vperm.xlu0 %1957, %v1546
        %v1959 = vpop.permute.xlu0 %1958
        %1961 = vset.pattern.permute.xlu0 5
        %1962 = vperm.xlu0 %1961, %v1547
        %v1963 = vpop.permute.xlu0 %1962
        %v1965 = vmul.f32 %v1925, %v1935
        %v1966 = vmul.f32 %v1926, %v1939
        %v1967 = vmul.f32 %v1927, %v1943
        %v1968 = vmul.f32 %v1928, %v1947
        %v1969 = vmul.f32 %v1929, %v1951
        %v1970 = vmul.f32 %v1930, %v1955
        %v1971 = vmul.f32 %v1931, %v1959
        %v1972 = vmul.f32 %v1932, %v1963
        %v1973 = vadd.f32 %v1896, %v1965
        %v1974 = vadd.f32 %v1897, %v1966
        %v1975 = vadd.f32 %v1898, %v1967
        %v1976 = vadd.f32 %v1899, %v1968
        %v1977 = vadd.f32 %v1900, %v1969
        %v1978 = vadd.f32 %v1901, %v1970
        %v1979 = vadd.f32 %v1902, %v1971
        %v1980 = vadd.f32 %v1903, %v1972
        %1981 = vrot.lane.b32.xlu0 %v1532, 113
        %v1982 = vpop.permute.xlu0 %1981
        %1983 = vrot.lane.b32.xlu0 %v1533, 113
        %v1984 = vpop.permute.xlu0 %1983
        %1985 = vrot.lane.b32.xlu0 %v1534, 113
        %v1986 = vpop.permute.xlu0 %1985
        %1987 = vrot.lane.b32.xlu0 %v1535, 113
        %v1988 = vpop.permute.xlu0 %1987
        %1989 = vrot.lane.b32.xlu0 %v1536, 113
        %v1990 = vpop.permute.xlu0 %1989
        %1991 = vrot.lane.b32.xlu0 %v1537, 113
        %v1992 = vpop.permute.xlu0 %1991
        %1993 = vrot.lane.b32.xlu0 %v1538, 113
        %v1994 = vpop.permute.xlu0 %1993
        %1995 = vrot.lane.b32.xlu0 %v1539, 113
        %v1996 = vpop.permute.xlu0 %1995
        %v1997 = vld [vmem:[%s10 + $0x6] sm:$0x1]
        %v1998 = vlaneseq
        %v1999 = vshrl.u32 %v1998, 7
        %v2000 = vsub.s32 0, %v1999
        %v2001 = vrot.slane %v1997, %v2000
        %v2002 = vmul.f32 %v1982, %v2001
        %v2003 = vmul.f32 %v1984, %v2001
        %v2004 = vmul.f32 %v1986, %v2001
        %v2005 = vmul.f32 %v1988, %v2001
        %v2006 = vmul.f32 %v1990, %v2001
        %v2007 = vmul.f32 %v1992, %v2001
        %v2008 = vmul.f32 %v1994, %v2001
        %v2009 = vmul.f32 %v1996, %v2001
        %2010 = vset.pattern.permute.xlu0 6
        %2011 = vperm.xlu0 %2010, %v1540
        %v2012 = vpop.permute.xlu0 %2011
        %2014 = vset.pattern.permute.xlu0 6
        %2015 = vperm.xlu0 %2014, %v1541
        %v2016 = vpop.permute.xlu0 %2015
        %2018 = vset.pattern.permute.xlu0 6
        %2019 = vperm.xlu0 %2018, %v1542
        %v2020 = vpop.permute.xlu0 %2019
        %2022 = vset.pattern.permute.xlu0 6
        %2023 = vperm.xlu0 %2022, %v1543
        %v2024 = vpop.permute.xlu0 %2023
        %2026 = vset.pattern.permute.xlu0 6
        %2027 = vperm.xlu0 %2026, %v1544
        %v2028 = vpop.permute.xlu0 %2027
        %2030 = vset.pattern.permute.xlu0 6
        %2031 = vperm.xlu0 %2030, %v1545
        %v2032 = vpop.permute.xlu0 %2031
        %2034 = vset.pattern.permute.xlu0 6
        %2035 = vperm.xlu0 %2034, %v1546
        %v2036 = vpop.permute.xlu0 %2035
        %2038 = vset.pattern.permute.xlu0 6
        %2039 = vperm.xlu0 %2038, %v1547
        %v2040 = vpop.permute.xlu0 %2039
        %v2042 = vmul.f32 %v2002, %v2012
        %v2043 = vmul.f32 %v2003, %v2016
        %v2044 = vmul.f32 %v2004, %v2020
        %v2045 = vmul.f32 %v2005, %v2024
        %v2046 = vmul.f32 %v2006, %v2028
        %v2047 = vmul.f32 %v2007, %v2032
        %v2048 = vmul.f32 %v2008, %v2036
        %v2049 = vmul.f32 %v2009, %v2040
        %v2050 = vadd.f32 %v1973, %v2042
        %v2051 = vadd.f32 %v1974, %v2043
        %v2052 = vadd.f32 %v1975, %v2044
        %v2053 = vadd.f32 %v1976, %v2045
        %v2054 = vadd.f32 %v1977, %v2046
        %v2055 = vadd.f32 %v1978, %v2047
        %v2056 = vadd.f32 %v1979, %v2048
        %v2057 = vadd.f32 %v1980, %v2049
        %2058 = vrot.lane.b32.xlu0 %v1532, 112
        %v2059 = vpop.permute.xlu0 %2058
        %2060 = vrot.lane.b32.xlu0 %v1533, 112
        %v2061 = vpop.permute.xlu0 %2060
        %2062 = vrot.lane.b32.xlu0 %v1534, 112
        %v2063 = vpop.permute.xlu0 %2062
        %2064 = vrot.lane.b32.xlu0 %v1535, 112
        %v2065 = vpop.permute.xlu0 %2064
        %2066 = vrot.lane.b32.xlu0 %v1536, 112
        %v2067 = vpop.permute.xlu0 %2066
        %2068 = vrot.lane.b32.xlu0 %v1537, 112
        %v2069 = vpop.permute.xlu0 %2068
        %2070 = vrot.lane.b32.xlu0 %v1538, 112
        %v2071 = vpop.permute.xlu0 %2070
        %2072 = vrot.lane.b32.xlu0 %v1539, 112
        %v2073 = vpop.permute.xlu0 %2072
        %v2074 = vld [vmem:[%s10 + $0x7] sm:$0x1]
        %v2075 = vlaneseq
        %v2076 = vshrl.u32 %v2075, 7
        %v2077 = vsub.s32 0, %v2076
        %v2078 = vrot.slane %v2074, %v2077
        %v2079 = vmul.f32 %v2059, %v2078
        %v2080 = vmul.f32 %v2061, %v2078
        %v2081 = vmul.f32 %v2063, %v2078
        %v2082 = vmul.f32 %v2065, %v2078
        %v2083 = vmul.f32 %v2067, %v2078
        %v2084 = vmul.f32 %v2069, %v2078
        %v2085 = vmul.f32 %v2071, %v2078
        %v2086 = vmul.f32 %v2073, %v2078
        %2087 = vset.pattern.permute.xlu0 7
        %2088 = vperm.xlu0 %2087, %v1540
        %v2089 = vpop.permute.xlu0 %2088
        %2091 = vset.pattern.permute.xlu0 7
        %2092 = vperm.xlu0 %2091, %v1541
        %v2093 = vpop.permute.xlu0 %2092
        %2095 = vset.pattern.permute.xlu0 7
        %2096 = vperm.xlu0 %2095, %v1542
        %v2097 = vpop.permute.xlu0 %2096
        %2099 = vset.pattern.permute.xlu0 7
        %2100 = vperm.xlu0 %2099, %v1543
        %v2101 = vpop.permute.xlu0 %2100
        %2103 = vset.pattern.permute.xlu0 7
        %2104 = vperm.xlu0 %2103, %v1544
        %v2105 = vpop.permute.xlu0 %2104
        %2107 = vset.pattern.permute.xlu0 7
        %2108 = vperm.xlu0 %2107, %v1545
        %v2109 = vpop.permute.xlu0 %2108
        %2111 = vset.pattern.permute.xlu0 7
        %2112 = vperm.xlu0 %2111, %v1546
        %v2113 = vpop.permute.xlu0 %2112
        %2115 = vset.pattern.permute.xlu0 7
        %2116 = vperm.xlu0 %2115, %v1547
        %v2117 = vpop.permute.xlu0 %2116
        %v2119 = vmul.f32 %v2079, %v2089
        %v2120 = vmul.f32 %v2080, %v2093
        %v2121 = vmul.f32 %v2081, %v2097
        %v2122 = vmul.f32 %v2082, %v2101
        %v2123 = vmul.f32 %v2083, %v2105
        %v2124 = vmul.f32 %v2084, %v2109
        %v2125 = vmul.f32 %v2085, %v2113
        %v2126 = vmul.f32 %v2086, %v2117
        %v2127 = vadd.f32 %v2050, %v2119
        %v2128 = vadd.f32 %v2051, %v2120
        %v2129 = vadd.f32 %v2052, %v2121
        %v2130 = vadd.f32 %v2053, %v2122
        %v2131 = vadd.f32 %v2054, %v2123
        %v2132 = vadd.f32 %v2055, %v2124
        %v2133 = vadd.f32 %v2056, %v2125
        %v2134 = vadd.f32 %v2057, %v2126
        %2135 = vrot.lane.b32.xlu0 %v1532, 111
        %v2136 = vpop.permute.xlu0 %2135
        %2137 = vrot.lane.b32.xlu0 %v1533, 111
        %v2138 = vpop.permute.xlu0 %2137
        %2139 = vrot.lane.b32.xlu0 %v1534, 111
        %v2140 = vpop.permute.xlu0 %2139
        %2141 = vrot.lane.b32.xlu0 %v1535, 111
        %v2142 = vpop.permute.xlu0 %2141
        %2143 = vrot.lane.b32.xlu0 %v1536, 111
        %v2144 = vpop.permute.xlu0 %2143
        %2145 = vrot.lane.b32.xlu0 %v1537, 111
        %v2146 = vpop.permute.xlu0 %2145
        %2147 = vrot.lane.b32.xlu0 %v1538, 111
        %v2148 = vpop.permute.xlu0 %2147
        %2149 = vrot.lane.b32.xlu0 %v1539, 111
        %v2150 = vpop.permute.xlu0 %2149
        %v2151 = vld [vmem:[%s10 + $0x8] sm:$0x1]
        %v2152 = vlaneseq
        %v2153 = vshrl.u32 %v2152, 7
        %v2154 = vsub.s32 0, %v2153
        %v2155 = vrot.slane %v2151, %v2154
        %v2156 = vmul.f32 %v2136, %v2155
        %v2157 = vmul.f32 %v2138, %v2155
        %v2158 = vmul.f32 %v2140, %v2155
        %v2159 = vmul.f32 %v2142, %v2155
        %v2160 = vmul.f32 %v2144, %v2155
        %v2161 = vmul.f32 %v2146, %v2155
        %v2162 = vmul.f32 %v2148, %v2155
        %v2163 = vmul.f32 %v2150, %v2155
        %2164 = vset.pattern.permute.xlu0 8
        %2165 = vperm.xlu0 %2164, %v1540
        %v2166 = vpop.permute.xlu0 %2165
        %2168 = vset.pattern.permute.xlu0 8
        %2169 = vperm.xlu0 %2168, %v1541
        %v2170 = vpop.permute.xlu0 %2169
        %2172 = vset.pattern.permute.xlu0 8
        %2173 = vperm.xlu0 %2172, %v1542
        %v2174 = vpop.permute.xlu0 %2173
        %2176 = vset.pattern.permute.xlu0 8
        %2177 = vperm.xlu0 %2176, %v1543
        %v2178 = vpop.permute.xlu0 %2177
        %2180 = vset.pattern.permute.xlu0 8
        %2181 = vperm.xlu0 %2180, %v1544
        %v2182 = vpop.permute.xlu0 %2181
        %2184 = vset.pattern.permute.xlu0 8
        %2185 = vperm.xlu0 %2184, %v1545
        %v2186 = vpop.permute.xlu0 %2185
        %2188 = vset.pattern.permute.xlu0 8
        %2189 = vperm.xlu0 %2188, %v1546
        %v2190 = vpop.permute.xlu0 %2189
        %2192 = vset.pattern.permute.xlu0 8
        %2193 = vperm.xlu0 %2192, %v1547
        %v2194 = vpop.permute.xlu0 %2193
        %v2196 = vmul.f32 %v2156, %v2166
        %v2197 = vmul.f32 %v2157, %v2170
        %v2198 = vmul.f32 %v2158, %v2174
        %v2199 = vmul.f32 %v2159, %v2178
        %v2200 = vmul.f32 %v2160, %v2182
        %v2201 = vmul.f32 %v2161, %v2186
        %v2202 = vmul.f32 %v2162, %v2190
        %v2203 = vmul.f32 %v2163, %v2194
        %v2204 = vadd.f32 %v2127, %v2196
        %v2205 = vadd.f32 %v2128, %v2197
        %v2206 = vadd.f32 %v2129, %v2198
        %v2207 = vadd.f32 %v2130, %v2199
        %v2208 = vadd.f32 %v2131, %v2200
        %v2209 = vadd.f32 %v2132, %v2201
        %v2210 = vadd.f32 %v2133, %v2202
        %v2211 = vadd.f32 %v2134, %v2203
        %2212 = vset.pattern.permute.xlu0 1
        %2213 = vperm.xlu0 %2212, %v1323
        %v2214 = vpop.permute.xlu0 %2213
        %2216 = vset.pattern.permute.xlu0 1
        %2217 = vperm.xlu0 %2216, %v1324
        %v2218 = vpop.permute.xlu0 %2217
        %2220 = vset.pattern.permute.xlu0 1
        %2221 = vperm.xlu0 %2220, %v1325
        %v2222 = vpop.permute.xlu0 %2221
        %2224 = vset.pattern.permute.xlu0 1
        %2225 = vperm.xlu0 %2224, %v1326
        %v2226 = vpop.permute.xlu0 %2225
        %2228 = vset.pattern.permute.xlu0 1
        %2229 = vperm.xlu0 %2228, %v1327
        %v2230 = vpop.permute.xlu0 %2229
        %2232 = vset.pattern.permute.xlu0 1
        %2233 = vperm.xlu0 %2232, %v1328
        %v2234 = vpop.permute.xlu0 %2233
        %2236 = vset.pattern.permute.xlu0 1
        %2237 = vperm.xlu0 %2236, %v1329
        %v2238 = vpop.permute.xlu0 %2237
        %2240 = vset.pattern.permute.xlu0 1
        %2241 = vperm.xlu0 %2240, %v1330
        %v2242 = vpop.permute.xlu0 %2241
        %v2244 = vadd.f32 %v2204, %v2214
        %v2245 = vadd.f32 %v2205, %v2218
        %v2246 = vadd.f32 %v2206, %v2222
        %v2247 = vadd.f32 %v2207, %v2226
        %v2248 = vadd.f32 %v2208, %v2230
        %v2249 = vadd.f32 %v2209, %v2234
        %v2250 = vadd.f32 %v2210, %v2238
        %v2251 = vadd.f32 %v2211, %v2242
        %v2252 = vmul.f32 %v2244, 0.5
        %v2253 = vmul.f32 %v2245, 0.5
        %v2254 = vmul.f32 %v2246, 0.5
        %v2255 = vmul.f32 %v2247, 0.5
        %v2256 = vmul.f32 %v2248, 0.5
        %v2257 = vmul.f32 %v2249, 0.5
        %v2258 = vmul.f32 %v2250, 0.5
        %v2259 = vmul.f32 %v2251, 0.5
        %v2260 = vmul.f32 %v2244, 0.044715
        %v2261 = vmul.f32 %v2245, 0.044715
        %v2262 = vmul.f32 %v2246, 0.044715
        %v2263 = vmul.f32 %v2247, 0.044715
        %v2264 = vmul.f32 %v2248, 0.044715
        %v2265 = vmul.f32 %v2249, 0.044715
        %v2266 = vmul.f32 %v2250, 0.044715
        %v2267 = vmul.f32 %v2251, 0.044715
        %v2268 = vmul.f32 %v2260, %v2244
        %v2269 = vmul.f32 %v2261, %v2245
        %v2270 = vmul.f32 %v2262, %v2246
        %v2271 = vmul.f32 %v2263, %v2247
        %v2272 = vmul.f32 %v2264, %v2248
        %v2273 = vmul.f32 %v2265, %v2249
        %v2274 = vmul.f32 %v2266, %v2250
        %v2275 = vmul.f32 %v2267, %v2251
        %v2276 = vmul.f32 %v2268, %v2244
        %v2277 = vmul.f32 %v2269, %v2245
        %v2278 = vmul.f32 %v2270, %v2246
        %v2279 = vmul.f32 %v2271, %v2247
        %v2280 = vmul.f32 %v2272, %v2248
        %v2281 = vmul.f32 %v2273, %v2249
        %v2282 = vmul.f32 %v2274, %v2250
        %v2283 = vmul.f32 %v2275, %v2251
        %v2284 = vadd.f32 %v2244, %v2276
        %v2285 = vadd.f32 %v2245, %v2277
        %v2286 = vadd.f32 %v2246, %v2278
        %v2287 = vadd.f32 %v2247, %v2279
        %v2288 = vadd.f32 %v2248, %v2280
        %v2289 = vadd.f32 %v2249, %v2281
        %v2290 = vadd.f32 %v2250, %v2282
        %v2291 = vadd.f32 %v2251, %v2283
        %v2292 = vmul.f32 %v2284, 0.7978846
        %v2293 = vmul.f32 %v2285, 0.7978846
        %v2294 = vmul.f32 %v2286, 0.7978846
        %v2295 = vmul.f32 %v2287, 0.7978846
        %v2296 = vmul.f32 %v2288, 0.7978846
        %v2297 = vmul.f32 %v2289, 0.7978846
        %v2298 = vmul.f32 %v2290, 0.7978846
        %v2299 = vmul.f32 %v2291, 0.7978846
        %v2300 = vtanh.pop %v2292
        %v2301 = vtanh.pop %v2293
        %v2302 = vtanh.pop %v2294
        %v2303 = vtanh.pop %v2295
        %v2304 = vtanh.pop %v2296
        %v2305 = vtanh.pop %v2297
        %v2306 = vtanh.pop %v2298
        %v2307 = vtanh.pop %v2299
        %v2308 = vadd.f32 %v2300, 1.0
        %v2309 = vadd.f32 %v2301, 1.0
        %v2310 = vadd.f32 %v2302, 1.0
        %v2311 = vadd.f32 %v2303, 1.0
        %v2312 = vadd.f32 %v2304, 1.0
        %v2313 = vadd.f32 %v2305, 1.0
        %v2314 = vadd.f32 %v2306, 1.0
        %v2315 = vadd.f32 %v2307, 1.0
        %v2316 = vmul.f32 %v2252, %v2308
        %v2317 = vmul.f32 %v2253, %v2309
        %v2318 = vmul.f32 %v2254, %v2310
        %v2319 = vmul.f32 %v2255, %v2311
        %v2320 = vmul.f32 %v2256, %v2312
        %v2321 = vmul.f32 %v2257, %v2313
        %v2322 = vmul.f32 %v2258, %v2314
        %v2323 = vmul.f32 %v2259, %v2315
        %v2324 = vld [vmem:[%s11] sm:$0xf]
        %v2325 = vld [vmem:[%s11 + $0x4] sm:$0xf]
        %v2326 = vld [vmem:[%s11 + $0x8] sm:$0xf]
        %v2327 = vld [vmem:[%s11 + $0xc] sm:$0xf]
        %v2328 = vpack.c.bf16 %v2317, %v2316
        %v2329 = vpack.c.bf16 %v2319, %v2318
        %v2330 = vpack.c.bf16 %v2321, %v2320
        %v2331 = vpack.c.bf16 %v2323, %v2322
        %v2332 = vld [vmem:[%s12] sm:$0xff]
        %v2333 = vld [vmem:[%s12 + $0x8] sm:$0xff]
        %v2334 = vld [vmem:[%s12 + $0x10] sm:$0xff]
        %v2335 = vld [vmem:[%s12 + $0x18] sm:$0xff]
        %2337 = vset.pattern.permute.xlu0 0
        %2338 = vperm.xlu0 %2337, %v2332
        %v2339 = vpop.permute.xlu0 %2338
        %2342 = vset.pattern.permute.xlu0 0
        %2343 = vperm.xlu0 %2342, %v2333
        %v2344 = vpop.permute.xlu0 %2343
        %2347 = vset.pattern.permute.xlu0 0
        %2348 = vperm.xlu0 %2347, %v2334
        %v2349 = vpop.permute.xlu0 %2348
        %2352 = vset.pattern.permute.xlu0 0
        %2353 = vperm.xlu0 %2352, %v2335
        %v2354 = vpop.permute.xlu0 %2353
        %v2360 = vunpack.c.l.b16 %v2324
        %v2361 = vunpack.c.l.b16 %v2325
        %v2362 = vunpack.c.l.b16 %v2326
        %v2363 = vunpack.c.l.b16 %v2327
        %v2364 = vpack.c.b16 %v2361, %v2360
        %v2365 = vpack.c.b16 %v2363, %v2362
        %vm2366 = vcmask 523264
        %v2368 = vsel %vm2366, %v2364, 0
        %v2371 = vsel %vm2366, %v2365, 0
        %2373 = vmatprep.subr.bf16.mxu0 0
        %2374 = vmatpush1.bf16.msra.mxu0 %v2328
        %2375 = vmatprep.subr.bf16.mxu0 0
        %2376 = vmatpush1.bf16.msra.mxu0 %v2329
        %2377 = vmatprep.subr.bf16.mxu0 0
        %2378 = vmatpush1.bf16.msra.mxu0 %v2330
        %2379 = vmatprep.subr.bf16.mxu0 0
        %2380 = vmatpush1.bf16.msra.mxu0 %v2331
        %2381 = vmatprep.subr.bf16.mxu0 0
        %2382 = vmatpush1.bf16.msra.mxu0 0
        %2383 = vmatprep.subr.bf16.mxu0 0
        %2384 = vmatpush1.bf16.msra.mxu0 0
        %2385 = vmatprep.subr.bf16.mxu0 0
        %2386 = vmatpush1.bf16.msra.mxu0 0
        %2387 = vmatprep.subr.bf16.mxu0 0
        %2388 = vmatpush1.bf16.msra.mxu0 0
        %2389 = vmatprep.subr.bf16.mxu0 0
        %2390 = vmatpush1.bf16.msra.mxu0 0
        %2391 = vmatprep.subr.bf16.mxu0 0
        %2392 = vmatpush1.bf16.msra.mxu0 0
        %2393 = vmatprep.subr.bf16.mxu0 0
        %2394 = vmatpush1.bf16.msra.mxu0 0
        %2395 = vmatprep.subr.bf16.mxu0 0
        %2396 = vmatpush1.bf16.msra.mxu0 0
        %2397 = vmatprep.subr.bf16.mxu0 0
        %2398 = vmatpush1.bf16.msra.mxu0 0
        %2399 = vmatprep.subr.bf16.mxu0 0
        %2400 = vmatpush1.bf16.msra.mxu0 0
        %2401 = vmatprep.subr.bf16.mxu0 0
        %2402 = vmatpush1.bf16.msra.mxu0 0
        %2403 = vmatprep.subr.bf16.mxu0 0
        %2404 = vmatpush1.bf16.msra.mxu0 0
        %2405 = vmatprep.mubr.bf16.mxu0 0
        %2406 = vmatmul.mubr.bf16.gmra.mrb[0].mxu0 %v2368
        %v2407 = vpop.f32.mrb[0].mxu0
        %v2408 = vadd.f32 %v2339, %v2407
        %v2409 = vpop.f32.mrb[0].mxu0
        %v2410 = vpop.f32.mrb[0].mxu0
        %v2411 = vadd.f32 %v2344, %v2410
        %v2412 = vpop.f32.mrb[0].mxu0
        %2413 = vmatprep.mubr.bf16.mxu0 0
        %2414 = vmatmul.mubr.bf16.gmra.mrb[0].mxu0 %v2371
        %v2415 = vpop.f32.mrb[0].mxu0
        %v2416 = vadd.f32 %v2349, %v2415
        %v2417 = vpop.f32.mrb[0].mxu0
        %v2418 = vpop.f32.mrb[0].mxu0
        %v2419 = vadd.f32 %v2354, %v2418
        %v2420 = vpop.f32.mrb[0].mxu0
        %2421 = vdwg.mxu0
        %v2422 = vadd.f32 %v1309, %v2408
        %v2423 = vadd.f32 %v1310, %v2411
        %v2424 = vadd.f32 %v1311, %v2416
        %v2425 = vadd.f32 %v1312, %v2419
        %2426 = vst [vmem:[%s433] sm:$0xff] %v2422
        %2427 = vst [vmem:[%s433 + $0x8] sm:$0xff] %v2423
        %2428 = vst [vmem:[%s433 + $0x10] sm:$0xff] %v2424
        %2429 = vst [vmem:[%s433 + $0x18] sm:$0xff] %v2425
        %s2430 = sand.u32 %s313, 1
        %s2431 = scalar_lea.sflag [#allocation3], %s2430
        %s2432 = sand.u32 %s313, 1
        %s2433 = smul.addr %s2432, 32
        %s2434 = scalar_lea.vmem [#allocation2], %s2433
        // Predicated region
        $region73: #{backtracing_decoder_layer_forward.1} parent=71 // pred_check
          %p2435 = pneg %p323
        $region74: #{backtracing_decoder_layer_forward.1} parent=71 // pred_check_branch
          %2437 = sbr.rel (%p2435) target = $region76
        $region75: #{backtracing_decoder_layer_forward.1} parent=71 // pred_region
          %s2439 = ssub.s32 512, 512
          %2440 = vsyncadd %s2431, %s2439
          %s2441 = smul.addr %s27, 4
          %s2442 = smul.addr %s2441, 128
          %s2443 = scalar_lea.hbm %s13, %s2442
          %s2444 = sshll.u32 %s2434, 4
          %s2445 = int_to_ptr.vmem [resolvable:$true] %s2444
          %2450 = dma.vmem_to_hbm [thread:$0]  %s2445, 512, %s2443, %s2431, 128, 128, 8
        $region76: #{backtracing_decoder_layer_forward.1} parent=71 // pred_fallthru
          _
      $region72: #{backtracing_decoder_layer_forward.1} parent=5 // pred_fallthru
        _
      %p2451 = scmp.le.s32.totalorder 2, %s22
      // Predicated region
      $region77: #{backtracing_decoder_layer_forward.1} parent=5 // pred_check
        %p2452 = pneg %p2451
      $region78: #{backtracing_decoder_layer_forward.1} parent=5 // pred_check_branch
        %2454 = sbr.rel (%p2452) target = $region80
      $region79: #{backtracing_decoder_layer_forward.1} parent=5 // pred_region
        %s2455 = ssub.s32 %s22, 2
        // Predicated region
        $region81: #{backtracing_decoder_layer_forward.1} parent=79 // pred_check
          %p2456 = pneg %p329
        $region82: #{backtracing_decoder_layer_forward.1} parent=79 // pred_check_branch
          %2458 = sbr.rel (%p2456) target = $region84
        $region83: #{backtracing_decoder_layer_forward.1} parent=79 // pred_region
          %s2459 = sand.u32 %s314, 1
          %s2460 = scalar_lea.sflag [#allocation3], %s2459
          %s2461 = sand.u32 %s314, 1
          %s2462 = smul.addr %s2461, 32
          %s2463 = scalar_lea.vmem [#allocation2], %s2462
          %2464 = dma.done %s2460, 512
        $region84: #{backtracing_decoder_layer_forward.1} parent=79 // pred_fallthru
          _
      $region80: #{backtracing_decoder_layer_forward.1} parent=5 // pred_fallthru
        _
    $region6: #{backtracing_decoder_layer_forward.1} parent=1 // loop_footer
      %s26 = sadd.s32 1, %s22
    $region7: #{backtracing_decoder_layer_forward.1} parent=1 // loop_footer_branch
      %21 = sbr.rel target = $region3
    $region8: #{backtracing_decoder_layer_forward.1} parent=1 // loop_exit
      _
    %2465 = vsyncpa [#allocation3], 1
    %s2466 = scalar_lea.sflag [#allocation3], 1
    %2467 = vsyncpa %s2466, 1

</llo_original>
